<compile_context>
chip_gen: v5e
topology: v5e:2x2
jax: 0.10.0
libtpu: 0.0.40
codegen_flags: <defaults>
</compile_context>

<pallas_src>
import functools

import numpy as np
import jax
import jax.numpy as jnp
from jax.experimental import pallas as pl
from jax.experimental.pallas import tpu as pltpu


# ------------------------------ Pallas kernel -------------------------------

def _fused_forward_kernel(p1_ref, w1_ref, b1_ref,
                          s2_ref, w2_ref, b2_ref,
                          qsel_ref, wfc1_ref, bfc1_ref,
                          wfc2_ref, bfc2_ref,
                          wq1_ref, wq2_ref, wfc3_ref, bfc3_ref,
                          o_ref):
    """Whole HybridLeNet5_quanv forward in one kernel.

    Layout conventions:
      * conv feature maps are lane-dense (channels, columns); columns are
        ordered corner-major (2x2-pool-corner, batch, h, w), so each max-pool
        is three pairwise jnp.maximum ops on contiguous column blocks (VPU).
      * the FC / quantum tail runs transposed, (features, batch): every layer
        is a plain left-matmul with a pre-transposed weight.
    """
    f32 = jnp.float32
    cd = p1_ref.dtype                                   # bf16 compute dtype

    # ---- conv_1 + bias + ReLU + fused 2x2 max-pool ----
    y1 = jnp.dot(w1_ref[...], p1_ref[...], preferred_element_type=f32)
    y1 = jnp.maximum(y1 + b1_ref[...], 0.0)
    q1 = y1.shape[1] // 4
    a1 = jnp.maximum(jnp.maximum(y1[:, 0 * q1:1 * q1], y1[:, 1 * q1:2 * q1]),
                     jnp.maximum(y1[:, 2 * q1:3 * q1], y1[:, 3 * q1:4 * q1]))
    a1 = a1.astype(cd)                                  # (c1p, B*ph*pw)

    # ---- conv_2 as 25 accumulated gather-matmuls + bias + ReLU + pool ----
    y2 = jnp.zeros((w2_ref.shape[1], s2_ref.shape[2]), f32)
    for o in range(w2_ref.shape[0]):                    # k2*k2 static offsets
        g = jnp.dot(a1, s2_ref[o], preferred_element_type=f32)   # window gather
        y2 = y2 + jnp.dot(w2_ref[o], g.astype(cd), preferred_element_type=f32)
    y2 = jnp.maximum(y2 + b2_ref[...], 0.0)
    q2 = y2.shape[1] // 4
    a2 = jnp.maximum(jnp.maximum(y2[:, 0 * q2:1 * q2], y2[:, 1 * q2:2 * q2]),
                     jnp.maximum(y2[:, 2 * q2:3 * q2], y2[:, 3 * q2:4 * q2]))
    a2 = a2.astype(cd)                                  # (c2, B*p2h*p2w)

    # ---- torch (c,h,w) flatten folded into fc_1 + ReLU  (tail = (feat, B)) --
    h = jnp.zeros((wfc1_ref.shape[1], qsel_ref.shape[2]), f32)
    for p in range(qsel_ref.shape[0]):                  # spatial positions/img
        t = jnp.dot(a2, qsel_ref[p], preferred_element_type=f32)  # (c2, B)
        h = h + jnp.dot(wfc1_ref[p], t.astype(cd), preferred_element_type=f32)
    h = jnp.maximum(h + bfc1_ref[...], 0.0)

    # ---- fc_2 + ReLU ----
    h = jnp.dot(wfc2_ref[...], h.astype(cd), preferred_element_type=f32)
    h = jnp.maximum(h + bfc2_ref[...], 0.0)

    # TODO(synk): qc_1 / qc_2 are PennyLane variational circuits (TorchLayer);
    # no Pallas equivalent — surrogated as relu(cos(W @ x)), which preserves
    # shapes and the bounded expectation-value-like range only.
    h = jnp.dot(wq1_ref[...], h.astype(cd), preferred_element_type=f32)
    h = jnp.maximum(jnp.cos(h), 0.0)                    # relu(qc_1)
    h = jnp.dot(wq2_ref[...], h.astype(cd), preferred_element_type=f32)  # block-diag groups
    h = jnp.maximum(jnp.cos(h), 0.0)                    # relu(qc_2)

    # ---- fc_3 (block-diagonal over the .view(B,-1,nq2) groups) ----
    y = jnp.dot(wfc3_ref[...], h.astype(cd), preferred_element_type=f32)
    o_ref[...] = (y + bfc3_ref[...]).astype(o_ref.dtype)


# --------------------------- host-side preparation ---------------------------

def _pad_axis(a, axis, mult):
    pad = (-a.shape[axis]) % mult
    if pad == 0:
        return a
    widths = [(0, 0)] * a.ndim
    widths[axis] = (0, pad)
    return jnp.pad(a, widths)


def _block_diag(w, groups):
    n_in, n_out = w.shape
    out = jnp.zeros((groups * n_in, groups * n_out), w.dtype)
    for g in range(groups):
        out = out.at[g * n_in:(g + 1) * n_in, g * n_out:(g + 1) * n_out].set(w)
    return out


@functools.lru_cache(maxsize=None)
def _gather_constants(batch, ph, pw, k2):
    """Constant 0/1 selectors (trace-time numpy) for the fused kernel.

    * sel[o]: (B*ph*pw, 4*B*p2h*p2w) gathers the conv_2 window columns for
      kernel offset o out of the lane-dense pooled conv_1 map; output columns
      are corner-major so the 2x2 pool fuses as pairwise maxima.
    * qsel[p]: (B*p2h*p2w, B) picks spatial position p of every image, used to
      fold torch's `.view(-1, flatten_size)` into per-position fc_1 slabs.
    """
    oh, ow = ph - k2 + 1, pw - k2 + 1
    assert oh % 2 == 0 and ow % 2 == 0, "fused 2x2 pool needs even conv_2 output"
    p2h, p2w = oh // 2, ow // 2
    n_in, n_out = batch * ph * pw, batch * p2h * p2w
    sel = np.zeros((k2 * k2, n_in, 4 * n_out), np.float32)
    for di in range(k2):
        for dj in range(k2):
            o = di * k2 + dj
            for ci in range(2):
                for cj in range(2):
                    corner = ci * 2 + cj
                    for b in range(batch):
                        for yy in range(p2h):
                            for xx in range(p2w):
                                oi, oj = 2 * yy + ci, 2 * xx + cj
                                in_col = b * ph * pw + (oi + di) * pw + (oj + dj)
                                out_col = corner * n_out + b * p2h * p2w + yy * p2w + xx
                                sel[o, in_col, out_col] = 1.0
    npos = p2h * p2w
    qsel = np.zeros((npos, n_out, batch), np.float32)
    for p in range(npos):
        for b in range(batch):
            qsel[p, b * npos + p, b] = 1.0
    return sel, qsel


def prepare_params(params, compute_dtype=jnp.bfloat16):
    """One-time weight preprocessing: K/OC padding, per-offset conv_2 slabs,
    flatten-fold of fc_1, block-diag grouping of qc_2/fc_3, transposed tail,
    bf16 for everything MXU-facing (biases stay f32)."""
    cd = compute_dtype
    f32 = jnp.float32

    c1, cin, k1, _ = params["conv1_w"].shape
    c2, _, k2, _ = params["conv2_w"].shape
    c1p = -(-c1 // 8) * 8

    w1 = params["conv1_w"].reshape(c1, cin * k1 * k1)
    w1 = _pad_axis(_pad_axis(w1, 1, 8), 0, 8).astype(cd)              # (c1p, K1p)
    b1 = _pad_axis(params["conv1_b"], 0, 8).reshape(-1, 1).astype(f32)

    w2 = jnp.pad(params["conv2_w"], ((0, 0), (0, c1p - c1), (0, 0), (0, 0)))
    w2 = jnp.transpose(w2, (2, 3, 0, 1)).reshape(k2 * k2, c2, c1p).astype(cd)
    b2 = params["conv2_b"].reshape(-1, 1).astype(f32)

    flatten, fc2_size = params["fc1_w"].shape
    npos = flatten // c2                                              # spatial pos / image
    wfc1 = jnp.transpose(params["fc1_w"].reshape(c2, npos, fc2_size), (1, 2, 0)).astype(cd)
    bfc1 = params["fc1_b"].reshape(-1, 1).astype(f32)

    nq1, nq2 = params["q1_w"].shape[0], params["q2_w"].shape[0]
    groups = nq1 // nq2
    ou_dim = params["fc3_w"].shape[1]

    prepped = {
        "conv1_w": w1, "conv1_b": b1,
        "conv2_w": w2, "conv2_b": b2,
        "fc1_w": wfc1, "fc1_b": bfc1,
        "fc2_w": params["fc2_w"].T.astype(cd),
        "fc2_b": params["fc2_b"].reshape(-1, 1).astype(f32),
        "q1_w": params["q1_w"].T.astype(cd),
        "q2_w": _block_diag(params["q2_w"].T, groups).astype(cd),
        "fc3_w": _block_diag(params["fc3_w"].T, groups).astype(cd),
        "fc3_b": jnp.tile(params["fc3_b"], groups).reshape(-1, 1).astype(f32),
    }
    meta = {"k1": k1, "k2": k2, "pad1": (k1 - 1) // 2,
            "groups": groups, "ou_dim": ou_dim}
    return prepped, meta


# --------------------------------- forward ----------------------------------

def hybrid_lenet5_quanv_forward(x, prepped, meta):
    """Mirrors HybridLeNet5_quanv.forward (NCHW input); ONE pallas_call total."""
    cd = prepped["conv1_w"].dtype
    B = x.shape[0]
    k1, k2, pad1 = meta["k1"], meta["k2"], meta["pad1"]

    # conv_1 im2col (host, ~6 XLA ops), columns ordered corner-major
    # (2x2-pool corner, batch, pooled-h, pooled-w).
    patches = jax.lax.conv_general_dilated_patches(
        x, (k1, k1), (1, 1), ((pad1, pad1), (pad1, pad1)))    # (B, C*k1*k1, OH, OW)
    K1, OH, OW = patches.shape[1], patches.shape[2], patches.shape[3]
    assert OH % 2 == 0 and OW % 2 == 0, "fused 2x2 pool needs even conv_1 output"
    PH, PW = OH // 2, OW // 2
    p1 = jnp.transpose(patches, (1, 0, 2, 3)).reshape(K1, B, PH, 2, PW, 2)
    p1 = jnp.transpose(p1, (0, 3, 5, 1, 2, 4)).reshape(K1, 4 * B * PH * PW)
    kpad = (-K1) % 8
    if kpad:
        p1 = jnp.pad(p1, ((0, kpad), (0, 0)))
    p1 = p1.astype(cd)

    sel_np, qsel_np = _gather_constants(B, PH, PW, k2)        # trace-time constants
    sel = jnp.asarray(sel_np, dtype=cd)
    qsel = jnp.asarray(qsel_np, dtype=cd)

    n_out_rows = prepped["fc3_w"].shape[0]                    # groups * ou_dim
    vmem = pl.BlockSpec(memory_space=pltpu.MemorySpace.VMEM)
    out = pl.pallas_call(
        _fused_forward_kernel,
        out_shape=jax.ShapeDtypeStruct((n_out_rows, B), jnp.float32),
        in_specs=[vmem] * 15,
        out_specs=vmem,
    )(p1, prepped["conv1_w"], prepped["conv1_b"],
      sel, prepped["conv2_w"], prepped["conv2_b"],
      qsel, prepped["fc1_w"], prepped["fc1_b"],
      prepped["fc2_w"], prepped["fc2_b"],
      prepped["q1_w"], prepped["q2_w"],
      prepped["fc3_w"], prepped["fc3_b"])

    return out.T.reshape(B, meta["groups"], meta["ou_dim"])


# ------------------------- pure-JAX f32 reference ---------------------------

def reference_forward(x, params, nq2):
    """f32 reference mirroring the torch forward (same qc_1/qc_2 surrogate)."""
    y = jax.lax.conv_general_dilated(x, params["conv1_w"], (1, 1), ((2, 2), (2, 2)))
    y = jax.nn.relu(y + params["conv1_b"][None, :, None, None])
    y = jax.lax.reduce_window(y, -jnp.inf, jax.lax.max, (1, 1, 2, 2), (1, 1, 2, 2), "VALID")
    y = jax.lax.conv_general_dilated(y, params["conv2_w"], (1, 1), "VALID")
    y = jax.nn.relu(y + params["conv2_b"][None, :, None, None])
    y = jax.lax.reduce_window(y, -jnp.inf, jax.lax.max, (1, 1, 2, 2), (1, 1, 2, 2), "VALID")
    h = y.reshape(y.shape[0], -1)
    h = jax.nn.relu(h @ params["fc1_w"] + params["fc1_b"])
    h = jax.nn.relu(h @ params["fc2_w"] + params["fc2_b"])
    h = jax.nn.relu(jnp.cos(h @ params["q1_w"]))               # qc_1 surrogate
    h = h.reshape(h.shape[0], -1, nq2)
    h = jax.nn.relu(jnp.cos(h @ params["q2_w"]))               # qc_2 surrogate
    return h @ params["fc3_w"] + params["fc3_b"]


# ----------------------------------- main ------------------------------------

if __name__ == "__main__":
    key = jax.random.PRNGKey(0)
    ks = jax.random.split(key, 12)

    # module hyper-params (small, consistent with the torch module's __init__)
    B, C, H, W = 2, 1, 16, 16          # in_shape = (1, 16, 16)
    nq1, nq2, ou_dim = 8, 4, 3         # qlayer_1.n_qubits, qlayer_2.n_qubits, ou_dim
    c1, c2, k = 6, 16, 5
    # size_conv_layer chain: 16 -> 16 -> 8 -> 4 -> 2
    flatten_size = (W // 4 - 2) * (H // 4 - 2) * c2      # 2*2*16 = 64
    fc2_size = int(flatten_size * 30 / 100)              # 19

    def init(kk, shape, scale=0.1):
        return (scale * jax.random.normal(kk, shape)).astype(jnp.float32)

    params = {
        "conv1_w": init(ks[0], (c1, C, k, k)),
        "conv1_b": init(ks[1], (c1,)),
        "conv2_w": init(ks[2], (c2, c1, k, k)),
        "conv2_b": init(ks[3], (c2,)),
        "fc1_w": init(ks[4], (flatten_size, fc2_size)),
        "fc1_b": init(ks[5], (fc2_size,)),
        "fc2_w": init(ks[6], (fc2_size, nq1)),
        "fc2_b": init(ks[7], (nq1,)),
        "q1_w": init(ks[8], (nq1, nq1), scale=1.0),
        "q2_w": init(ks[9], (nq2, nq2), scale=1.0),
        "fc3_w": init(ks[10], (nq2, ou_dim)),
        "fc3_b": init(ks[11], (ou_dim,)),
    }

    prepped, meta = prepare_params(params)
    x = jax.random.normal(jax.random.PRNGKey(42), (B, C, H, W), dtype=jnp.float32)

    fwd = jax.jit(functools.partial(hybrid_lenet5_quanv_forward, meta=meta))
    out = jax.block_until_ready(fwd(x, prepped))

    assert out.shape == (B, nq1 // nq2, ou_dim), out.shape
    assert bool(jnp.all(jnp.isfinite(out)))

    # tolerance-gated check against the pure-JAX f32 reference (bf16 drift only)
    ref = reference_forward(x, params, nq2)
    max_err = float(jnp.max(jnp.abs(out - ref)))
    assert max_err < 5e-2, f"max |pallas - ref| = {max_err}"

    print("KERNEL_OK")
</pallas_src>

<mosaic_0001>
module attributes {stable_mosaic.version = 11 : i64} {
  func.func @_fused_forward_kernel(%arg0: memref<32x512xbf16, #tpu.memory_space<vmem>>, %arg1: memref<8x32xbf16, #tpu.memory_space<vmem>>, %arg2: memref<8x1xf32, #tpu.memory_space<vmem>>, %arg3: memref<25x128x32xbf16, #tpu.memory_space<vmem>>, %arg4: memref<25x16x8xbf16, #tpu.memory_space<vmem>>, %arg5: memref<16x1xf32, #tpu.memory_space<vmem>>, %arg6: memref<4x8x2xbf16, #tpu.memory_space<vmem>>, %arg7: memref<4x19x16xbf16, #tpu.memory_space<vmem>>, %arg8: memref<19x1xf32, #tpu.memory_space<vmem>>, %arg9: memref<8x19xbf16, #tpu.memory_space<vmem>>, %arg10: memref<8x1xf32, #tpu.memory_space<vmem>>, %arg11: memref<8x8xbf16, #tpu.memory_space<vmem>>, %arg12: memref<8x8xbf16, #tpu.memory_space<vmem>>, %arg13: memref<6x8xbf16, #tpu.memory_space<vmem>>, %arg14: memref<6x1xf32, #tpu.memory_space<vmem>>, %arg15: memref<6x2xf32, #tpu.memory_space<vmem>>) attributes {dimension_semantics = [], scalar_prefetch = 0 : i64, scratch_operands = 0 : i64, tpu.core_type = #tpu.core_type<tc>} {
    %c0 = arith.constant 0 : index
    %c0_0 = arith.constant 0 : index
    %0 = vector.load %arg1[%c0, %c0_0] : memref<8x32xbf16, #tpu.memory_space<vmem>>, vector<8x32xbf16>
    %c0_1 = arith.constant 0 : index
    %c0_2 = arith.constant 0 : index
    %1 = vector.load %arg0[%c0_1, %c0_2] : memref<32x512xbf16, #tpu.memory_space<vmem>>, vector<32x512xbf16>
    %cst = arith.constant dense<0.000000e+00> : vector<8x512xf32>
    %2 = tpu.matmul %0, %1, %cst {dimension_numbers = #tpu.dot_dimension_numbers<[1], [0], [0], [1], [0, 0, 1, 1], [], []>} : vector<8x32xbf16>, vector<32x512xbf16>, vector<8x512xf32> -> vector<8x512xf32>
    %c0_3 = arith.constant 0 : index
    %c0_4 = arith.constant 0 : index
    %3 = vector.load %arg2[%c0_3, %c0_4] : memref<8x1xf32, #tpu.memory_space<vmem>>, vector<8x1xf32>
    %4 = vector.broadcast %3 : vector<8x1xf32> to vector<8x512xf32>
    %5 = arith.addf %2, %4 : vector<8x512xf32>
    %cst_5 = arith.constant 0.000000e+00 : f32
    %6 = vector.broadcast %cst_5 : f32 to vector<8x512xf32>
    %7 = arith.maximumf %5, %6 : vector<8x512xf32>
    %8 = vector.extract_strided_slice %7 {offsets = [0, 0], sizes = [8, 128], strides = [1, 1]} : vector<8x512xf32> to vector<8x128xf32>
    %9 = vector.extract_strided_slice %7 {offsets = [0, 128], sizes = [8, 128], strides = [1, 1]} : vector<8x512xf32> to vector<8x128xf32>
    %10 = arith.maximumf %8, %9 : vector<8x128xf32>
    %11 = vector.extract_strided_slice %7 {offsets = [0, 256], sizes = [8, 128], strides = [1, 1]} : vector<8x512xf32> to vector<8x128xf32>
    %12 = vector.extract_strided_slice %7 {offsets = [0, 384], sizes = [8, 128], strides = [1, 1]} : vector<8x512xf32> to vector<8x128xf32>
    %13 = arith.maximumf %11, %12 : vector<8x128xf32>
    %14 = arith.maximumf %10, %13 : vector<8x128xf32>
    %15 = arith.truncf %14 : vector<8x128xf32> to vector<8x128xbf16>
    %cst_6 = arith.constant 0.000000e+00 : f32
    %16 = vector.broadcast %cst_6 : f32 to vector<16x32xf32>
    %c0_7 = arith.constant 0 : index
    %c0_8 = arith.constant 0 : index
    %c0_9 = arith.constant 0 : index
    %17 = vector.load %arg3[%c0_7, %c0_8, %c0_9] : memref<25x128x32xbf16, #tpu.memory_space<vmem>>, vector<1x128x32xbf16>
    %18 = vector.shape_cast %17 : vector<1x128x32xbf16> to vector<128x32xbf16>
    %cst_10 = arith.constant dense<0.000000e+00> : vector<8x32xf32>
    %19 = tpu.matmul %15, %18, %cst_10 {dimension_numbers = #tpu.dot_dimension_numbers<[1], [0], [0], [1], [0, 0, 1, 1], [], []>} : vector<8x128xbf16>, vector<128x32xbf16>, vector<8x32xf32> -> vector<8x32xf32>
    %c0_11 = arith.constant 0 : index
    %c0_12 = arith.constant 0 : index
    %c0_13 = arith.constant 0 : index
    %20 = vector.load %arg4[%c0_11, %c0_12, %c0_13] : memref<25x16x8xbf16, #tpu.memory_space<vmem>>, vector<1x16x8xbf16>
    %21 = vector.shape_cast %20 : vector<1x16x8xbf16> to vector<16x8xbf16>
    %22 = arith.truncf %19 : vector<8x32xf32> to vector<8x32xbf16>
    %cst_14 = arith.constant dense<0.000000e+00> : vector<16x32xf32>
    %23 = tpu.matmul %21, %22, %cst_14 {dimension_numbers = #tpu.dot_dimension_numbers<[1], [0], [0], [1], [0, 0, 1, 1], [], []>} : vector<16x8xbf16>, vector<8x32xbf16>, vector<16x32xf32> -> vector<16x32xf32>
    %24 = arith.addf %16, %23 : vector<16x32xf32>
    %c1 = arith.constant 1 : index
    %c0_15 = arith.constant 0 : index
    %c0_16 = arith.constant 0 : index
    %25 = vector.load %arg3[%c1, %c0_15, %c0_16] : memref<25x128x32xbf16, #tpu.memory_space<vmem>>, vector<1x128x32xbf16>
    %26 = vector.shape_cast %25 : vector<1x128x32xbf16> to vector<128x32xbf16>
    %cst_17 = arith.constant dense<0.000000e+00> : vector<8x32xf32>
    %27 = tpu.matmul %15, %26, %cst_17 {dimension_numbers = #tpu.dot_dimension_numbers<[1], [0], [0], [1], [0, 0, 1, 1], [], []>} : vector<8x128xbf16>, vector<128x32xbf16>, vector<8x32xf32> -> vector<8x32xf32>
    %c1_18 = arith.constant 1 : index
    %c0_19 = arith.constant 0 : index
    %c0_20 = arith.constant 0 : index
    %28 = vector.load %arg4[%c1_18, %c0_19, %c0_20] : memref<25x16x8xbf16, #tpu.memory_space<vmem>>, vector<1x16x8xbf16>
    %29 = vector.shape_cast %28 : vector<1x16x8xbf16> to vector<16x8xbf16>
    %30 = arith.truncf %27 : vector<8x32xf32> to vector<8x32xbf16>
    %cst_21 = arith.constant dense<0.000000e+00> : vector<16x32xf32>
    %31 = tpu.matmul %29, %30, %cst_21 {dimension_numbers = #tpu.dot_dimension_numbers<[1], [0], [0], [1], [0, 0, 1, 1], [], []>} : vector<16x8xbf16>, vector<8x32xbf16>, vector<16x32xf32> -> vector<16x32xf32>
    %32 = arith.addf %24, %31 : vector<16x32xf32>
    %c2 = arith.constant 2 : index
    %c0_22 = arith.constant 0 : index
    %c0_23 = arith.constant 0 : index
    %33 = vector.load %arg3[%c2, %c0_22, %c0_23] : memref<25x128x32xbf16, #tpu.memory_space<vmem>>, vector<1x128x32xbf16>
    %34 = vector.shape_cast %33 : vector<1x128x32xbf16> to vector<128x32xbf16>
    %cst_24 = arith.constant dense<0.000000e+00> : vector<8x32xf32>
    %35 = tpu.matmul %15, %34, %cst_24 {dimension_numbers = #tpu.dot_dimension_numbers<[1], [0], [0], [1], [0, 0, 1, 1], [], []>} : vector<8x128xbf16>, vector<128x32xbf16>, vector<8x32xf32> -> vector<8x32xf32>
    %c2_25 = arith.constant 2 : index
    %c0_26 = arith.constant 0 : index
    %c0_27 = arith.constant 0 : index
    %36 = vector.load %arg4[%c2_25, %c0_26, %c0_27] : memref<25x16x8xbf16, #tpu.memory_space<vmem>>, vector<1x16x8xbf16>
    %37 = vector.shape_cast %36 : vector<1x16x8xbf16> to vector<16x8xbf16>
    %38 = arith.truncf %35 : vector<8x32xf32> to vector<8x32xbf16>
    %cst_28 = arith.constant dense<0.000000e+00> : vector<16x32xf32>
    %39 = tpu.matmul %37, %38, %cst_28 {dimension_numbers = #tpu.dot_dimension_numbers<[1], [0], [0], [1], [0, 0, 1, 1], [], []>} : vector<16x8xbf16>, vector<8x32xbf16>, vector<16x32xf32> -> vector<16x32xf32>
    %40 = arith.addf %32, %39 : vector<16x32xf32>
    %c3 = arith.constant 3 : index
    %c0_29 = arith.constant 0 : index
    %c0_30 = arith.constant 0 : index
    %41 = vector.load %arg3[%c3, %c0_29, %c0_30] : memref<25x128x32xbf16, #tpu.memory_space<vmem>>, vector<1x128x32xbf16>
    %42 = vector.shape_cast %41 : vector<1x128x32xbf16> to vector<128x32xbf16>
    %cst_31 = arith.constant dense<0.000000e+00> : vector<8x32xf32>
    %43 = tpu.matmul %15, %42, %cst_31 {dimension_numbers = #tpu.dot_dimension_numbers<[1], [0], [0], [1], [0, 0, 1, 1], [], []>} : vector<8x128xbf16>, vector<128x32xbf16>, vector<8x32xf32> -> vector<8x32xf32>
    %c3_32 = arith.constant 3 : index
    %c0_33 = arith.constant 0 : index
    %c0_34 = arith.constant 0 : index
    %44 = vector.load %arg4[%c3_32, %c0_33, %c0_34] : memref<25x16x8xbf16, #tpu.memory_space<vmem>>, vector<1x16x8xbf16>
    %45 = vector.shape_cast %44 : vector<1x16x8xbf16> to vector<16x8xbf16>
    %46 = arith.truncf %43 : vector<8x32xf32> to vector<8x32xbf16>
    %cst_35 = arith.constant dense<0.000000e+00> : vector<16x32xf32>
    %47 = tpu.matmul %45, %46, %cst_35 {dimension_numbers = #tpu.dot_dimension_numbers<[1], [0], [0], [1], [0, 0, 1, 1], [], []>} : vector<16x8xbf16>, vector<8x32xbf16>, vector<16x32xf32> -> vector<16x32xf32>
    %48 = arith.addf %40, %47 : vector<16x32xf32>
    %c4 = arith.constant 4 : index
    %c0_36 = arith.constant 0 : index
    %c0_37 = arith.constant 0 : index
    %49 = vector.load %arg3[%c4, %c0_36, %c0_37] : memref<25x128x32xbf16, #tpu.memory_space<vmem>>, vector<1x128x32xbf16>
    %50 = vector.shape_cast %49 : vector<1x128x32xbf16> to vector<128x32xbf16>
    %cst_38 = arith.constant dense<0.000000e+00> : vector<8x32xf32>
    %51 = tpu.matmul %15, %50, %cst_38 {dimension_numbers = #tpu.dot_dimension_numbers<[1], [0], [0], [1], [0, 0, 1, 1], [], []>} : vector<8x128xbf16>, vector<128x32xbf16>, vector<8x32xf32> -> vector<8x32xf32>
    %c4_39 = arith.constant 4 : index
    %c0_40 = arith.constant 0 : index
    %c0_41 = arith.constant 0 : index
    %52 = vector.load %arg4[%c4_39, %c0_40, %c0_41] : memref<25x16x8xbf16, #tpu.memory_space<vmem>>, vector<1x16x8xbf16>
    %53 = vector.shape_cast %52 : vector<1x16x8xbf16> to vector<16x8xbf16>
    %54 = arith.truncf %51 : vector<8x32xf32> to vector<8x32xbf16>
    %cst_42 = arith.constant dense<0.000000e+00> : vector<16x32xf32>
    %55 = tpu.matmul %53, %54, %cst_42 {dimension_numbers = #tpu.dot_dimension_numbers<[1], [0], [0], [1], [0, 0, 1, 1], [], []>} : vector<16x8xbf16>, vector<8x32xbf16>, vector<16x32xf32> -> vector<16x32xf32>
    %56 = arith.addf %48, %55 : vector<16x32xf32>
    %c5 = arith.constant 5 : index
    %c0_43 = arith.constant 0 : index
    %c0_44 = arith.constant 0 : index
    %57 = vector.load %arg3[%c5, %c0_43, %c0_44] : memref<25x128x32xbf16, #tpu.memory_space<vmem>>, vector<1x128x32xbf16>
    %58 = vector.shape_cast %57 : vector<1x128x32xbf16> to vector<128x32xbf16>
    %cst_45 = arith.constant dense<0.000000e+00> : vector<8x32xf32>
    %59 = tpu.matmul %15, %58, %cst_45 {dimension_numbers = #tpu.dot_dimension_numbers<[1], [0], [0], [1], [0, 0, 1, 1], [], []>} : vector<8x128xbf16>, vector<128x32xbf16>, vector<8x32xf32> -> vector<8x32xf32>
    %c5_46 = arith.constant 5 : index
    %c0_47 = arith.constant 0 : index
    %c0_48 = arith.constant 0 : index
    %60 = vector.load %arg4[%c5_46, %c0_47, %c0_48] : memref<25x16x8xbf16, #tpu.memory_space<vmem>>, vector<1x16x8xbf16>
    %61 = vector.shape_cast %60 : vector<1x16x8xbf16> to vector<16x8xbf16>
    %62 = arith.truncf %59 : vector<8x32xf32> to vector<8x32xbf16>
    %cst_49 = arith.constant dense<0.000000e+00> : vector<16x32xf32>
    %63 = tpu.matmul %61, %62, %cst_49 {dimension_numbers = #tpu.dot_dimension_numbers<[1], [0], [0], [1], [0, 0, 1, 1], [], []>} : vector<16x8xbf16>, vector<8x32xbf16>, vector<16x32xf32> -> vector<16x32xf32>
    %64 = arith.addf %56, %63 : vector<16x32xf32>
    %c6 = arith.constant 6 : index
    %c0_50 = arith.constant 0 : index
    %c0_51 = arith.constant 0 : index
    %65 = vector.load %arg3[%c6, %c0_50, %c0_51] : memref<25x128x32xbf16, #tpu.memory_space<vmem>>, vector<1x128x32xbf16>
    %66 = vector.shape_cast %65 : vector<1x128x32xbf16> to vector<128x32xbf16>
    %cst_52 = arith.constant dense<0.000000e+00> : vector<8x32xf32>
    %67 = tpu.matmul %15, %66, %cst_52 {dimension_numbers = #tpu.dot_dimension_numbers<[1], [0], [0], [1], [0, 0, 1, 1], [], []>} : vector<8x128xbf16>, vector<128x32xbf16>, vector<8x32xf32> -> vector<8x32xf32>
    %c6_53 = arith.constant 6 : index
    %c0_54 = arith.constant 0 : index
    %c0_55 = arith.constant 0 : index
    %68 = vector.load %arg4[%c6_53, %c0_54, %c0_55] : memref<25x16x8xbf16, #tpu.memory_space<vmem>>, vector<1x16x8xbf16>
    %69 = vector.shape_cast %68 : vector<1x16x8xbf16> to vector<16x8xbf16>
    %70 = arith.truncf %67 : vector<8x32xf32> to vector<8x32xbf16>
    %cst_56 = arith.constant dense<0.000000e+00> : vector<16x32xf32>
    %71 = tpu.matmul %69, %70, %cst_56 {dimension_numbers = #tpu.dot_dimension_numbers<[1], [0], [0], [1], [0, 0, 1, 1], [], []>} : vector<16x8xbf16>, vector<8x32xbf16>, vector<16x32xf32> -> vector<16x32xf32>
    %72 = arith.addf %64, %71 : vector<16x32xf32>
    %c7 = arith.constant 7 : index
    %c0_57 = arith.constant 0 : index
    %c0_58 = arith.constant 0 : index
    %73 = vector.load %arg3[%c7, %c0_57, %c0_58] : memref<25x128x32xbf16, #tpu.memory_space<vmem>>, vector<1x128x32xbf16>
    %74 = vector.shape_cast %73 : vector<1x128x32xbf16> to vector<128x32xbf16>
    %cst_59 = arith.constant dense<0.000000e+00> : vector<8x32xf32>
    %75 = tpu.matmul %15, %74, %cst_59 {dimension_numbers = #tpu.dot_dimension_numbers<[1], [0], [0], [1], [0, 0, 1, 1], [], []>} : vector<8x128xbf16>, vector<128x32xbf16>, vector<8x32xf32> -> vector<8x32xf32>
    %c7_60 = arith.constant 7 : index
    %c0_61 = arith.constant 0 : index
    %c0_62 = arith.constant 0 : index
    %76 = vector.load %arg4[%c7_60, %c0_61, %c0_62] : memref<25x16x8xbf16, #tpu.memory_space<vmem>>, vector<1x16x8xbf16>
    %77 = vector.shape_cast %76 : vector<1x16x8xbf16> to vector<16x8xbf16>
    %78 = arith.truncf %75 : vector<8x32xf32> to vector<8x32xbf16>
    %cst_63 = arith.constant dense<0.000000e+00> : vector<16x32xf32>
    %79 = tpu.matmul %77, %78, %cst_63 {dimension_numbers = #tpu.dot_dimension_numbers<[1], [0], [0], [1], [0, 0, 1, 1], [], []>} : vector<16x8xbf16>, vector<8x32xbf16>, vector<16x32xf32> -> vector<16x32xf32>
    %80 = arith.addf %72, %79 : vector<16x32xf32>
    %c8 = arith.constant 8 : index
    %c0_64 = arith.constant 0 : index
    %c0_65 = arith.constant 0 : index
    %81 = vector.load %arg3[%c8, %c0_64, %c0_65] : memref<25x128x32xbf16, #tpu.memory_space<vmem>>, vector<1x128x32xbf16>
    %82 = vector.shape_cast %81 : vector<1x128x32xbf16> to vector<128x32xbf16>
    %cst_66 = arith.constant dense<0.000000e+00> : vector<8x32xf32>
    %83 = tpu.matmul %15, %82, %cst_66 {dimension_numbers = #tpu.dot_dimension_numbers<[1], [0], [0], [1], [0, 0, 1, 1], [], []>} : vector<8x128xbf16>, vector<128x32xbf16>, vector<8x32xf32> -> vector<8x32xf32>
    %c8_67 = arith.constant 8 : index
    %c0_68 = arith.constant 0 : index
    %c0_69 = arith.constant 0 : index
    %84 = vector.load %arg4[%c8_67, %c0_68, %c0_69] : memref<25x16x8xbf16, #tpu.memory_space<vmem>>, vector<1x16x8xbf16>
    %85 = vector.shape_cast %84 : vector<1x16x8xbf16> to vector<16x8xbf16>
    %86 = arith.truncf %83 : vector<8x32xf32> to vector<8x32xbf16>
    %cst_70 = arith.constant dense<0.000000e+00> : vector<16x32xf32>
    %87 = tpu.matmul %85, %86, %cst_70 {dimension_numbers = #tpu.dot_dimension_numbers<[1], [0], [0], [1], [0, 0, 1, 1], [], []>} : vector<16x8xbf16>, vector<8x32xbf16>, vector<16x32xf32> -> vector<16x32xf32>
    %88 = arith.addf %80, %87 : vector<16x32xf32>
    %c9 = arith.constant 9 : index
    %c0_71 = arith.constant 0 : index
    %c0_72 = arith.constant 0 : index
    %89 = vector.load %arg3[%c9, %c0_71, %c0_72] : memref<25x128x32xbf16, #tpu.memory_space<vmem>>, vector<1x128x32xbf16>
    %90 = vector.shape_cast %89 : vector<1x128x32xbf16> to vector<128x32xbf16>
    %cst_73 = arith.constant dense<0.000000e+00> : vector<8x32xf32>
    %91 = tpu.matmul %15, %90, %cst_73 {dimension_numbers = #tpu.dot_dimension_numbers<[1], [0], [0], [1], [0, 0, 1, 1], [], []>} : vector<8x128xbf16>, vector<128x32xbf16>, vector<8x32xf32> -> vector<8x32xf32>
    %c9_74 = arith.constant 9 : index
    %c0_75 = arith.constant 0 : index
    %c0_76 = arith.constant 0 : index
    %92 = vector.load %arg4[%c9_74, %c0_75, %c0_76] : memref<25x16x8xbf16, #tpu.memory_space<vmem>>, vector<1x16x8xbf16>
    %93 = vector.shape_cast %92 : vector<1x16x8xbf16> to vector<16x8xbf16>
    %94 = arith.truncf %91 : vector<8x32xf32> to vector<8x32xbf16>
    %cst_77 = arith.constant dense<0.000000e+00> : vector<16x32xf32>
    %95 = tpu.matmul %93, %94, %cst_77 {dimension_numbers = #tpu.dot_dimension_numbers<[1], [0], [0], [1], [0, 0, 1, 1], [], []>} : vector<16x8xbf16>, vector<8x32xbf16>, vector<16x32xf32> -> vector<16x32xf32>
    %96 = arith.addf %88, %95 : vector<16x32xf32>
    %c10 = arith.constant 10 : index
    %c0_78 = arith.constant 0 : index
    %c0_79 = arith.constant 0 : index
    %97 = vector.load %arg3[%c10, %c0_78, %c0_79] : memref<25x128x32xbf16, #tpu.memory_space<vmem>>, vector<1x128x32xbf16>
    %98 = vector.shape_cast %97 : vector<1x128x32xbf16> to vector<128x32xbf16>
    %cst_80 = arith.constant dense<0.000000e+00> : vector<8x32xf32>
    %99 = tpu.matmul %15, %98, %cst_80 {dimension_numbers = #tpu.dot_dimension_numbers<[1], [0], [0], [1], [0, 0, 1, 1], [], []>} : vector<8x128xbf16>, vector<128x32xbf16>, vector<8x32xf32> -> vector<8x32xf32>
    %c10_81 = arith.constant 10 : index
    %c0_82 = arith.constant 0 : index
    %c0_83 = arith.constant 0 : index
    %100 = vector.load %arg4[%c10_81, %c0_82, %c0_83] : memref<25x16x8xbf16, #tpu.memory_space<vmem>>, vector<1x16x8xbf16>
    %101 = vector.shape_cast %100 : vector<1x16x8xbf16> to vector<16x8xbf16>
    %102 = arith.truncf %99 : vector<8x32xf32> to vector<8x32xbf16>
    %cst_84 = arith.constant dense<0.000000e+00> : vector<16x32xf32>
    %103 = tpu.matmul %101, %102, %cst_84 {dimension_numbers = #tpu.dot_dimension_numbers<[1], [0], [0], [1], [0, 0, 1, 1], [], []>} : vector<16x8xbf16>, vector<8x32xbf16>, vector<16x32xf32> -> vector<16x32xf32>
    %104 = arith.addf %96, %103 : vector<16x32xf32>
    %c11 = arith.constant 11 : index
    %c0_85 = arith.constant 0 : index
    %c0_86 = arith.constant 0 : index
    %105 = vector.load %arg3[%c11, %c0_85, %c0_86] : memref<25x128x32xbf16, #tpu.memory_space<vmem>>, vector<1x128x32xbf16>
    %106 = vector.shape_cast %105 : vector<1x128x32xbf16> to vector<128x32xbf16>
    %cst_87 = arith.constant dense<0.000000e+00> : vector<8x32xf32>
    %107 = tpu.matmul %15, %106, %cst_87 {dimension_numbers = #tpu.dot_dimension_numbers<[1], [0], [0], [1], [0, 0, 1, 1], [], []>} : vector<8x128xbf16>, vector<128x32xbf16>, vector<8x32xf32> -> vector<8x32xf32>
    %c11_88 = arith.constant 11 : index
    %c0_89 = arith.constant 0 : index
    %c0_90 = arith.constant 0 : index
    %108 = vector.load %arg4[%c11_88, %c0_89, %c0_90] : memref<25x16x8xbf16, #tpu.memory_space<vmem>>, vector<1x16x8xbf16>
    %109 = vector.shape_cast %108 : vector<1x16x8xbf16> to vector<16x8xbf16>
    %110 = arith.truncf %107 : vector<8x32xf32> to vector<8x32xbf16>
    %cst_91 = arith.constant dense<0.000000e+00> : vector<16x32xf32>
    %111 = tpu.matmul %109, %110, %cst_91 {dimension_numbers = #tpu.dot_dimension_numbers<[1], [0], [0], [1], [0, 0, 1, 1], [], []>} : vector<16x8xbf16>, vector<8x32xbf16>, vector<16x32xf32> -> vector<16x32xf32>
    %112 = arith.addf %104, %111 : vector<16x32xf32>
    %c12 = arith.constant 12 : index
    %c0_92 = arith.constant 0 : index
    %c0_93 = arith.constant 0 : index
    %113 = vector.load %arg3[%c12, %c0_92, %c0_93] : memref<25x128x32xbf16, #tpu.memory_space<vmem>>, vector<1x128x32xbf16>
    %114 = vector.shape_cast %113 : vector<1x128x32xbf16> to vector<128x32xbf16>
    %cst_94 = arith.constant dense<0.000000e+00> : vector<8x32xf32>
    %115 = tpu.matmul %15, %114, %cst_94 {dimension_numbers = #tpu.dot_dimension_numbers<[1], [0], [0], [1], [0, 0, 1, 1], [], []>} : vector<8x128xbf16>, vector<128x32xbf16>, vector<8x32xf32> -> vector<8x32xf32>
    %c12_95 = arith.constant 12 : index
    %c0_96 = arith.constant 0 : index
    %c0_97 = arith.constant 0 : index
    %116 = vector.load %arg4[%c12_95, %c0_96, %c0_97] : memref<25x16x8xbf16, #tpu.memory_space<vmem>>, vector<1x16x8xbf16>
    %117 = vector.shape_cast %116 : vector<1x16x8xbf16> to vector<16x8xbf16>
    %118 = arith.truncf %115 : vector<8x32xf32> to vector<8x32xbf16>
    %cst_98 = arith.constant dense<0.000000e+00> : vector<16x32xf32>
    %119 = tpu.matmul %117, %118, %cst_98 {dimension_numbers = #tpu.dot_dimension_numbers<[1], [0], [0], [1], [0, 0, 1, 1], [], []>} : vector<16x8xbf16>, vector<8x32xbf16>, vector<16x32xf32> -> vector<16x32xf32>
    %120 = arith.addf %112, %119 : vector<16x32xf32>
    %c13 = arith.constant 13 : index
    %c0_99 = arith.constant 0 : index
    %c0_100 = arith.constant 0 : index
    %121 = vector.load %arg3[%c13, %c0_99, %c0_100] : memref<25x128x32xbf16, #tpu.memory_space<vmem>>, vector<1x128x32xbf16>
    %122 = vector.shape_cast %121 : vector<1x128x32xbf16> to vector<128x32xbf16>
    %cst_101 = arith.constant dense<0.000000e+00> : vector<8x32xf32>
    %123 = tpu.matmul %15, %122, %cst_101 {dimension_numbers = #tpu.dot_dimension_numbers<[1], [0], [0], [1], [0, 0, 1, 1], [], []>} : vector<8x128xbf16>, vector<128x32xbf16>, vector<8x32xf32> -> vector<8x32xf32>
    %c13_102 = arith.constant 13 : index
    %c0_103 = arith.constant 0 : index
    %c0_104 = arith.constant 0 : index
    %124 = vector.load %arg4[%c13_102, %c0_103, %c0_104] : memref<25x16x8xbf16, #tpu.memory_space<vmem>>, vector<1x16x8xbf16>
    %125 = vector.shape_cast %124 : vector<1x16x8xbf16> to vector<16x8xbf16>
    %126 = arith.truncf %123 : vector<8x32xf32> to vector<8x32xbf16>
    %cst_105 = arith.constant dense<0.000000e+00> : vector<16x32xf32>
    %127 = tpu.matmul %125, %126, %cst_105 {dimension_numbers = #tpu.dot_dimension_numbers<[1], [0], [0], [1], [0, 0, 1, 1], [], []>} : vector<16x8xbf16>, vector<8x32xbf16>, vector<16x32xf32> -> vector<16x32xf32>
    %128 = arith.addf %120, %127 : vector<16x32xf32>
    %c14 = arith.constant 14 : index
    %c0_106 = arith.constant 0 : index
    %c0_107 = arith.constant 0 : index
    %129 = vector.load %arg3[%c14, %c0_106, %c0_107] : memref<25x128x32xbf16, #tpu.memory_space<vmem>>, vector<1x128x32xbf16>
    %130 = vector.shape_cast %129 : vector<1x128x32xbf16> to vector<128x32xbf16>
    %cst_108 = arith.constant dense<0.000000e+00> : vector<8x32xf32>
    %131 = tpu.matmul %15, %130, %cst_108 {dimension_numbers = #tpu.dot_dimension_numbers<[1], [0], [0], [1], [0, 0, 1, 1], [], []>} : vector<8x128xbf16>, vector<128x32xbf16>, vector<8x32xf32> -> vector<8x32xf32>
    %c14_109 = arith.constant 14 : index
    %c0_110 = arith.constant 0 : index
    %c0_111 = arith.constant 0 : index
    %132 = vector.load %arg4[%c14_109, %c0_110, %c0_111] : memref<25x16x8xbf16, #tpu.memory_space<vmem>>, vector<1x16x8xbf16>
    %133 = vector.shape_cast %132 : vector<1x16x8xbf16> to vector<16x8xbf16>
    %134 = arith.truncf %131 : vector<8x32xf32> to vector<8x32xbf16>
    %cst_112 = arith.constant dense<0.000000e+00> : vector<16x32xf32>
    %135 = tpu.matmul %133, %134, %cst_112 {dimension_numbers = #tpu.dot_dimension_numbers<[1], [0], [0], [1], [0, 0, 1, 1], [], []>} : vector<16x8xbf16>, vector<8x32xbf16>, vector<16x32xf32> -> vector<16x32xf32>
    %136 = arith.addf %128, %135 : vector<16x32xf32>
    %c15 = arith.constant 15 : index
    %c0_113 = arith.constant 0 : index
    %c0_114 = arith.constant 0 : index
    %137 = vector.load %arg3[%c15, %c0_113, %c0_114] : memref<25x128x32xbf16, #tpu.memory_space<vmem>>, vector<1x128x32xbf16>
    %138 = vector.shape_cast %137 : vector<1x128x32xbf16> to vector<128x32xbf16>
    %cst_115 = arith.constant dense<0.000000e+00> : vector<8x32xf32>
    %139 = tpu.matmul %15, %138, %cst_115 {dimension_numbers = #tpu.dot_dimension_numbers<[1], [0], [0], [1], [0, 0, 1, 1], [], []>} : vector<8x128xbf16>, vector<128x32xbf16>, vector<8x32xf32> -> vector<8x32xf32>
    %c15_116 = arith.constant 15 : index
    %c0_117 = arith.constant 0 : index
    %c0_118 = arith.constant 0 : index
    %140 = vector.load %arg4[%c15_116, %c0_117, %c0_118] : memref<25x16x8xbf16, #tpu.memory_space<vmem>>, vector<1x16x8xbf16>
    %141 = vector.shape_cast %140 : vector<1x16x8xbf16> to vector<16x8xbf16>
    %142 = arith.truncf %139 : vector<8x32xf32> to vector<8x32xbf16>
    %cst_119 = arith.constant dense<0.000000e+00> : vector<16x32xf32>
    %143 = tpu.matmul %141, %142, %cst_119 {dimension_numbers = #tpu.dot_dimension_numbers<[1], [0], [0], [1], [0, 0, 1, 1], [], []>} : vector<16x8xbf16>, vector<8x32xbf16>, vector<16x32xf32> -> vector<16x32xf32>
    %144 = arith.addf %136, %143 : vector<16x32xf32>
    %c16 = arith.constant 16 : index
    %c0_120 = arith.constant 0 : index
    %c0_121 = arith.constant 0 : index
    %145 = vector.load %arg3[%c16, %c0_120, %c0_121] : memref<25x128x32xbf16, #tpu.memory_space<vmem>>, vector<1x128x32xbf16>
    %146 = vector.shape_cast %145 : vector<1x128x32xbf16> to vector<128x32xbf16>
    %cst_122 = arith.constant dense<0.000000e+00> : vector<8x32xf32>
    %147 = tpu.matmul %15, %146, %cst_122 {dimension_numbers = #tpu.dot_dimension_numbers<[1], [0], [0], [1], [0, 0, 1, 1], [], []>} : vector<8x128xbf16>, vector<128x32xbf16>, vector<8x32xf32> -> vector<8x32xf32>
    %c16_123 = arith.constant 16 : index
    %c0_124 = arith.constant 0 : index
    %c0_125 = arith.constant 0 : index
    %148 = vector.load %arg4[%c16_123, %c0_124, %c0_125] : memref<25x16x8xbf16, #tpu.memory_space<vmem>>, vector<1x16x8xbf16>
    %149 = vector.shape_cast %148 : vector<1x16x8xbf16> to vector<16x8xbf16>
    %150 = arith.truncf %147 : vector<8x32xf32> to vector<8x32xbf16>
    %cst_126 = arith.constant dense<0.000000e+00> : vector<16x32xf32>
    %151 = tpu.matmul %149, %150, %cst_126 {dimension_numbers = #tpu.dot_dimension_numbers<[1], [0], [0], [1], [0, 0, 1, 1], [], []>} : vector<16x8xbf16>, vector<8x32xbf16>, vector<16x32xf32> -> vector<16x32xf32>
    %152 = arith.addf %144, %151 : vector<16x32xf32>
    %c17 = arith.constant 17 : index
    %c0_127 = arith.constant 0 : index
    %c0_128 = arith.constant 0 : index
    %153 = vector.load %arg3[%c17, %c0_127, %c0_128] : memref<25x128x32xbf16, #tpu.memory_space<vmem>>, vector<1x128x32xbf16>
    %154 = vector.shape_cast %153 : vector<1x128x32xbf16> to vector<128x32xbf16>
    %cst_129 = arith.constant dense<0.000000e+00> : vector<8x32xf32>
    %155 = tpu.matmul %15, %154, %cst_129 {dimension_numbers = #tpu.dot_dimension_numbers<[1], [0], [0], [1], [0, 0, 1, 1], [], []>} : vector<8x128xbf16>, vector<128x32xbf16>, vector<8x32xf32> -> vector<8x32xf32>
    %c17_130 = arith.constant 17 : index
    %c0_131 = arith.constant 0 : index
    %c0_132 = arith.constant 0 : index
    %156 = vector.load %arg4[%c17_130, %c0_131, %c0_132] : memref<25x16x8xbf16, #tpu.memory_space<vmem>>, vector<1x16x8xbf16>
    %157 = vector.shape_cast %156 : vector<1x16x8xbf16> to vector<16x8xbf16>
    %158 = arith.truncf %155 : vector<8x32xf32> to vector<8x32xbf16>
    %cst_133 = arith.constant dense<0.000000e+00> : vector<16x32xf32>
    %159 = tpu.matmul %157, %158, %cst_133 {dimension_numbers = #tpu.dot_dimension_numbers<[1], [0], [0], [1], [0, 0, 1, 1], [], []>} : vector<16x8xbf16>, vector<8x32xbf16>, vector<16x32xf32> -> vector<16x32xf32>
    %160 = arith.addf %152, %159 : vector<16x32xf32>
    %c18 = arith.constant 18 : index
    %c0_134 = arith.constant 0 : index
    %c0_135 = arith.constant 0 : index
    %161 = vector.load %arg3[%c18, %c0_134, %c0_135] : memref<25x128x32xbf16, #tpu.memory_space<vmem>>, vector<1x128x32xbf16>
    %162 = vector.shape_cast %161 : vector<1x128x32xbf16> to vector<128x32xbf16>
    %cst_136 = arith.constant dense<0.000000e+00> : vector<8x32xf32>
    %163 = tpu.matmul %15, %162, %cst_136 {dimension_numbers = #tpu.dot_dimension_numbers<[1], [0], [0], [1], [0, 0, 1, 1], [], []>} : vector<8x128xbf16>, vector<128x32xbf16>, vector<8x32xf32> -> vector<8x32xf32>
    %c18_137 = arith.constant 18 : index
    %c0_138 = arith.constant 0 : index
    %c0_139 = arith.constant 0 : index
    %164 = vector.load %arg4[%c18_137, %c0_138, %c0_139] : memref<25x16x8xbf16, #tpu.memory_space<vmem>>, vector<1x16x8xbf16>
    %165 = vector.shape_cast %164 : vector<1x16x8xbf16> to vector<16x8xbf16>
    %166 = arith.truncf %163 : vector<8x32xf32> to vector<8x32xbf16>
    %cst_140 = arith.constant dense<0.000000e+00> : vector<16x32xf32>
    %167 = tpu.matmul %165, %166, %cst_140 {dimension_numbers = #tpu.dot_dimension_numbers<[1], [0], [0], [1], [0, 0, 1, 1], [], []>} : vector<16x8xbf16>, vector<8x32xbf16>, vector<16x32xf32> -> vector<16x32xf32>
    %168 = arith.addf %160, %167 : vector<16x32xf32>
    %c19 = arith.constant 19 : index
    %c0_141 = arith.constant 0 : index
    %c0_142 = arith.constant 0 : index
    %169 = vector.load %arg3[%c19, %c0_141, %c0_142] : memref<25x128x32xbf16, #tpu.memory_space<vmem>>, vector<1x128x32xbf16>
    %170 = vector.shape_cast %169 : vector<1x128x32xbf16> to vector<128x32xbf16>
    %cst_143 = arith.constant dense<0.000000e+00> : vector<8x32xf32>
    %171 = tpu.matmul %15, %170, %cst_143 {dimension_numbers = #tpu.dot_dimension_numbers<[1], [0], [0], [1], [0, 0, 1, 1], [], []>} : vector<8x128xbf16>, vector<128x32xbf16>, vector<8x32xf32> -> vector<8x32xf32>
    %c19_144 = arith.constant 19 : index
    %c0_145 = arith.constant 0 : index
    %c0_146 = arith.constant 0 : index
    %172 = vector.load %arg4[%c19_144, %c0_145, %c0_146] : memref<25x16x8xbf16, #tpu.memory_space<vmem>>, vector<1x16x8xbf16>
    %173 = vector.shape_cast %172 : vector<1x16x8xbf16> to vector<16x8xbf16>
    %174 = arith.truncf %171 : vector<8x32xf32> to vector<8x32xbf16>
    %cst_147 = arith.constant dense<0.000000e+00> : vector<16x32xf32>
    %175 = tpu.matmul %173, %174, %cst_147 {dimension_numbers = #tpu.dot_dimension_numbers<[1], [0], [0], [1], [0, 0, 1, 1], [], []>} : vector<16x8xbf16>, vector<8x32xbf16>, vector<16x32xf32> -> vector<16x32xf32>
    %176 = arith.addf %168, %175 : vector<16x32xf32>
    %c20 = arith.constant 20 : index
    %c0_148 = arith.constant 0 : index
    %c0_149 = arith.constant 0 : index
    %177 = vector.load %arg3[%c20, %c0_148, %c0_149] : memref<25x128x32xbf16, #tpu.memory_space<vmem>>, vector<1x128x32xbf16>
    %178 = vector.shape_cast %177 : vector<1x128x32xbf16> to vector<128x32xbf16>
    %cst_150 = arith.constant dense<0.000000e+00> : vector<8x32xf32>
    %179 = tpu.matmul %15, %178, %cst_150 {dimension_numbers = #tpu.dot_dimension_numbers<[1], [0], [0], [1], [0, 0, 1, 1], [], []>} : vector<8x128xbf16>, vector<128x32xbf16>, vector<8x32xf32> -> vector<8x32xf32>
    %c20_151 = arith.constant 20 : index
    %c0_152 = arith.constant 0 : index
    %c0_153 = arith.constant 0 : index
    %180 = vector.load %arg4[%c20_151, %c0_152, %c0_153] : memref<25x16x8xbf16, #tpu.memory_space<vmem>>, vector<1x16x8xbf16>
    %181 = vector.shape_cast %180 : vector<1x16x8xbf16> to vector<16x8xbf16>
    %182 = arith.truncf %179 : vector<8x32xf32> to vector<8x32xbf16>
    %cst_154 = arith.constant dense<0.000000e+00> : vector<16x32xf32>
    %183 = tpu.matmul %181, %182, %cst_154 {dimension_numbers = #tpu.dot_dimension_numbers<[1], [0], [0], [1], [0, 0, 1, 1], [], []>} : vector<16x8xbf16>, vector<8x32xbf16>, vector<16x32xf32> -> vector<16x32xf32>
    %184 = arith.addf %176, %183 : vector<16x32xf32>
    %c21 = arith.constant 21 : index
    %c0_155 = arith.constant 0 : index
    %c0_156 = arith.constant 0 : index
    %185 = vector.load %arg3[%c21, %c0_155, %c0_156] : memref<25x128x32xbf16, #tpu.memory_space<vmem>>, vector<1x128x32xbf16>
    %186 = vector.shape_cast %185 : vector<1x128x32xbf16> to vector<128x32xbf16>
    %cst_157 = arith.constant dense<0.000000e+00> : vector<8x32xf32>
    %187 = tpu.matmul %15, %186, %cst_157 {dimension_numbers = #tpu.dot_dimension_numbers<[1], [0], [0], [1], [0, 0, 1, 1], [], []>} : vector<8x128xbf16>, vector<128x32xbf16>, vector<8x32xf32> -> vector<8x32xf32>
    %c21_158 = arith.constant 21 : index
    %c0_159 = arith.constant 0 : index
    %c0_160 = arith.constant 0 : index
    %188 = vector.load %arg4[%c21_158, %c0_159, %c0_160] : memref<25x16x8xbf16, #tpu.memory_space<vmem>>, vector<1x16x8xbf16>
    %189 = vector.shape_cast %188 : vector<1x16x8xbf16> to vector<16x8xbf16>
    %190 = arith.truncf %187 : vector<8x32xf32> to vector<8x32xbf16>
    %cst_161 = arith.constant dense<0.000000e+00> : vector<16x32xf32>
    %191 = tpu.matmul %189, %190, %cst_161 {dimension_numbers = #tpu.dot_dimension_numbers<[1], [0], [0], [1], [0, 0, 1, 1], [], []>} : vector<16x8xbf16>, vector<8x32xbf16>, vector<16x32xf32> -> vector<16x32xf32>
    %192 = arith.addf %184, %191 : vector<16x32xf32>
    %c22 = arith.constant 22 : index
    %c0_162 = arith.constant 0 : index
    %c0_163 = arith.constant 0 : index
    %193 = vector.load %arg3[%c22, %c0_162, %c0_163] : memref<25x128x32xbf16, #tpu.memory_space<vmem>>, vector<1x128x32xbf16>
    %194 = vector.shape_cast %193 : vector<1x128x32xbf16> to vector<128x32xbf16>
    %cst_164 = arith.constant dense<0.000000e+00> : vector<8x32xf32>
    %195 = tpu.matmul %15, %194, %cst_164 {dimension_numbers = #tpu.dot_dimension_numbers<[1], [0], [0], [1], [0, 0, 1, 1], [], []>} : vector<8x128xbf16>, vector<128x32xbf16>, vector<8x32xf32> -> vector<8x32xf32>
    %c22_165 = arith.constant 22 : index
    %c0_166 = arith.constant 0 : index
    %c0_167 = arith.constant 0 : index
    %196 = vector.load %arg4[%c22_165, %c0_166, %c0_167] : memref<25x16x8xbf16, #tpu.memory_space<vmem>>, vector<1x16x8xbf16>
    %197 = vector.shape_cast %196 : vector<1x16x8xbf16> to vector<16x8xbf16>
    %198 = arith.truncf %195 : vector<8x32xf32> to vector<8x32xbf16>
    %cst_168 = arith.constant dense<0.000000e+00> : vector<16x32xf32>
    %199 = tpu.matmul %197, %198, %cst_168 {dimension_numbers = #tpu.dot_dimension_numbers<[1], [0], [0], [1], [0, 0, 1, 1], [], []>} : vector<16x8xbf16>, vector<8x32xbf16>, vector<16x32xf32> -> vector<16x32xf32>
    %200 = arith.addf %192, %199 : vector<16x32xf32>
    %c23 = arith.constant 23 : index
    %c0_169 = arith.constant 0 : index
    %c0_170 = arith.constant 0 : index
    %201 = vector.load %arg3[%c23, %c0_169, %c0_170] : memref<25x128x32xbf16, #tpu.memory_space<vmem>>, vector<1x128x32xbf16>
    %202 = vector.shape_cast %201 : vector<1x128x32xbf16> to vector<128x32xbf16>
    %cst_171 = arith.constant dense<0.000000e+00> : vector<8x32xf32>
    %203 = tpu.matmul %15, %202, %cst_171 {dimension_numbers = #tpu.dot_dimension_numbers<[1], [0], [0], [1], [0, 0, 1, 1], [], []>} : vector<8x128xbf16>, vector<128x32xbf16>, vector<8x32xf32> -> vector<8x32xf32>
    %c23_172 = arith.constant 23 : index
    %c0_173 = arith.constant 0 : index
    %c0_174 = arith.constant 0 : index
    %204 = vector.load %arg4[%c23_172, %c0_173, %c0_174] : memref<25x16x8xbf16, #tpu.memory_space<vmem>>, vector<1x16x8xbf16>
    %205 = vector.shape_cast %204 : vector<1x16x8xbf16> to vector<16x8xbf16>
    %206 = arith.truncf %203 : vector<8x32xf32> to vector<8x32xbf16>
    %cst_175 = arith.constant dense<0.000000e+00> : vector<16x32xf32>
    %207 = tpu.matmul %205, %206, %cst_175 {dimension_numbers = #tpu.dot_dimension_numbers<[1], [0], [0], [1], [0, 0, 1, 1], [], []>} : vector<16x8xbf16>, vector<8x32xbf16>, vector<16x32xf32> -> vector<16x32xf32>
    %208 = arith.addf %200, %207 : vector<16x32xf32>
    %c24 = arith.constant 24 : index
    %c0_176 = arith.constant 0 : index
    %c0_177 = arith.constant 0 : index
    %209 = vector.load %arg3[%c24, %c0_176, %c0_177] : memref<25x128x32xbf16, #tpu.memory_space<vmem>>, vector<1x128x32xbf16>
    %210 = vector.shape_cast %209 : vector<1x128x32xbf16> to vector<128x32xbf16>
    %cst_178 = arith.constant dense<0.000000e+00> : vector<8x32xf32>
    %211 = tpu.matmul %15, %210, %cst_178 {dimension_numbers = #tpu.dot_dimension_numbers<[1], [0], [0], [1], [0, 0, 1, 1], [], []>} : vector<8x128xbf16>, vector<128x32xbf16>, vector<8x32xf32> -> vector<8x32xf32>
    %c24_179 = arith.constant 24 : index
    %c0_180 = arith.constant 0 : index
    %c0_181 = arith.constant 0 : index
    %212 = vector.load %arg4[%c24_179, %c0_180, %c0_181] : memref<25x16x8xbf16, #tpu.memory_space<vmem>>, vector<1x16x8xbf16>
    %213 = vector.shape_cast %212 : vector<1x16x8xbf16> to vector<16x8xbf16>
    %214 = arith.truncf %211 : vector<8x32xf32> to vector<8x32xbf16>
    %cst_182 = arith.constant dense<0.000000e+00> : vector<16x32xf32>
    %215 = tpu.matmul %213, %214, %cst_182 {dimension_numbers = #tpu.dot_dimension_numbers<[1], [0], [0], [1], [0, 0, 1, 1], [], []>} : vector<16x8xbf16>, vector<8x32xbf16>, vector<16x32xf32> -> vector<16x32xf32>
    %216 = arith.addf %208, %215 : vector<16x32xf32>
    %c0_183 = arith.constant 0 : index
    %c0_184 = arith.constant 0 : index
    %217 = vector.load %arg5[%c0_183, %c0_184] : memref<16x1xf32, #tpu.memory_space<vmem>>, vector<16x1xf32>
    %218 = vector.broadcast %217 : vector<16x1xf32> to vector<16x32xf32>
    %219 = arith.addf %216, %218 : vector<16x32xf32>
    %cst_185 = arith.constant 0.000000e+00 : f32
    %220 = vector.broadcast %cst_185 : f32 to vector<16x32xf32>
    %221 = arith.maximumf %219, %220 : vector<16x32xf32>
    %222 = vector.extract_strided_slice %221 {offsets = [0, 0], sizes = [16, 8], strides = [1, 1]} : vector<16x32xf32> to vector<16x8xf32>
    %223 = vector.extract_strided_slice %221 {offsets = [0, 8], sizes = [16, 8], strides = [1, 1]} : vector<16x32xf32> to vector<16x8xf32>
    %224 = arith.maximumf %222, %223 : vector<16x8xf32>
    %225 = vector.extract_strided_slice %221 {offsets = [0, 16], sizes = [16, 8], strides = [1, 1]} : vector<16x32xf32> to vector<16x8xf32>
    %226 = vector.extract_strided_slice %221 {offsets = [0, 24], sizes = [16, 8], strides = [1, 1]} : vector<16x32xf32> to vector<16x8xf32>
    %227 = arith.maximumf %225, %226 : vector<16x8xf32>
    %228 = arith.maximumf %224, %227 : vector<16x8xf32>
    %229 = arith.truncf %228 : vector<16x8xf32> to vector<16x8xbf16>
    %cst_186 = arith.constant 0.000000e+00 : f32
    %230 = vector.broadcast %cst_186 : f32 to vector<19x2xf32>
    %c0_187 = arith.constant 0 : index
    %c0_188 = arith.constant 0 : index
    %c0_189 = arith.constant 0 : index
    %231 = vector.load %arg6[%c0_187, %c0_188, %c0_189] : memref<4x8x2xbf16, #tpu.memory_space<vmem>>, vector<1x8x2xbf16>
    %232 = vector.shape_cast %231 : vector<1x8x2xbf16> to vector<8x2xbf16>
    %cst_190 = arith.constant dense<0.000000e+00> : vector<16x2xf32>
    %233 = tpu.matmul %229, %232, %cst_190 {dimension_numbers = #tpu.dot_dimension_numbers<[1], [0], [0], [1], [0, 0, 1, 1], [], []>} : vector<16x8xbf16>, vector<8x2xbf16>, vector<16x2xf32> -> vector<16x2xf32>
    %c0_191 = arith.constant 0 : index
    %c0_192 = arith.constant 0 : index
    %c0_193 = arith.constant 0 : index
    %234 = vector.load %arg7[%c0_191, %c0_192, %c0_193] : memref<4x19x16xbf16, #tpu.memory_space<vmem>>, vector<1x19x16xbf16>
    %235 = vector.shape_cast %234 : vector<1x19x16xbf16> to vector<19x16xbf16>
    %236 = arith.truncf %233 : vector<16x2xf32> to vector<16x2xbf16>
    %cst_194 = arith.constant dense<0.000000e+00> : vector<19x2xf32>
    %237 = tpu.matmul %235, %236, %cst_194 {dimension_numbers = #tpu.dot_dimension_numbers<[1], [0], [0], [1], [0, 0, 1, 1], [], []>} : vector<19x16xbf16>, vector<16x2xbf16>, vector<19x2xf32> -> vector<19x2xf32>
    %238 = arith.addf %230, %237 : vector<19x2xf32>
    %c1_195 = arith.constant 1 : index
    %c0_196 = arith.constant 0 : index
    %c0_197 = arith.constant 0 : index
    %239 = vector.load %arg6[%c1_195, %c0_196, %c0_197] : memref<4x8x2xbf16, #tpu.memory_space<vmem>>, vector<1x8x2xbf16>
    %240 = vector.shape_cast %239 : vector<1x8x2xbf16> to vector<8x2xbf16>
    %cst_198 = arith.constant dense<0.000000e+00> : vector<16x2xf32>
    %241 = tpu.matmul %229, %240, %cst_198 {dimension_numbers = #tpu.dot_dimension_numbers<[1], [0], [0], [1], [0, 0, 1, 1], [], []>} : vector<16x8xbf16>, vector<8x2xbf16>, vector<16x2xf32> -> vector<16x2xf32>
    %c1_199 = arith.constant 1 : index
    %c0_200 = arith.constant 0 : index
    %c0_201 = arith.constant 0 : index
    %242 = vector.load %arg7[%c1_199, %c0_200, %c0_201] : memref<4x19x16xbf16, #tpu.memory_space<vmem>>, vector<1x19x16xbf16>
    %243 = vector.shape_cast %242 : vector<1x19x16xbf16> to vector<19x16xbf16>
    %244 = arith.truncf %241 : vector<16x2xf32> to vector<16x2xbf16>
    %cst_202 = arith.constant dense<0.000000e+00> : vector<19x2xf32>
    %245 = tpu.matmul %243, %244, %cst_202 {dimension_numbers = #tpu.dot_dimension_numbers<[1], [0], [0], [1], [0, 0, 1, 1], [], []>} : vector<19x16xbf16>, vector<16x2xbf16>, vector<19x2xf32> -> vector<19x2xf32>
    %246 = arith.addf %238, %245 : vector<19x2xf32>
    %c2_203 = arith.constant 2 : index
    %c0_204 = arith.constant 0 : index
    %c0_205 = arith.constant 0 : index
    %247 = vector.load %arg6[%c2_203, %c0_204, %c0_205] : memref<4x8x2xbf16, #tpu.memory_space<vmem>>, vector<1x8x2xbf16>
    %248 = vector.shape_cast %247 : vector<1x8x2xbf16> to vector<8x2xbf16>
    %cst_206 = arith.constant dense<0.000000e+00> : vector<16x2xf32>
    %249 = tpu.matmul %229, %248, %cst_206 {dimension_numbers = #tpu.dot_dimension_numbers<[1], [0], [0], [1], [0, 0, 1, 1], [], []>} : vector<16x8xbf16>, vector<8x2xbf16>, vector<16x2xf32> -> vector<16x2xf32>
    %c2_207 = arith.constant 2 : index
    %c0_208 = arith.constant 0 : index
    %c0_209 = arith.constant 0 : index
    %250 = vector.load %arg7[%c2_207, %c0_208, %c0_209] : memref<4x19x16xbf16, #tpu.memory_space<vmem>>, vector<1x19x16xbf16>
    %251 = vector.shape_cast %250 : vector<1x19x16xbf16> to vector<19x16xbf16>
    %252 = arith.truncf %249 : vector<16x2xf32> to vector<16x2xbf16>
    %cst_210 = arith.constant dense<0.000000e+00> : vector<19x2xf32>
    %253 = tpu.matmul %251, %252, %cst_210 {dimension_numbers = #tpu.dot_dimension_numbers<[1], [0], [0], [1], [0, 0, 1, 1], [], []>} : vector<19x16xbf16>, vector<16x2xbf16>, vector<19x2xf32> -> vector<19x2xf32>
    %254 = arith.addf %246, %253 : vector<19x2xf32>
    %c3_211 = arith.constant 3 : index
    %c0_212 = arith.constant 0 : index
    %c0_213 = arith.constant 0 : index
    %255 = vector.load %arg6[%c3_211, %c0_212, %c0_213] : memref<4x8x2xbf16, #tpu.memory_space<vmem>>, vector<1x8x2xbf16>
    %256 = vector.shape_cast %255 : vector<1x8x2xbf16> to vector<8x2xbf16>
    %cst_214 = arith.constant dense<0.000000e+00> : vector<16x2xf32>
    %257 = tpu.matmul %229, %256, %cst_214 {dimension_numbers = #tpu.dot_dimension_numbers<[1], [0], [0], [1], [0, 0, 1, 1], [], []>} : vector<16x8xbf16>, vector<8x2xbf16>, vector<16x2xf32> -> vector<16x2xf32>
    %c3_215 = arith.constant 3 : index
    %c0_216 = arith.constant 0 : index
    %c0_217 = arith.constant 0 : index
    %258 = vector.load %arg7[%c3_215, %c0_216, %c0_217] : memref<4x19x16xbf16, #tpu.memory_space<vmem>>, vector<1x19x16xbf16>
    %259 = vector.shape_cast %258 : vector<1x19x16xbf16> to vector<19x16xbf16>
    %260 = arith.truncf %257 : vector<16x2xf32> to vector<16x2xbf16>
    %cst_218 = arith.constant dense<0.000000e+00> : vector<19x2xf32>
    %261 = tpu.matmul %259, %260, %cst_218 {dimension_numbers = #tpu.dot_dimension_numbers<[1], [0], [0], [1], [0, 0, 1, 1], [], []>} : vector<19x16xbf16>, vector<16x2xbf16>, vector<19x2xf32> -> vector<19x2xf32>
    %262 = arith.addf %254, %261 : vector<19x2xf32>
    %c0_219 = arith.constant 0 : index
    %c0_220 = arith.constant 0 : index
    %263 = vector.load %arg8[%c0_219, %c0_220] : memref<19x1xf32, #tpu.memory_space<vmem>>, vector<19x1xf32>
    %264 = vector.broadcast %263 : vector<19x1xf32> to vector<19x2xf32>
    %265 = arith.addf %262, %264 : vector<19x2xf32>
    %cst_221 = arith.constant 0.000000e+00 : f32
    %266 = vector.broadcast %cst_221 : f32 to vector<19x2xf32>
    %267 = arith.maximumf %265, %266 : vector<19x2xf32>
    %c0_222 = arith.constant 0 : index
    %c0_223 = arith.constant 0 : index
    %268 = vector.load %arg9[%c0_222, %c0_223] : memref<8x19xbf16, #tpu.memory_space<vmem>>, vector<8x19xbf16>
    %269 = arith.truncf %267 : vector<19x2xf32> to vector<19x2xbf16>
    %cst_224 = arith.constant dense<0.000000e+00> : vector<8x2xf32>
    %270 = tpu.matmul %268, %269, %cst_224 {dimension_numbers = #tpu.dot_dimension_numbers<[1], [0], [0], [1], [0, 0, 1, 1], [], []>} : vector<8x19xbf16>, vector<19x2xbf16>, vector<8x2xf32> -> vector<8x2xf32>
    %c0_225 = arith.constant 0 : index
    %c0_226 = arith.constant 0 : index
    %271 = vector.load %arg10[%c0_225, %c0_226] : memref<8x1xf32, #tpu.memory_space<vmem>>, vector<8x1xf32>
    %272 = vector.broadcast %271 : vector<8x1xf32> to vector<8x2xf32>
    %273 = arith.addf %270, %272 : vector<8x2xf32>
    %cst_227 = arith.constant 0.000000e+00 : f32
    %274 = vector.broadcast %cst_227 : f32 to vector<8x2xf32>
    %275 = arith.maximumf %273, %274 : vector<8x2xf32>
    %c0_228 = arith.constant 0 : index
    %c0_229 = arith.constant 0 : index
    %276 = vector.load %arg11[%c0_228, %c0_229] : memref<8x8xbf16, #tpu.memory_space<vmem>>, vector<8x8xbf16>
    %277 = arith.truncf %275 : vector<8x2xf32> to vector<8x2xbf16>
    %cst_230 = arith.constant dense<0.000000e+00> : vector<8x2xf32>
    %278 = tpu.matmul %276, %277, %cst_230 {dimension_numbers = #tpu.dot_dimension_numbers<[1], [0], [0], [1], [0, 0, 1, 1], [], []>} : vector<8x8xbf16>, vector<8x2xbf16>, vector<8x2xf32> -> vector<8x2xf32>
    %279 = math.cos %278 : vector<8x2xf32>
    %cst_231 = arith.constant 0.000000e+00 : f32
    %280 = vector.broadcast %cst_231 : f32 to vector<8x2xf32>
    %281 = arith.maximumf %279, %280 : vector<8x2xf32>
    %c0_232 = arith.constant 0 : index
    %c0_233 = arith.constant 0 : index
    %282 = vector.load %arg12[%c0_232, %c0_233] : memref<8x8xbf16, #tpu.memory_space<vmem>>, vector<8x8xbf16>
    %283 = arith.truncf %281 : vector<8x2xf32> to vector<8x2xbf16>
    %cst_234 = arith.constant dense<0.000000e+00> : vector<8x2xf32>
    %284 = tpu.matmul %282, %283, %cst_234 {dimension_numbers = #tpu.dot_dimension_numbers<[1], [0], [0], [1], [0, 0, 1, 1], [], []>} : vector<8x8xbf16>, vector<8x2xbf16>, vector<8x2xf32> -> vector<8x2xf32>
    %285 = math.cos %284 : vector<8x2xf32>
    %cst_235 = arith.constant 0.000000e+00 : f32
    %286 = vector.broadcast %cst_235 : f32 to vector<8x2xf32>
    %287 = arith.maximumf %285, %286 : vector<8x2xf32>
    %c0_236 = arith.constant 0 : index
    %c0_237 = arith.constant 0 : index
    %288 = vector.load %arg13[%c0_236, %c0_237] : memref<6x8xbf16, #tpu.memory_space<vmem>>, vector<6x8xbf16>
    %289 = arith.truncf %287 : vector<8x2xf32> to vector<8x2xbf16>
    %cst_238 = arith.constant dense<0.000000e+00> : vector<6x2xf32>
    %290 = tpu.matmul %288, %289, %cst_238 {dimension_numbers = #tpu.dot_dimension_numbers<[1], [0], [0], [1], [0, 0, 1, 1], [], []>} : vector<6x8xbf16>, vector<8x2xbf16>, vector<6x2xf32> -> vector<6x2xf32>
    %c0_239 = arith.constant 0 : index
    %c0_240 = arith.constant 0 : index
    %291 = vector.load %arg14[%c0_239, %c0_240] : memref<6x1xf32, #tpu.memory_space<vmem>>, vector<6x1xf32>
    %292 = vector.broadcast %291 : vector<6x1xf32> to vector<6x2xf32>
    %293 = arith.addf %290, %292 : vector<6x2xf32>
    %c0_241 = arith.constant 0 : index
    %c0_242 = arith.constant 0 : index
    %294 = vector.load %arg15[%c0_241, %c0_242] : memref<6x2xf32, #tpu.memory_space<vmem>>, vector<6x2xf32>
    tpu.vector_store %arg15[%c0_241, %c0_242], %293 {strides = array<i32>} : memref<6x2xf32, #tpu.memory_space<vmem>>, vector<6x2xf32>,
    return
  }
}

</mosaic_0001>

<llo_original>
// kernel: hybrid_lenet5_quanv_forward.1
$region0: #{hybrid_lenet5_quanv_forward.1}
  #allocation0 [shape = 'u32[]', space=smem, size = 0x4, offset = 0x4, fixed_abs, tag = 'smem constant byte address 0x4 - core index']
  #allocation1 [shape = 'u32[72,128]{1,0:T(1,128)}', space=vmem, size = 0x9000, scoped, tag = 'internal scratch']
  %s0 = inlined_call_operand.vmem [shape: bf16[32,512], index: 0, kind: input, shape index: {}]
  %s1 = inlined_call_operand.vmem [shape: bf16[8,32], index: 1, kind: input, shape index: {}]
  %s2 = inlined_call_operand.vmem [shape: f32[8,1], index: 2, kind: input, shape index: {}]
  %s3 = inlined_call_operand.vmem [shape: bf16[25,128,32], index: 3, kind: input, shape index: {}]
  %s4 = inlined_call_operand.vmem [shape: bf16[25,16,8], index: 4, kind: input, shape index: {}]
  %s5 = inlined_call_operand.vmem [shape: f32[16,1], index: 5, kind: input, shape index: {}]
  %s6 = inlined_call_operand.vmem [shape: bf16[4,8,2], index: 6, kind: input, shape index: {}]
  %s7 = inlined_call_operand.vmem [shape: bf16[4,19,16], index: 7, kind: input, shape index: {}]
  %s8 = inlined_call_operand.vmem [shape: f32[19,1], index: 8, kind: input, shape index: {}]
  %s9 = inlined_call_operand.vmem [shape: bf16[8,19], index: 9, kind: input, shape index: {}]
  %s10 = inlined_call_operand.vmem [shape: f32[8,1], index: 10, kind: input, shape index: {}]
  %s11 = inlined_call_operand.vmem [shape: bf16[8,8], index: 11, kind: input, shape index: {}]
  %s12 = inlined_call_operand.vmem [shape: bf16[8,8], index: 12, kind: input, shape index: {}]
  %s13 = inlined_call_operand.vmem [shape: bf16[6,8], index: 13, kind: input, shape index: {}]
  %s14 = inlined_call_operand.vmem [shape: f32[6,1], index: 14, kind: input, shape index: {}]
  %s15 = inlined_call_operand.vmem [shape: f32[6,2], index: 15, kind: output, shape index: {}]
  %s16 = sld [smem:[#allocation0]]
  $region70: #{hybrid_lenet5_quanv_forward.1} parent=0
    _
  %s18 = ssub.s32 1, %s16
  %s19 = scalar_select 0, %s18, %s16
  // Predicated region
  $region2: #{hybrid_lenet5_quanv_forward.1} parent=0 // pred_check
    _
  $region3: #{hybrid_lenet5_quanv_forward.1} parent=0 // pred_check_branch
    %21 = sbr.rel (0) target = $region5
  $region4: #{hybrid_lenet5_quanv_forward.1} parent=0 // pred_region
    _
  $region5: #{hybrid_lenet5_quanv_forward.1} parent=0 // pred_fallthru
    _
  // Predicated region
  $region6: #{hybrid_lenet5_quanv_forward.1} parent=0 // pred_check
    _
  $region7: #{hybrid_lenet5_quanv_forward.1} parent=0 // pred_check_branch
    %23 = sbr.rel (0) target = $region9
  $region8: #{hybrid_lenet5_quanv_forward.1} parent=0 // pred_region
    _
  $region9: #{hybrid_lenet5_quanv_forward.1} parent=0 // pred_fallthru
    _
  // Predicated region
  $region10: #{hybrid_lenet5_quanv_forward.1} parent=0 // pred_check
    _
  $region11: #{hybrid_lenet5_quanv_forward.1} parent=0 // pred_check_branch
    %25 = sbr.rel (0) target = $region13
  $region12: #{hybrid_lenet5_quanv_forward.1} parent=0 // pred_region
    _
  $region13: #{hybrid_lenet5_quanv_forward.1} parent=0 // pred_fallthru
    _
  // Predicated region
  $region14: #{hybrid_lenet5_quanv_forward.1} parent=0 // pred_check
    _
  $region15: #{hybrid_lenet5_quanv_forward.1} parent=0 // pred_check_branch
    %27 = sbr.rel (0) target = $region17
  $region16: #{hybrid_lenet5_quanv_forward.1} parent=0 // pred_region
    _
  $region17: #{hybrid_lenet5_quanv_forward.1} parent=0 // pred_fallthru
    _
  // Predicated region
  $region18: #{hybrid_lenet5_quanv_forward.1} parent=0 // pred_check
    _
  $region19: #{hybrid_lenet5_quanv_forward.1} parent=0 // pred_check_branch
    %29 = sbr.rel (0) target = $region21
  $region20: #{hybrid_lenet5_quanv_forward.1} parent=0 // pred_region
    _
  $region21: #{hybrid_lenet5_quanv_forward.1} parent=0 // pred_fallthru
    _
  // Predicated region
  $region22: #{hybrid_lenet5_quanv_forward.1} parent=0 // pred_check
    _
  $region23: #{hybrid_lenet5_quanv_forward.1} parent=0 // pred_check_branch
    %31 = sbr.rel (0) target = $region25
  $region24: #{hybrid_lenet5_quanv_forward.1} parent=0 // pred_region
    _
  $region25: #{hybrid_lenet5_quanv_forward.1} parent=0 // pred_fallthru
    _
  // Predicated region
  $region26: #{hybrid_lenet5_quanv_forward.1} parent=0 // pred_check
    _
  $region27: #{hybrid_lenet5_quanv_forward.1} parent=0 // pred_check_branch
    %33 = sbr.rel (0) target = $region29
  $region28: #{hybrid_lenet5_quanv_forward.1} parent=0 // pred_region
    _
  $region29: #{hybrid_lenet5_quanv_forward.1} parent=0 // pred_fallthru
    _
  // Predicated region
  $region30: #{hybrid_lenet5_quanv_forward.1} parent=0 // pred_check
    _
  $region31: #{hybrid_lenet5_quanv_forward.1} parent=0 // pred_check_branch
    %35 = sbr.rel (0) target = $region33
  $region32: #{hybrid_lenet5_quanv_forward.1} parent=0 // pred_region
    _
  $region33: #{hybrid_lenet5_quanv_forward.1} parent=0 // pred_fallthru
    _
  // Predicated region
  $region34: #{hybrid_lenet5_quanv_forward.1} parent=0 // pred_check
    _
  $region35: #{hybrid_lenet5_quanv_forward.1} parent=0 // pred_check_branch
    %37 = sbr.rel (0) target = $region37
  $region36: #{hybrid_lenet5_quanv_forward.1} parent=0 // pred_region
    _
  $region37: #{hybrid_lenet5_quanv_forward.1} parent=0 // pred_fallthru
    _
  // Predicated region
  $region38: #{hybrid_lenet5_quanv_forward.1} parent=0 // pred_check
    _
  $region39: #{hybrid_lenet5_quanv_forward.1} parent=0 // pred_check_branch
    %39 = sbr.rel (0) target = $region41
  $region40: #{hybrid_lenet5_quanv_forward.1} parent=0 // pred_region
    _
  $region41: #{hybrid_lenet5_quanv_forward.1} parent=0 // pred_fallthru
    _
  // Predicated region
  $region42: #{hybrid_lenet5_quanv_forward.1} parent=0 // pred_check
    _
  $region43: #{hybrid_lenet5_quanv_forward.1} parent=0 // pred_check_branch
    %41 = sbr.rel (0) target = $region45
  $region44: #{hybrid_lenet5_quanv_forward.1} parent=0 // pred_region
    _
  $region45: #{hybrid_lenet5_quanv_forward.1} parent=0 // pred_fallthru
    _
  // Predicated region
  $region46: #{hybrid_lenet5_quanv_forward.1} parent=0 // pred_check
    _
  $region47: #{hybrid_lenet5_quanv_forward.1} parent=0 // pred_check_branch
    %43 = sbr.rel (0) target = $region49
  $region48: #{hybrid_lenet5_quanv_forward.1} parent=0 // pred_region
    _
  $region49: #{hybrid_lenet5_quanv_forward.1} parent=0 // pred_fallthru
    _
  // Predicated region
  $region50: #{hybrid_lenet5_quanv_forward.1} parent=0 // pred_check
    _
  $region51: #{hybrid_lenet5_quanv_forward.1} parent=0 // pred_check_branch
    %45 = sbr.rel (0) target = $region53
  $region52: #{hybrid_lenet5_quanv_forward.1} parent=0 // pred_region
    _
  $region53: #{hybrid_lenet5_quanv_forward.1} parent=0 // pred_fallthru
    _
  // Predicated region
  $region54: #{hybrid_lenet5_quanv_forward.1} parent=0 // pred_check
    _
  $region55: #{hybrid_lenet5_quanv_forward.1} parent=0 // pred_check_branch
    %47 = sbr.rel (0) target = $region57
  $region56: #{hybrid_lenet5_quanv_forward.1} parent=0 // pred_region
    _
  $region57: #{hybrid_lenet5_quanv_forward.1} parent=0 // pred_fallthru
    _
  // Predicated region
  $region58: #{hybrid_lenet5_quanv_forward.1} parent=0 // pred_check
    _
  $region59: #{hybrid_lenet5_quanv_forward.1} parent=0 // pred_check_branch
    %49 = sbr.rel (0) target = $region61
  $region60: #{hybrid_lenet5_quanv_forward.1} parent=0 // pred_region
    _
  $region61: #{hybrid_lenet5_quanv_forward.1} parent=0 // pred_fallthru
    _
  %v51 = vld [vmem:[%s1] sm:$0xf]
  %v52 = vld [vmem:[%s0] sm:$0xff]
  %v53 = vld [vmem:[%s0 + $0x8] sm:$0xff]
  %v54 = vld [vmem:[%s0 + $0x10] sm:$0xff]
  %v55 = vld [vmem:[%s0 + $0x18] sm:$0xff]
  %v56 = vld [vmem:[%s0 + $0x20] sm:$0xff]
  %v57 = vld [vmem:[%s0 + $0x28] sm:$0xff]
  %v58 = vld [vmem:[%s0 + $0x30] sm:$0xff]
  %v59 = vld [vmem:[%s0 + $0x38] sm:$0xff]
  %v60 = vld [vmem:[%s2] sm:$0xff]
  %62 = vset.pattern.permute.xlu0 0
  %63 = vperm.xlu0 %62, %v60
  %v64 = vpop.permute.xlu0 %63
  %v74 = vunpack.c.l.b16 %v52
  %v75 = vunpack.c.h.b16 %v52
  %v76 = vunpack.c.l.b16 %v53
  %v77 = vunpack.c.h.b16 %v53
  %v78 = vunpack.c.l.b16 %v54
  %v79 = vunpack.c.h.b16 %v54
  %v80 = vunpack.c.l.b16 %v55
  %v81 = vunpack.c.h.b16 %v55
  %v82 = vunpack.c.l.b16 %v56
  %v83 = vunpack.c.h.b16 %v56
  %v84 = vunpack.c.l.b16 %v57
  %v85 = vunpack.c.h.b16 %v57
  %v86 = vunpack.c.l.b16 %v58
  %v87 = vunpack.c.h.b16 %v58
  %v88 = vunpack.c.l.b16 %v59
  %v89 = vunpack.c.h.b16 %v59
  %v90 = vpack.c.b16 %v78, %v74
  %v91 = vpack.c.b16 %v79, %v75
  %v92 = vpack.c.b16 %v80, %v76
  %v93 = vpack.c.b16 %v81, %v77
  %v94 = vpack.c.b16 %v86, %v82
  %v95 = vpack.c.b16 %v87, %v83
  %v96 = vpack.c.b16 %v88, %v84
  %v97 = vpack.c.b16 %v89, %v85
  %vm106 = vcmask 261120
  %v108 = vsel %vm106, %v51, 0
  %110 = vmatpush.bf16.msra.mxu0 0
  %111 = vmatpush.bf16.msra.mxu0 0
  %112 = vmatpush.bf16.msra.mxu0 0
  %113 = vmatpush.bf16.msra.mxu0 0
  %114 = vmatpush.bf16.msra.mxu0 0
  %115 = vmatpush.bf16.msra.mxu0 0
  %116 = vmatpush.bf16.msra.mxu0 %v94
  %117 = vmatpush.bf16.msra.mxu0 %v90
  %118 = vmatmul.bf16.gmra.mxu0 %v108
  %v119 = vpop.f32.mrf.mxu0
  %v120 = vadd.f32 %v64, %v119
  %v121 = vpop.f32.mrf.mxu0
  %122 = vdwg.mxu0
  %123 = vmatpush.bf16.msra.mxu0 0
  %124 = vmatpush.bf16.msra.mxu0 0
  %125 = vmatpush.bf16.msra.mxu0 0
  %126 = vmatpush.bf16.msra.mxu0 0
  %127 = vmatpush.bf16.msra.mxu0 0
  %128 = vmatpush.bf16.msra.mxu0 0
  %129 = vmatpush.bf16.msra.mxu0 %v95
  %130 = vmatpush.bf16.msra.mxu0 %v91
  %131 = vmatmul.bf16.gmra.mxu0 %v108
  %v132 = vpop.f32.mrf.mxu0
  %v133 = vadd.f32 %v64, %v132
  %v134 = vpop.f32.mrf.mxu0
  %135 = vdwg.mxu0
  %136 = vmatpush.bf16.msra.mxu0 0
  %137 = vmatpush.bf16.msra.mxu0 0
  %138 = vmatpush.bf16.msra.mxu0 0
  %139 = vmatpush.bf16.msra.mxu0 0
  %140 = vmatpush.bf16.msra.mxu0 0
  %141 = vmatpush.bf16.msra.mxu0 0
  %142 = vmatpush.bf16.msra.mxu0 %v96
  %143 = vmatpush.bf16.msra.mxu0 %v92
  %144 = vmatmul.bf16.gmra.mxu0 %v108
  %v145 = vpop.f32.mrf.mxu0
  %v146 = vadd.f32 %v64, %v145
  %v147 = vpop.f32.mrf.mxu0
  %148 = vdwg.mxu0
  %149 = vmatpush.bf16.msra.mxu0 0
  %150 = vmatpush.bf16.msra.mxu0 0
  %151 = vmatpush.bf16.msra.mxu0 0
  %152 = vmatpush.bf16.msra.mxu0 0
  %153 = vmatpush.bf16.msra.mxu0 0
  %154 = vmatpush.bf16.msra.mxu0 0
  %155 = vmatpush.bf16.msra.mxu0 %v97
  %156 = vmatpush.bf16.msra.mxu0 %v93
  %157 = vmatmul.bf16.gmra.mxu0 %v108
  %v158 = vpop.f32.mrf.mxu0
  %v159 = vadd.f32 %v64, %v158
  %v160 = vpop.f32.mrf.mxu0
  %161 = vdwg.mxu0
  %v162 = vmax.f32 %v120, 0.0
  %v163 = vmax.f32 %v133, 0.0
  %v164 = vmax.f32 %v146, 0.0
  %v165 = vmax.f32 %v159, 0.0
  %v166 = vmax.f32 %v162, %v163
  %v167 = vmax.f32 %v164, %v165
  %v168 = vmax.f32 %v166, %v167
  %v169 = vpack.c.bf16 %v168, %v168
  %v170 = vld [vmem:[%s3] sm:$0xf]
  %v171 = vld [vmem:[%s3 + $0x4] sm:$0xf]
  %v172 = vld [vmem:[%s3 + $0x8] sm:$0xf]
  %v173 = vld [vmem:[%s3 + $0xc] sm:$0xf]
  %v174 = vld [vmem:[%s3 + $0x10] sm:$0xf]
  %v175 = vld [vmem:[%s3 + $0x14] sm:$0xf]
  %v176 = vld [vmem:[%s3 + $0x18] sm:$0xf]
  %v177 = vld [vmem:[%s3 + $0x1c] sm:$0xf]
  %v178 = vld [vmem:[%s3 + $0x20] sm:$0xf]
  %v179 = vld [vmem:[%s3 + $0x24] sm:$0xf]
  %v180 = vld [vmem:[%s3 + $0x28] sm:$0xf]
  %v181 = vld [vmem:[%s3 + $0x2c] sm:$0xf]
  %v182 = vld [vmem:[%s3 + $0x30] sm:$0xf]
  %v183 = vld [vmem:[%s3 + $0x34] sm:$0xf]
  %v184 = vld [vmem:[%s3 + $0x38] sm:$0xf]
  %v185 = vld [vmem:[%s3 + $0x3c] sm:$0xf]
  %v202 = vunpack.c.l.b16 %v170
  %v203 = vunpack.c.l.b16 %v171
  %v204 = vunpack.c.l.b16 %v172
  %v205 = vunpack.c.l.b16 %v173
  %v206 = vunpack.c.l.b16 %v174
  %v207 = vunpack.c.l.b16 %v175
  %v208 = vunpack.c.l.b16 %v176
  %v209 = vunpack.c.l.b16 %v177
  %v210 = vunpack.c.l.b16 %v178
  %v211 = vunpack.c.l.b16 %v179
  %v212 = vunpack.c.l.b16 %v180
  %v213 = vunpack.c.l.b16 %v181
  %v214 = vunpack.c.l.b16 %v182
  %v215 = vunpack.c.l.b16 %v183
  %v216 = vunpack.c.l.b16 %v184
  %v217 = vunpack.c.l.b16 %v185
  %v218 = vpack.c.b16 %v203, %v202
  %v219 = vpack.c.b16 %v205, %v204
  %v220 = vpack.c.b16 %v207, %v206
  %v221 = vpack.c.b16 %v209, %v208
  %v222 = vpack.c.b16 %v211, %v210
  %v223 = vpack.c.b16 %v213, %v212
  %v224 = vpack.c.b16 %v215, %v214
  %v225 = vpack.c.b16 %v217, %v216
  %234 = vmatpush.bf16.msra.mxu0 %v225
  %235 = vmatpush.bf16.msra.mxu0 %v224
  %236 = vmatpush.bf16.msra.mxu0 %v223
  %237 = vmatpush.bf16.msra.mxu0 %v222
  %238 = vmatpush.bf16.msra.mxu0 %v221
  %239 = vmatpush.bf16.msra.mxu0 %v220
  %240 = vmatpush.bf16.msra.mxu0 %v219
  %241 = vmatpush.bf16.msra.mxu0 %v218
  %242 = vmatmul.bf16.gmra.mxu0 %v169
  %v243 = vpop.f32.mrf.mxu0
  %v244 = vadd.f32 0.0, %v243
  %v245 = vpop.f32.mrf.mxu0
  %246 = vdwg.mxu0
  %v247 = vld [vmem:[%s4] sm:$0xf]
  %v248 = vld [vmem:[%s4 + $0x4] sm:$0xf]
  %v249 = vpack.c.bf16 %v244, %v244
  %s250 = scalar_lea.vmem %s3, 64
  %v251 = vld [vmem:[%s250] sm:$0xf]
  %v252 = vld [vmem:[%s250 + $0x4] sm:$0xf]
  %v253 = vld [vmem:[%s250 + $0x8] sm:$0xf]
  %v254 = vld [vmem:[%s250 + $0xc] sm:$0xf]
  %v255 = vld [vmem:[%s250 + $0x10] sm:$0xf]
  %v256 = vld [vmem:[%s250 + $0x14] sm:$0xf]
  %v257 = vld [vmem:[%s250 + $0x18] sm:$0xf]
  %v258 = vld [vmem:[%s250 + $0x1c] sm:$0xf]
  %v259 = vld [vmem:[%s250 + $0x20] sm:$0xf]
  %v260 = vld [vmem:[%s250 + $0x24] sm:$0xf]
  %v261 = vld [vmem:[%s250 + $0x28] sm:$0xf]
  %v262 = vld [vmem:[%s250 + $0x2c] sm:$0xf]
  %v263 = vld [vmem:[%s250 + $0x30] sm:$0xf]
  %v264 = vld [vmem:[%s250 + $0x34] sm:$0xf]
  %v265 = vld [vmem:[%s250 + $0x38] sm:$0xf]
  %v266 = vld [vmem:[%s250 + $0x3c] sm:$0xf]
  %v283 = vunpack.c.l.b16 %v251
  %v284 = vunpack.c.l.b16 %v252
  %v285 = vunpack.c.l.b16 %v253
  %v286 = vunpack.c.l.b16 %v254
  %v287 = vunpack.c.l.b16 %v255
  %v288 = vunpack.c.l.b16 %v256
  %v289 = vunpack.c.l.b16 %v257
  %v290 = vunpack.c.l.b16 %v258
  %v291 = vunpack.c.l.b16 %v259
  %v292 = vunpack.c.l.b16 %v260
  %v293 = vunpack.c.l.b16 %v261
  %v294 = vunpack.c.l.b16 %v262
  %v295 = vunpack.c.l.b16 %v263
  %v296 = vunpack.c.l.b16 %v264
  %v297 = vunpack.c.l.b16 %v265
  %v298 = vunpack.c.l.b16 %v266
  %v299 = vpack.c.b16 %v284, %v283
  %v300 = vpack.c.b16 %v286, %v285
  %v301 = vpack.c.b16 %v288, %v287
  %v302 = vpack.c.b16 %v290, %v289
  %v303 = vpack.c.b16 %v292, %v291
  %v304 = vpack.c.b16 %v294, %v293
  %v305 = vpack.c.b16 %v296, %v295
  %v306 = vpack.c.b16 %v298, %v297
  %315 = vmatpush.bf16.msra.mxu0 %v306
  %316 = vmatpush.bf16.msra.mxu0 %v305
  %317 = vmatpush.bf16.msra.mxu0 %v304
  %318 = vmatpush.bf16.msra.mxu0 %v303
  %319 = vmatpush.bf16.msra.mxu0 %v302
  %320 = vmatpush.bf16.msra.mxu0 %v301
  %321 = vmatpush.bf16.msra.mxu0 %v300
  %322 = vmatpush.bf16.msra.mxu0 %v299
  %323 = vmatmul.bf16.gmra.mxu0 %v169
  %v324 = vpop.f32.mrf.mxu0
  %v325 = vadd.f32 0.0, %v324
  %v326 = vpop.f32.mrf.mxu0
  %327 = vdwg.mxu0
  %s328 = scalar_lea.vmem %s4, 8
  %v329 = vld [vmem:[%s328] sm:$0xf]
  %v330 = vld [vmem:[%s328 + $0x4] sm:$0xf]
  %v331 = vpack.c.bf16 %v325, %v325
  %v334 = vunpack.c.l.b16 %v329
  %v335 = vunpack.c.l.b16 %v330
  %v336 = vpack.c.b16 %v335, %v334
  %vm337 = vcmask 64512
  %v339 = vsel %vm337, %v336, 0
  %vm341 = vcmask 1043456
  %v343 = vsel %vm341, %v331, 0
  %345 = vmatpush.bf16.msra.mxu0 0
  %346 = vmatpush.bf16.msra.mxu0 0
  %347 = vmatpush.bf16.msra.mxu0 0
  %348 = vmatpush.bf16.msra.mxu0 0
  %349 = vmatpush.bf16.msra.mxu0 0
  %350 = vmatpush.bf16.msra.mxu0 0
  %351 = vmatpush.bf16.msra.mxu0 0
  %352 = vmatpush.bf16.msra.mxu0 %v343
  %353 = vmatmul.bf16.gmra.mxu0 %v339
  %v354 = vpop.f32.mrf.mxu0
  %v355 = vadd.f32 0.0, %v354
  %v356 = vpop.f32.mrf.mxu0
  %v357 = vadd.f32 0.0, %v356
  %358 = vdwg.mxu0
  %v361 = vunpack.c.l.b16 %v247
  %v362 = vunpack.c.l.b16 %v248
  %v363 = vpack.c.b16 %v362, %v361
  %v365 = vsel %vm337, %v363, 0
  %v368 = vsel %vm341, %v249, 0
  %370 = vmatpush.bf16.msra.mxu0 0
  %371 = vmatpush.bf16.msra.mxu0 0
  %372 = vmatpush.bf16.msra.mxu0 0
  %373 = vmatpush.bf16.msra.mxu0 0
  %374 = vmatpush.bf16.msra.mxu0 0
  %375 = vmatpush.bf16.msra.mxu0 0
  %376 = vmatpush.bf16.msra.mxu0 0
  %377 = vmatpush.bf16.msra.mxu0 %v368
  %378 = vmatmul.bf16.gmra.mxu0 %v365
  %v379 = vpop.f32.mrf.mxu0
  %v380 = vadd.f32 %v355, %v379
  %v381 = vpop.f32.mrf.mxu0
  %v382 = vadd.f32 %v357, %v381
  %383 = vdwg.mxu0
  %s384 = scalar_lea.vmem %s3, 128
  %v385 = vld [vmem:[%s384] sm:$0xf]
  %v386 = vld [vmem:[%s384 + $0x4] sm:$0xf]
  %v387 = vld [vmem:[%s384 + $0x8] sm:$0xf]
  %v388 = vld [vmem:[%s384 + $0xc] sm:$0xf]
  %v389 = vld [vmem:[%s384 + $0x10] sm:$0xf]
  %v390 = vld [vmem:[%s384 + $0x14] sm:$0xf]
  %v391 = vld [vmem:[%s384 + $0x18] sm:$0xf]
  %v392 = vld [vmem:[%s384 + $0x1c] sm:$0xf]
  %v393 = vld [vmem:[%s384 + $0x20] sm:$0xf]
  %v394 = vld [vmem:[%s384 + $0x24] sm:$0xf]
  %v395 = vld [vmem:[%s384 + $0x28] sm:$0xf]
  %v396 = vld [vmem:[%s384 + $0x2c] sm:$0xf]
  %v397 = vld [vmem:[%s384 + $0x30] sm:$0xf]
  %v398 = vld [vmem:[%s384 + $0x34] sm:$0xf]
  %v399 = vld [vmem:[%s384 + $0x38] sm:$0xf]
  %v400 = vld [vmem:[%s384 + $0x3c] sm:$0xf]
  %v417 = vunpack.c.l.b16 %v385
  %v418 = vunpack.c.l.b16 %v386
  %v419 = vunpack.c.l.b16 %v387
  %v420 = vunpack.c.l.b16 %v388
  %v421 = vunpack.c.l.b16 %v389
  %v422 = vunpack.c.l.b16 %v390
  %v423 = vunpack.c.l.b16 %v391
  %v424 = vunpack.c.l.b16 %v392
  %v425 = vunpack.c.l.b16 %v393
  %v426 = vunpack.c.l.b16 %v394
  %v427 = vunpack.c.l.b16 %v395
  %v428 = vunpack.c.l.b16 %v396
  %v429 = vunpack.c.l.b16 %v397
  %v430 = vunpack.c.l.b16 %v398
  %v431 = vunpack.c.l.b16 %v399
  %v432 = vunpack.c.l.b16 %v400
  %v433 = vpack.c.b16 %v418, %v417
  %v434 = vpack.c.b16 %v420, %v419
  %v435 = vpack.c.b16 %v422, %v421
  %v436 = vpack.c.b16 %v424, %v423
  %v437 = vpack.c.b16 %v426, %v425
  %v438 = vpack.c.b16 %v428, %v427
  %v439 = vpack.c.b16 %v430, %v429
  %v440 = vpack.c.b16 %v432, %v431
  %449 = vmatpush.bf16.msra.mxu0 %v440
  %450 = vmatpush.bf16.msra.mxu0 %v439
  %451 = vmatpush.bf16.msra.mxu0 %v438
  %452 = vmatpush.bf16.msra.mxu0 %v437
  %453 = vmatpush.bf16.msra.mxu0 %v436
  %454 = vmatpush.bf16.msra.mxu0 %v435
  %455 = vmatpush.bf16.msra.mxu0 %v434
  %456 = vmatpush.bf16.msra.mxu0 %v433
  %457 = vmatmul.bf16.gmra.mxu0 %v169
  %v458 = vpop.f32.mrf.mxu0
  %v459 = vadd.f32 0.0, %v458
  %v460 = vpop.f32.mrf.mxu0
  %461 = vdwg.mxu0
  %s462 = scalar_lea.vmem %s4, 16
  %v463 = vld [vmem:[%s462] sm:$0xf]
  %v464 = vld [vmem:[%s462 + $0x4] sm:$0xf]
  %v465 = vpack.c.bf16 %v459, %v459
  %v468 = vunpack.c.l.b16 %v463
  %v469 = vunpack.c.l.b16 %v464
  %v470 = vpack.c.b16 %v469, %v468
  %v472 = vsel %vm337, %v470, 0
  %v475 = vsel %vm341, %v465, 0
  %477 = vmatpush.bf16.msra.mxu0 0
  %478 = vmatpush.bf16.msra.mxu0 0
  %479 = vmatpush.bf16.msra.mxu0 0
  %480 = vmatpush.bf16.msra.mxu0 0
  %481 = vmatpush.bf16.msra.mxu0 0
  %482 = vmatpush.bf16.msra.mxu0 0
  %483 = vmatpush.bf16.msra.mxu0 0
  %484 = vmatpush.bf16.msra.mxu0 %v475
  %485 = vmatmul.bf16.gmra.mxu0 %v472
  %v486 = vpop.f32.mrf.mxu0
  %v487 = vadd.f32 0.0, %v486
  %v488 = vpop.f32.mrf.mxu0
  %v489 = vadd.f32 0.0, %v488
  %490 = vdwg.mxu0
  %v491 = vadd.f32 %v380, %v487
  %v492 = vadd.f32 %v382, %v489
  %s493 = scalar_lea.vmem %s3, 192
  %v494 = vld [vmem:[%s493] sm:$0xf]
  %v495 = vld [vmem:[%s493 + $0x4] sm:$0xf]
  %v496 = vld [vmem:[%s493 + $0x8] sm:$0xf]
  %v497 = vld [vmem:[%s493 + $0xc] sm:$0xf]
  %v498 = vld [vmem:[%s493 + $0x10] sm:$0xf]
  %v499 = vld [vmem:[%s493 + $0x14] sm:$0xf]
  %v500 = vld [vmem:[%s493 + $0x18] sm:$0xf]
  %v501 = vld [vmem:[%s493 + $0x1c] sm:$0xf]
  %v502 = vld [vmem:[%s493 + $0x20] sm:$0xf]
  %v503 = vld [vmem:[%s493 + $0x24] sm:$0xf]
  %v504 = vld [vmem:[%s493 + $0x28] sm:$0xf]
  %v505 = vld [vmem:[%s493 + $0x2c] sm:$0xf]
  %v506 = vld [vmem:[%s493 + $0x30] sm:$0xf]
  %v507 = vld [vmem:[%s493 + $0x34] sm:$0xf]
  %v508 = vld [vmem:[%s493 + $0x38] sm:$0xf]
  %v509 = vld [vmem:[%s493 + $0x3c] sm:$0xf]
  %v526 = vunpack.c.l.b16 %v494
  %v527 = vunpack.c.l.b16 %v495
  %v528 = vunpack.c.l.b16 %v496
  %v529 = vunpack.c.l.b16 %v497
  %v530 = vunpack.c.l.b16 %v498
  %v531 = vunpack.c.l.b16 %v499
  %v532 = vunpack.c.l.b16 %v500
  %v533 = vunpack.c.l.b16 %v501
  %v534 = vunpack.c.l.b16 %v502
  %v535 = vunpack.c.l.b16 %v503
  %v536 = vunpack.c.l.b16 %v504
  %v537 = vunpack.c.l.b16 %v505
  %v538 = vunpack.c.l.b16 %v506
  %v539 = vunpack.c.l.b16 %v507
  %v540 = vunpack.c.l.b16 %v508
  %v541 = vunpack.c.l.b16 %v509
  %v542 = vpack.c.b16 %v527, %v526
  %v543 = vpack.c.b16 %v529, %v528
  %v544 = vpack.c.b16 %v531, %v530
  %v545 = vpack.c.b16 %v533, %v532
  %v546 = vpack.c.b16 %v535, %v534
  %v547 = vpack.c.b16 %v537, %v536
  %v548 = vpack.c.b16 %v539, %v538
  %v549 = vpack.c.b16 %v541, %v540
  %558 = vmatpush.bf16.msra.mxu0 %v549
  %559 = vmatpush.bf16.msra.mxu0 %v548
  %560 = vmatpush.bf16.msra.mxu0 %v547
  %561 = vmatpush.bf16.msra.mxu0 %v546
  %562 = vmatpush.bf16.msra.mxu0 %v545
  %563 = vmatpush.bf16.msra.mxu0 %v544
  %564 = vmatpush.bf16.msra.mxu0 %v543
  %565 = vmatpush.bf16.msra.mxu0 %v542
  %566 = vmatmul.bf16.gmra.mxu0 %v169
  %v567 = vpop.f32.mrf.mxu0
  %v568 = vadd.f32 0.0, %v567
  %v569 = vpop.f32.mrf.mxu0
  %570 = vdwg.mxu0
  %s571 = scalar_lea.vmem %s4, 24
  %v572 = vld [vmem:[%s571] sm:$0xf]
  %v573 = vld [vmem:[%s571 + $0x4] sm:$0xf]
  %v574 = vpack.c.bf16 %v568, %v568
  %v577 = vunpack.c.l.b16 %v572
  %v578 = vunpack.c.l.b16 %v573
  %v579 = vpack.c.b16 %v578, %v577
  %v581 = vsel %vm337, %v579, 0
  %v584 = vsel %vm341, %v574, 0
  %586 = vmatpush.bf16.msra.mxu0 0
  %587 = vmatpush.bf16.msra.mxu0 0
  %588 = vmatpush.bf16.msra.mxu0 0
  %589 = vmatpush.bf16.msra.mxu0 0
  %590 = vmatpush.bf16.msra.mxu0 0
  %591 = vmatpush.bf16.msra.mxu0 0
  %592 = vmatpush.bf16.msra.mxu0 0
  %593 = vmatpush.bf16.msra.mxu0 %v584
  %594 = vmatmul.bf16.gmra.mxu0 %v581
  %v595 = vpop.f32.mrf.mxu0
  %v596 = vadd.f32 0.0, %v595
  %v597 = vpop.f32.mrf.mxu0
  %v598 = vadd.f32 0.0, %v597
  %599 = vdwg.mxu0
  %v600 = vadd.f32 %v491, %v596
  %v601 = vadd.f32 %v492, %v598
  %s602 = scalar_lea.vmem %s3, 256
  %v603 = vld [vmem:[%s602] sm:$0xf]
  %v604 = vld [vmem:[%s602 + $0x4] sm:$0xf]
  %v605 = vld [vmem:[%s602 + $0x8] sm:$0xf]
  %v606 = vld [vmem:[%s602 + $0xc] sm:$0xf]
  %v607 = vld [vmem:[%s602 + $0x10] sm:$0xf]
  %v608 = vld [vmem:[%s602 + $0x14] sm:$0xf]
  %v609 = vld [vmem:[%s602 + $0x18] sm:$0xf]
  %v610 = vld [vmem:[%s602 + $0x1c] sm:$0xf]
  %v611 = vld [vmem:[%s602 + $0x20] sm:$0xf]
  %v612 = vld [vmem:[%s602 + $0x24] sm:$0xf]
  %v613 = vld [vmem:[%s602 + $0x28] sm:$0xf]
  %v614 = vld [vmem:[%s602 + $0x2c] sm:$0xf]
  %v615 = vld [vmem:[%s602 + $0x30] sm:$0xf]
  %v616 = vld [vmem:[%s602 + $0x34] sm:$0xf]
  %v617 = vld [vmem:[%s602 + $0x38] sm:$0xf]
  %v618 = vld [vmem:[%s602 + $0x3c] sm:$0xf]
  %v635 = vunpack.c.l.b16 %v603
  %v636 = vunpack.c.l.b16 %v604
  %v637 = vunpack.c.l.b16 %v605
  %v638 = vunpack.c.l.b16 %v606
  %v639 = vunpack.c.l.b16 %v607
  %v640 = vunpack.c.l.b16 %v608
  %v641 = vunpack.c.l.b16 %v609
  %v642 = vunpack.c.l.b16 %v610
  %v643 = vunpack.c.l.b16 %v611
  %v644 = vunpack.c.l.b16 %v612
  %v645 = vunpack.c.l.b16 %v613
  %v646 = vunpack.c.l.b16 %v614
  %v647 = vunpack.c.l.b16 %v615
  %v648 = vunpack.c.l.b16 %v616
  %v649 = vunpack.c.l.b16 %v617
  %v650 = vunpack.c.l.b16 %v618
  %v651 = vpack.c.b16 %v636, %v635
  %v652 = vpack.c.b16 %v638, %v637
  %v653 = vpack.c.b16 %v640, %v639
  %v654 = vpack.c.b16 %v642, %v641
  %v655 = vpack.c.b16 %v644, %v643
  %v656 = vpack.c.b16 %v646, %v645
  %v657 = vpack.c.b16 %v648, %v647
  %v658 = vpack.c.b16 %v650, %v649
  %667 = vmatpush.bf16.msra.mxu0 %v658
  %668 = vmatpush.bf16.msra.mxu0 %v657
  %669 = vmatpush.bf16.msra.mxu0 %v656
  %670 = vmatpush.bf16.msra.mxu0 %v655
  %671 = vmatpush.bf16.msra.mxu0 %v654
  %672 = vmatpush.bf16.msra.mxu0 %v653
  %673 = vmatpush.bf16.msra.mxu0 %v652
  %674 = vmatpush.bf16.msra.mxu0 %v651
  %675 = vmatmul.bf16.gmra.mxu0 %v169
  %v676 = vpop.f32.mrf.mxu0
  %v677 = vadd.f32 0.0, %v676
  %v678 = vpop.f32.mrf.mxu0
  %679 = vdwg.mxu0
  %s680 = scalar_lea.vmem %s4, 32
  %v681 = vld [vmem:[%s680] sm:$0xf]
  %v682 = vld [vmem:[%s680 + $0x4] sm:$0xf]
  %v683 = vpack.c.bf16 %v677, %v677
  %v686 = vunpack.c.l.b16 %v681
  %v687 = vunpack.c.l.b16 %v682
  %v688 = vpack.c.b16 %v687, %v686
  %v690 = vsel %vm337, %v688, 0
  %v693 = vsel %vm341, %v683, 0
  %695 = vmatpush.bf16.msra.mxu0 0
  %696 = vmatpush.bf16.msra.mxu0 0
  %697 = vmatpush.bf16.msra.mxu0 0
  %698 = vmatpush.bf16.msra.mxu0 0
  %699 = vmatpush.bf16.msra.mxu0 0
  %700 = vmatpush.bf16.msra.mxu0 0
  %701 = vmatpush.bf16.msra.mxu0 0
  %702 = vmatpush.bf16.msra.mxu0 %v693
  %703 = vmatmul.bf16.gmra.mxu0 %v690
  %v704 = vpop.f32.mrf.mxu0
  %v705 = vadd.f32 0.0, %v704
  %v706 = vpop.f32.mrf.mxu0
  %v707 = vadd.f32 0.0, %v706
  %708 = vdwg.mxu0
  %v709 = vadd.f32 %v600, %v705
  %v710 = vadd.f32 %v601, %v707
  %s711 = scalar_lea.vmem %s3, 320
  %v712 = vld [vmem:[%s711] sm:$0xf]
  %v713 = vld [vmem:[%s711 + $0x4] sm:$0xf]
  %v714 = vld [vmem:[%s711 + $0x8] sm:$0xf]
  %v715 = vld [vmem:[%s711 + $0xc] sm:$0xf]
  %v716 = vld [vmem:[%s711 + $0x10] sm:$0xf]
  %v717 = vld [vmem:[%s711 + $0x14] sm:$0xf]
  %v718 = vld [vmem:[%s711 + $0x18] sm:$0xf]
  %v719 = vld [vmem:[%s711 + $0x1c] sm:$0xf]
  %v720 = vld [vmem:[%s711 + $0x20] sm:$0xf]
  %v721 = vld [vmem:[%s711 + $0x24] sm:$0xf]
  %v722 = vld [vmem:[%s711 + $0x28] sm:$0xf]
  %v723 = vld [vmem:[%s711 + $0x2c] sm:$0xf]
  %v724 = vld [vmem:[%s711 + $0x30] sm:$0xf]
  %v725 = vld [vmem:[%s711 + $0x34] sm:$0xf]
  %v726 = vld [vmem:[%s711 + $0x38] sm:$0xf]
  %v727 = vld [vmem:[%s711 + $0x3c] sm:$0xf]
  %v744 = vunpack.c.l.b16 %v712
  %v745 = vunpack.c.l.b16 %v713
  %v746 = vunpack.c.l.b16 %v714
  %v747 = vunpack.c.l.b16 %v715
  %v748 = vunpack.c.l.b16 %v716
  %v749 = vunpack.c.l.b16 %v717
  %v750 = vunpack.c.l.b16 %v718
  %v751 = vunpack.c.l.b16 %v719
  %v752 = vunpack.c.l.b16 %v720
  %v753 = vunpack.c.l.b16 %v721
  %v754 = vunpack.c.l.b16 %v722
  %v755 = vunpack.c.l.b16 %v723
  %v756 = vunpack.c.l.b16 %v724
  %v757 = vunpack.c.l.b16 %v725
  %v758 = vunpack.c.l.b16 %v726
  %v759 = vunpack.c.l.b16 %v727
  %v760 = vpack.c.b16 %v745, %v744
  %v761 = vpack.c.b16 %v747, %v746
  %v762 = vpack.c.b16 %v749, %v748
  %v763 = vpack.c.b16 %v751, %v750
  %v764 = vpack.c.b16 %v753, %v752
  %v765 = vpack.c.b16 %v755, %v754
  %v766 = vpack.c.b16 %v757, %v756
  %v767 = vpack.c.b16 %v759, %v758
  %776 = vmatpush.bf16.msra.mxu0 %v767
  %777 = vmatpush.bf16.msra.mxu0 %v766
  %778 = vmatpush.bf16.msra.mxu0 %v765
  %779 = vmatpush.bf16.msra.mxu0 %v764
  %780 = vmatpush.bf16.msra.mxu0 %v763
  %781 = vmatpush.bf16.msra.mxu0 %v762
  %782 = vmatpush.bf16.msra.mxu0 %v761
  %783 = vmatpush.bf16.msra.mxu0 %v760
  %784 = vmatmul.bf16.gmra.mxu0 %v169
  %v785 = vpop.f32.mrf.mxu0
  %v786 = vadd.f32 0.0, %v785
  %v787 = vpop.f32.mrf.mxu0
  %788 = vdwg.mxu0
  %s789 = scalar_lea.vmem %s4, 40
  %v790 = vld [vmem:[%s789] sm:$0xf]
  %v791 = vld [vmem:[%s789 + $0x4] sm:$0xf]
  %v792 = vpack.c.bf16 %v786, %v786
  %v795 = vunpack.c.l.b16 %v790
  %v796 = vunpack.c.l.b16 %v791
  %v797 = vpack.c.b16 %v796, %v795
  %v799 = vsel %vm337, %v797, 0
  %v802 = vsel %vm341, %v792, 0
  %804 = vmatpush.bf16.msra.mxu0 0
  %805 = vmatpush.bf16.msra.mxu0 0
  %806 = vmatpush.bf16.msra.mxu0 0
  %807 = vmatpush.bf16.msra.mxu0 0
  %808 = vmatpush.bf16.msra.mxu0 0
  %809 = vmatpush.bf16.msra.mxu0 0
  %810 = vmatpush.bf16.msra.mxu0 0
  %811 = vmatpush.bf16.msra.mxu0 %v802
  %812 = vmatmul.bf16.gmra.mxu0 %v799
  %v813 = vpop.f32.mrf.mxu0
  %v814 = vadd.f32 0.0, %v813
  %v815 = vpop.f32.mrf.mxu0
  %v816 = vadd.f32 0.0, %v815
  %817 = vdwg.mxu0
  %v818 = vadd.f32 %v709, %v814
  %v819 = vadd.f32 %v710, %v816
  %s820 = scalar_lea.vmem %s3, 384
  %v821 = vld [vmem:[%s820] sm:$0xf]
  %v822 = vld [vmem:[%s820 + $0x4] sm:$0xf]
  %v823 = vld [vmem:[%s820 + $0x8] sm:$0xf]
  %v824 = vld [vmem:[%s820 + $0xc] sm:$0xf]
  %v825 = vld [vmem:[%s820 + $0x10] sm:$0xf]
  %v826 = vld [vmem:[%s820 + $0x14] sm:$0xf]
  %v827 = vld [vmem:[%s820 + $0x18] sm:$0xf]
  %v828 = vld [vmem:[%s820 + $0x1c] sm:$0xf]
  %v829 = vld [vmem:[%s820 + $0x20] sm:$0xf]
  %v830 = vld [vmem:[%s820 + $0x24] sm:$0xf]
  %v831 = vld [vmem:[%s820 + $0x28] sm:$0xf]
  %v832 = vld [vmem:[%s820 + $0x2c] sm:$0xf]
  %v833 = vld [vmem:[%s820 + $0x30] sm:$0xf]
  %v834 = vld [vmem:[%s820 + $0x34] sm:$0xf]
  %v835 = vld [vmem:[%s820 + $0x38] sm:$0xf]
  %v836 = vld [vmem:[%s820 + $0x3c] sm:$0xf]
  %v853 = vunpack.c.l.b16 %v821
  %v854 = vunpack.c.l.b16 %v822
  %v855 = vunpack.c.l.b16 %v823
  %v856 = vunpack.c.l.b16 %v824
  %v857 = vunpack.c.l.b16 %v825
  %v858 = vunpack.c.l.b16 %v826
  %v859 = vunpack.c.l.b16 %v827
  %v860 = vunpack.c.l.b16 %v828
  %v861 = vunpack.c.l.b16 %v829
  %v862 = vunpack.c.l.b16 %v830
  %v863 = vunpack.c.l.b16 %v831
  %v864 = vunpack.c.l.b16 %v832
  %v865 = vunpack.c.l.b16 %v833
  %v866 = vunpack.c.l.b16 %v834
  %v867 = vunpack.c.l.b16 %v835
  %v868 = vunpack.c.l.b16 %v836
  %v869 = vpack.c.b16 %v854, %v853
  %v870 = vpack.c.b16 %v856, %v855
  %v871 = vpack.c.b16 %v858, %v857
  %v872 = vpack.c.b16 %v860, %v859
  %v873 = vpack.c.b16 %v862, %v861
  %v874 = vpack.c.b16 %v864, %v863
  %v875 = vpack.c.b16 %v866, %v865
  %v876 = vpack.c.b16 %v868, %v867
  %885 = vmatpush.bf16.msra.mxu0 %v876
  %886 = vmatpush.bf16.msra.mxu0 %v875
  %887 = vmatpush.bf16.msra.mxu0 %v874
  %888 = vmatpush.bf16.msra.mxu0 %v873
  %889 = vmatpush.bf16.msra.mxu0 %v872
  %890 = vmatpush.bf16.msra.mxu0 %v871
  %891 = vmatpush.bf16.msra.mxu0 %v870
  %892 = vmatpush.bf16.msra.mxu0 %v869
  %893 = vmatmul.bf16.gmra.mxu0 %v169
  %v894 = vpop.f32.mrf.mxu0
  %v895 = vadd.f32 0.0, %v894
  %v896 = vpop.f32.mrf.mxu0
  %897 = vdwg.mxu0
  %s898 = scalar_lea.vmem %s4, 48
  %v899 = vld [vmem:[%s898] sm:$0xf]
  %v900 = vld [vmem:[%s898 + $0x4] sm:$0xf]
  %v901 = vpack.c.bf16 %v895, %v895
  %v904 = vunpack.c.l.b16 %v899
  %v905 = vunpack.c.l.b16 %v900
  %v906 = vpack.c.b16 %v905, %v904
  %v908 = vsel %vm337, %v906, 0
  %v911 = vsel %vm341, %v901, 0
  %913 = vmatpush.bf16.msra.mxu0 0
  %914 = vmatpush.bf16.msra.mxu0 0
  %915 = vmatpush.bf16.msra.mxu0 0
  %916 = vmatpush.bf16.msra.mxu0 0
  %917 = vmatpush.bf16.msra.mxu0 0
  %918 = vmatpush.bf16.msra.mxu0 0
  %919 = vmatpush.bf16.msra.mxu0 0
  %920 = vmatpush.bf16.msra.mxu0 %v911
  %921 = vmatmul.bf16.gmra.mxu0 %v908
  %v922 = vpop.f32.mrf.mxu0
  %v923 = vadd.f32 0.0, %v922
  %v924 = vpop.f32.mrf.mxu0
  %v925 = vadd.f32 0.0, %v924
  %926 = vdwg.mxu0
  %v927 = vadd.f32 %v818, %v923
  %v928 = vadd.f32 %v819, %v925
  %s929 = scalar_lea.vmem %s3, 448
  %v930 = vld [vmem:[%s929] sm:$0xf]
  %v931 = vld [vmem:[%s929 + $0x4] sm:$0xf]
  %v932 = vld [vmem:[%s929 + $0x8] sm:$0xf]
  %v933 = vld [vmem:[%s929 + $0xc] sm:$0xf]
  %v934 = vld [vmem:[%s929 + $0x10] sm:$0xf]
  %v935 = vld [vmem:[%s929 + $0x14] sm:$0xf]
  %v936 = vld [vmem:[%s929 + $0x18] sm:$0xf]
  %v937 = vld [vmem:[%s929 + $0x1c] sm:$0xf]
  %v938 = vld [vmem:[%s929 + $0x20] sm:$0xf]
  %v939 = vld [vmem:[%s929 + $0x24] sm:$0xf]
  %v940 = vld [vmem:[%s929 + $0x28] sm:$0xf]
  %v941 = vld [vmem:[%s929 + $0x2c] sm:$0xf]
  %v942 = vld [vmem:[%s929 + $0x30] sm:$0xf]
  %v943 = vld [vmem:[%s929 + $0x34] sm:$0xf]
  %v944 = vld [vmem:[%s929 + $0x38] sm:$0xf]
  %v945 = vld [vmem:[%s929 + $0x3c] sm:$0xf]
  %v962 = vunpack.c.l.b16 %v930
  %v963 = vunpack.c.l.b16 %v931
  %v964 = vunpack.c.l.b16 %v932
  %v965 = vunpack.c.l.b16 %v933
  %v966 = vunpack.c.l.b16 %v934
  %v967 = vunpack.c.l.b16 %v935
  %v968 = vunpack.c.l.b16 %v936
  %v969 = vunpack.c.l.b16 %v937
  %v970 = vunpack.c.l.b16 %v938
  %v971 = vunpack.c.l.b16 %v939
  %v972 = vunpack.c.l.b16 %v940
  %v973 = vunpack.c.l.b16 %v941
  %v974 = vunpack.c.l.b16 %v942
  %v975 = vunpack.c.l.b16 %v943
  %v976 = vunpack.c.l.b16 %v944
  %v977 = vunpack.c.l.b16 %v945
  %v978 = vpack.c.b16 %v963, %v962
  %v979 = vpack.c.b16 %v965, %v964
  %v980 = vpack.c.b16 %v967, %v966
  %v981 = vpack.c.b16 %v969, %v968
  %v982 = vpack.c.b16 %v971, %v970
  %v983 = vpack.c.b16 %v973, %v972
  %v984 = vpack.c.b16 %v975, %v974
  %v985 = vpack.c.b16 %v977, %v976
  %994 = vmatpush.bf16.msra.mxu0 %v985
  %995 = vmatpush.bf16.msra.mxu0 %v984
  %996 = vmatpush.bf16.msra.mxu0 %v983
  %997 = vmatpush.bf16.msra.mxu0 %v982
  %998 = vmatpush.bf16.msra.mxu0 %v981
  %999 = vmatpush.bf16.msra.mxu0 %v980
  %1000 = vmatpush.bf16.msra.mxu0 %v979
  %1001 = vmatpush.bf16.msra.mxu0 %v978
  %1002 = vmatmul.bf16.gmra.mxu0 %v169
  %v1003 = vpop.f32.mrf.mxu0
  %v1004 = vadd.f32 0.0, %v1003
  %v1005 = vpop.f32.mrf.mxu0
  %1006 = vdwg.mxu0
  %s1007 = scalar_lea.vmem %s4, 56
  %v1008 = vld [vmem:[%s1007] sm:$0xf]
  %v1009 = vld [vmem:[%s1007 + $0x4] sm:$0xf]
  %v1010 = vpack.c.bf16 %v1004, %v1004
  %v1013 = vunpack.c.l.b16 %v1008
  %v1014 = vunpack.c.l.b16 %v1009
  %v1015 = vpack.c.b16 %v1014, %v1013
  %v1017 = vsel %vm337, %v1015, 0
  %v1020 = vsel %vm341, %v1010, 0
  %1022 = vmatpush.bf16.msra.mxu0 0
  %1023 = vmatpush.bf16.msra.mxu0 0
  %1024 = vmatpush.bf16.msra.mxu0 0
  %1025 = vmatpush.bf16.msra.mxu0 0
  %1026 = vmatpush.bf16.msra.mxu0 0
  %1027 = vmatpush.bf16.msra.mxu0 0
  %1028 = vmatpush.bf16.msra.mxu0 0
  %1029 = vmatpush.bf16.msra.mxu0 %v1020
  %1030 = vmatmul.bf16.gmra.mxu0 %v1017
  %v1031 = vpop.f32.mrf.mxu0
  %v1032 = vadd.f32 0.0, %v1031
  %v1033 = vpop.f32.mrf.mxu0
  %v1034 = vadd.f32 0.0, %v1033
  %1035 = vdwg.mxu0
  %v1036 = vadd.f32 %v927, %v1032
  %v1037 = vadd.f32 %v928, %v1034
  %s1038 = scalar_lea.vmem %s3, 512
  %v1039 = vld [vmem:[%s1038] sm:$0xf]
  %v1040 = vld [vmem:[%s1038 + $0x4] sm:$0xf]
  %v1041 = vld [vmem:[%s1038 + $0x8] sm:$0xf]
  %v1042 = vld [vmem:[%s1038 + $0xc] sm:$0xf]
  %v1043 = vld [vmem:[%s1038 + $0x10] sm:$0xf]
  %v1044 = vld [vmem:[%s1038 + $0x14] sm:$0xf]
  %v1045 = vld [vmem:[%s1038 + $0x18] sm:$0xf]
  %v1046 = vld [vmem:[%s1038 + $0x1c] sm:$0xf]
  %v1047 = vld [vmem:[%s1038 + $0x20] sm:$0xf]
  %v1048 = vld [vmem:[%s1038 + $0x24] sm:$0xf]
  %v1049 = vld [vmem:[%s1038 + $0x28] sm:$0xf]
  %v1050 = vld [vmem:[%s1038 + $0x2c] sm:$0xf]
  %v1051 = vld [vmem:[%s1038 + $0x30] sm:$0xf]
  %v1052 = vld [vmem:[%s1038 + $0x34] sm:$0xf]
  %v1053 = vld [vmem:[%s1038 + $0x38] sm:$0xf]
  %v1054 = vld [vmem:[%s1038 + $0x3c] sm:$0xf]
  %v1071 = vunpack.c.l.b16 %v1039
  %v1072 = vunpack.c.l.b16 %v1040
  %v1073 = vunpack.c.l.b16 %v1041
  %v1074 = vunpack.c.l.b16 %v1042
  %v1075 = vunpack.c.l.b16 %v1043
  %v1076 = vunpack.c.l.b16 %v1044
  %v1077 = vunpack.c.l.b16 %v1045
  %v1078 = vunpack.c.l.b16 %v1046
  %v1079 = vunpack.c.l.b16 %v1047
  %v1080 = vunpack.c.l.b16 %v1048
  %v1081 = vunpack.c.l.b16 %v1049
  %v1082 = vunpack.c.l.b16 %v1050
  %v1083 = vunpack.c.l.b16 %v1051
  %v1084 = vunpack.c.l.b16 %v1052
  %v1085 = vunpack.c.l.b16 %v1053
  %v1086 = vunpack.c.l.b16 %v1054
  %v1087 = vpack.c.b16 %v1072, %v1071
  %v1088 = vpack.c.b16 %v1074, %v1073
  %v1089 = vpack.c.b16 %v1076, %v1075
  %v1090 = vpack.c.b16 %v1078, %v1077
  %v1091 = vpack.c.b16 %v1080, %v1079
  %v1092 = vpack.c.b16 %v1082, %v1081
  %v1093 = vpack.c.b16 %v1084, %v1083
  %v1094 = vpack.c.b16 %v1086, %v1085
  %1103 = vmatpush.bf16.msra.mxu0 %v1094
  %1104 = vmatpush.bf16.msra.mxu0 %v1093
  %1105 = vmatpush.bf16.msra.mxu0 %v1092
  %1106 = vmatpush.bf16.msra.mxu0 %v1091
  %1107 = vmatpush.bf16.msra.mxu0 %v1090
  %1108 = vmatpush.bf16.msra.mxu0 %v1089
  %1109 = vmatpush.bf16.msra.mxu0 %v1088
  %1110 = vmatpush.bf16.msra.mxu0 %v1087
  %1111 = vmatmul.bf16.gmra.mxu0 %v169
  %v1112 = vpop.f32.mrf.mxu0
  %v1113 = vadd.f32 0.0, %v1112
  %v1114 = vpop.f32.mrf.mxu0
  %1115 = vdwg.mxu0
  %s1116 = scalar_lea.vmem %s4, 64
  %v1117 = vld [vmem:[%s1116] sm:$0xf]
  %v1118 = vld [vmem:[%s1116 + $0x4] sm:$0xf]
  %v1119 = vpack.c.bf16 %v1113, %v1113
  %v1122 = vunpack.c.l.b16 %v1117
  %v1123 = vunpack.c.l.b16 %v1118
  %v1124 = vpack.c.b16 %v1123, %v1122
  %v1126 = vsel %vm337, %v1124, 0
  %v1129 = vsel %vm341, %v1119, 0
  %1131 = vmatpush.bf16.msra.mxu0 0
  %1132 = vmatpush.bf16.msra.mxu0 0
  %1133 = vmatpush.bf16.msra.mxu0 0
  %1134 = vmatpush.bf16.msra.mxu0 0
  %1135 = vmatpush.bf16.msra.mxu0 0
  %1136 = vmatpush.bf16.msra.mxu0 0
  %1137 = vmatpush.bf16.msra.mxu0 0
  %1138 = vmatpush.bf16.msra.mxu0 %v1129
  %1139 = vmatmul.bf16.gmra.mxu0 %v1126
  %v1140 = vpop.f32.mrf.mxu0
  %v1141 = vadd.f32 0.0, %v1140
  %v1142 = vpop.f32.mrf.mxu0
  %v1143 = vadd.f32 0.0, %v1142
  %1144 = vdwg.mxu0
  %v1145 = vadd.f32 %v1036, %v1141
  %v1146 = vadd.f32 %v1037, %v1143
  %s1147 = scalar_lea.vmem %s3, 576
  %v1148 = vld [vmem:[%s1147] sm:$0xf]
  %v1149 = vld [vmem:[%s1147 + $0x4] sm:$0xf]
  %v1150 = vld [vmem:[%s1147 + $0x8] sm:$0xf]
  %v1151 = vld [vmem:[%s1147 + $0xc] sm:$0xf]
  %v1152 = vld [vmem:[%s1147 + $0x10] sm:$0xf]
  %v1153 = vld [vmem:[%s1147 + $0x14] sm:$0xf]
  %v1154 = vld [vmem:[%s1147 + $0x18] sm:$0xf]
  %v1155 = vld [vmem:[%s1147 + $0x1c] sm:$0xf]
  %v1156 = vld [vmem:[%s1147 + $0x20] sm:$0xf]
  %v1157 = vld [vmem:[%s1147 + $0x24] sm:$0xf]
  %v1158 = vld [vmem:[%s1147 + $0x28] sm:$0xf]
  %v1159 = vld [vmem:[%s1147 + $0x2c] sm:$0xf]
  %v1160 = vld [vmem:[%s1147 + $0x30] sm:$0xf]
  %v1161 = vld [vmem:[%s1147 + $0x34] sm:$0xf]
  %v1162 = vld [vmem:[%s1147 + $0x38] sm:$0xf]
  %v1163 = vld [vmem:[%s1147 + $0x3c] sm:$0xf]
  %v1180 = vunpack.c.l.b16 %v1148
  %v1181 = vunpack.c.l.b16 %v1149
  %v1182 = vunpack.c.l.b16 %v1150
  %v1183 = vunpack.c.l.b16 %v1151
  %v1184 = vunpack.c.l.b16 %v1152
  %v1185 = vunpack.c.l.b16 %v1153
  %v1186 = vunpack.c.l.b16 %v1154
  %v1187 = vunpack.c.l.b16 %v1155
  %v1188 = vunpack.c.l.b16 %v1156
  %v1189 = vunpack.c.l.b16 %v1157
  %v1190 = vunpack.c.l.b16 %v1158
  %v1191 = vunpack.c.l.b16 %v1159
  %v1192 = vunpack.c.l.b16 %v1160
  %v1193 = vunpack.c.l.b16 %v1161
  %v1194 = vunpack.c.l.b16 %v1162
  %v1195 = vunpack.c.l.b16 %v1163
  %v1196 = vpack.c.b16 %v1181, %v1180
  %v1197 = vpack.c.b16 %v1183, %v1182
  %v1198 = vpack.c.b16 %v1185, %v1184
  %v1199 = vpack.c.b16 %v1187, %v1186
  %v1200 = vpack.c.b16 %v1189, %v1188
  %v1201 = vpack.c.b16 %v1191, %v1190
  %v1202 = vpack.c.b16 %v1193, %v1192
  %v1203 = vpack.c.b16 %v1195, %v1194
  %1212 = vmatpush.bf16.msra.mxu0 %v1203
  %1213 = vmatpush.bf16.msra.mxu0 %v1202
  %1214 = vmatpush.bf16.msra.mxu0 %v1201
  %1215 = vmatpush.bf16.msra.mxu0 %v1200
  %1216 = vmatpush.bf16.msra.mxu0 %v1199
  %1217 = vmatpush.bf16.msra.mxu0 %v1198
  %1218 = vmatpush.bf16.msra.mxu0 %v1197
  %1219 = vmatpush.bf16.msra.mxu0 %v1196
  %1220 = vmatmul.bf16.gmra.mxu0 %v169
  %v1221 = vpop.f32.mrf.mxu0
  %v1222 = vadd.f32 0.0, %v1221
  %v1223 = vpop.f32.mrf.mxu0
  %1224 = vdwg.mxu0
  %s1225 = scalar_lea.vmem %s4, 72
  %v1226 = vld [vmem:[%s1225] sm:$0xf]
  %v1227 = vld [vmem:[%s1225 + $0x4] sm:$0xf]
  %v1228 = vpack.c.bf16 %v1222, %v1222
  %v1231 = vunpack.c.l.b16 %v1226
  %v1232 = vunpack.c.l.b16 %v1227
  %v1233 = vpack.c.b16 %v1232, %v1231
  %v1235 = vsel %vm337, %v1233, 0
  %v1238 = vsel %vm341, %v1228, 0
  %1240 = vmatpush.bf16.msra.mxu0 0
  %1241 = vmatpush.bf16.msra.mxu0 0
  %1242 = vmatpush.bf16.msra.mxu0 0
  %1243 = vmatpush.bf16.msra.mxu0 0
  %1244 = vmatpush.bf16.msra.mxu0 0
  %1245 = vmatpush.bf16.msra.mxu0 0
  %1246 = vmatpush.bf16.msra.mxu0 0
  %1247 = vmatpush.bf16.msra.mxu0 %v1238
  %1248 = vmatmul.bf16.gmra.mxu0 %v1235
  %v1249 = vpop.f32.mrf.mxu0
  %v1250 = vadd.f32 0.0, %v1249
  %v1251 = vpop.f32.mrf.mxu0
  %v1252 = vadd.f32 0.0, %v1251
  %1253 = vdwg.mxu0
  %v1254 = vadd.f32 %v1145, %v1250
  %v1255 = vadd.f32 %v1146, %v1252
  %s1256 = scalar_lea.vmem %s3, 640
  %v1257 = vld [vmem:[%s1256] sm:$0xf]
  %v1258 = vld [vmem:[%s1256 + $0x4] sm:$0xf]
  %v1259 = vld [vmem:[%s1256 + $0x8] sm:$0xf]
  %v1260 = vld [vmem:[%s1256 + $0xc] sm:$0xf]
  %v1261 = vld [vmem:[%s1256 + $0x10] sm:$0xf]
  %v1262 = vld [vmem:[%s1256 + $0x14] sm:$0xf]
  %v1263 = vld [vmem:[%s1256 + $0x18] sm:$0xf]
  %v1264 = vld [vmem:[%s1256 + $0x1c] sm:$0xf]
  %v1265 = vld [vmem:[%s1256 + $0x20] sm:$0xf]
  %v1266 = vld [vmem:[%s1256 + $0x24] sm:$0xf]
  %v1267 = vld [vmem:[%s1256 + $0x28] sm:$0xf]
  %v1268 = vld [vmem:[%s1256 + $0x2c] sm:$0xf]
  %v1269 = vld [vmem:[%s1256 + $0x30] sm:$0xf]
  %v1270 = vld [vmem:[%s1256 + $0x34] sm:$0xf]
  %v1271 = vld [vmem:[%s1256 + $0x38] sm:$0xf]
  %v1272 = vld [vmem:[%s1256 + $0x3c] sm:$0xf]
  %v1289 = vunpack.c.l.b16 %v1257
  %v1290 = vunpack.c.l.b16 %v1258
  %v1291 = vunpack.c.l.b16 %v1259
  %v1292 = vunpack.c.l.b16 %v1260
  %v1293 = vunpack.c.l.b16 %v1261
  %v1294 = vunpack.c.l.b16 %v1262
  %v1295 = vunpack.c.l.b16 %v1263
  %v1296 = vunpack.c.l.b16 %v1264
  %v1297 = vunpack.c.l.b16 %v1265
  %v1298 = vunpack.c.l.b16 %v1266
  %v1299 = vunpack.c.l.b16 %v1267
  %v1300 = vunpack.c.l.b16 %v1268
  %v1301 = vunpack.c.l.b16 %v1269
  %v1302 = vunpack.c.l.b16 %v1270
  %v1303 = vunpack.c.l.b16 %v1271
  %v1304 = vunpack.c.l.b16 %v1272
  %v1305 = vpack.c.b16 %v1290, %v1289
  %v1306 = vpack.c.b16 %v1292, %v1291
  %v1307 = vpack.c.b16 %v1294, %v1293
  %v1308 = vpack.c.b16 %v1296, %v1295
  %v1309 = vpack.c.b16 %v1298, %v1297
  %v1310 = vpack.c.b16 %v1300, %v1299
  %v1311 = vpack.c.b16 %v1302, %v1301
  %v1312 = vpack.c.b16 %v1304, %v1303
  %1321 = vmatpush.bf16.msra.mxu0 %v1312
  %1322 = vmatpush.bf16.msra.mxu0 %v1311
  %1323 = vmatpush.bf16.msra.mxu0 %v1310
  %1324 = vmatpush.bf16.msra.mxu0 %v1309
  %1325 = vmatpush.bf16.msra.mxu0 %v1308
  %1326 = vmatpush.bf16.msra.mxu0 %v1307
  %1327 = vmatpush.bf16.msra.mxu0 %v1306
  %1328 = vmatpush.bf16.msra.mxu0 %v1305
  %1329 = vmatmul.bf16.gmra.mxu0 %v169
  %v1330 = vpop.f32.mrf.mxu0
  %v1331 = vadd.f32 0.0, %v1330
  %v1332 = vpop.f32.mrf.mxu0
  %1333 = vdwg.mxu0
  %s1334 = scalar_lea.vmem %s4, 80
  %v1335 = vld [vmem:[%s1334] sm:$0xf]
  %v1336 = vld [vmem:[%s1334 + $0x4] sm:$0xf]
  %v1337 = vpack.c.bf16 %v1331, %v1331
  %v1340 = vunpack.c.l.b16 %v1335
  %v1341 = vunpack.c.l.b16 %v1336
  %v1342 = vpack.c.b16 %v1341, %v1340
  %v1344 = vsel %vm337, %v1342, 0
  %v1347 = vsel %vm341, %v1337, 0
  %1349 = vmatpush.bf16.msra.mxu0 0
  %1350 = vmatpush.bf16.msra.mxu0 0
  %1351 = vmatpush.bf16.msra.mxu0 0
  %1352 = vmatpush.bf16.msra.mxu0 0
  %1353 = vmatpush.bf16.msra.mxu0 0
  %1354 = vmatpush.bf16.msra.mxu0 0
  %1355 = vmatpush.bf16.msra.mxu0 0
  %1356 = vmatpush.bf16.msra.mxu0 %v1347
  %1357 = vmatmul.bf16.gmra.mxu0 %v1344
  %v1358 = vpop.f32.mrf.mxu0
  %v1359 = vadd.f32 0.0, %v1358
  %v1360 = vpop.f32.mrf.mxu0
  %v1361 = vadd.f32 0.0, %v1360
  %1362 = vdwg.mxu0
  %v1363 = vadd.f32 %v1254, %v1359
  %v1364 = vadd.f32 %v1255, %v1361
  %s1365 = scalar_lea.vmem %s3, 704
  %v1366 = vld [vmem:[%s1365] sm:$0xf]
  %v1367 = vld [vmem:[%s1365 + $0x4] sm:$0xf]
  %v1368 = vld [vmem:[%s1365 + $0x8] sm:$0xf]
  %v1369 = vld [vmem:[%s1365 + $0xc] sm:$0xf]
  %v1370 = vld [vmem:[%s1365 + $0x10] sm:$0xf]
  %v1371 = vld [vmem:[%s1365 + $0x14] sm:$0xf]
  %v1372 = vld [vmem:[%s1365 + $0x18] sm:$0xf]
  %v1373 = vld [vmem:[%s1365 + $0x1c] sm:$0xf]
  %v1374 = vld [vmem:[%s1365 + $0x20] sm:$0xf]
  %v1375 = vld [vmem:[%s1365 + $0x24] sm:$0xf]
  %v1376 = vld [vmem:[%s1365 + $0x28] sm:$0xf]
  %v1377 = vld [vmem:[%s1365 + $0x2c] sm:$0xf]
  %v1378 = vld [vmem:[%s1365 + $0x30] sm:$0xf]
  %v1379 = vld [vmem:[%s1365 + $0x34] sm:$0xf]
  %v1380 = vld [vmem:[%s1365 + $0x38] sm:$0xf]
  %v1381 = vld [vmem:[%s1365 + $0x3c] sm:$0xf]
  %v1398 = vunpack.c.l.b16 %v1366
  %v1399 = vunpack.c.l.b16 %v1367
  %v1400 = vunpack.c.l.b16 %v1368
  %v1401 = vunpack.c.l.b16 %v1369
  %v1402 = vunpack.c.l.b16 %v1370
  %v1403 = vunpack.c.l.b16 %v1371
  %v1404 = vunpack.c.l.b16 %v1372
  %v1405 = vunpack.c.l.b16 %v1373
  %v1406 = vunpack.c.l.b16 %v1374
  %v1407 = vunpack.c.l.b16 %v1375
  %v1408 = vunpack.c.l.b16 %v1376
  %v1409 = vunpack.c.l.b16 %v1377
  %v1410 = vunpack.c.l.b16 %v1378
  %v1411 = vunpack.c.l.b16 %v1379
  %v1412 = vunpack.c.l.b16 %v1380
  %v1413 = vunpack.c.l.b16 %v1381
  %v1414 = vpack.c.b16 %v1399, %v1398
  %v1415 = vpack.c.b16 %v1401, %v1400
  %v1416 = vpack.c.b16 %v1403, %v1402
  %v1417 = vpack.c.b16 %v1405, %v1404
  %v1418 = vpack.c.b16 %v1407, %v1406
  %v1419 = vpack.c.b16 %v1409, %v1408
  %v1420 = vpack.c.b16 %v1411, %v1410
  %v1421 = vpack.c.b16 %v1413, %v1412
  %1430 = vmatpush.bf16.msra.mxu0 %v1421
  %1431 = vmatpush.bf16.msra.mxu0 %v1420
  %1432 = vmatpush.bf16.msra.mxu0 %v1419
  %1433 = vmatpush.bf16.msra.mxu0 %v1418
  %1434 = vmatpush.bf16.msra.mxu0 %v1417
  %1435 = vmatpush.bf16.msra.mxu0 %v1416
  %1436 = vmatpush.bf16.msra.mxu0 %v1415
  %1437 = vmatpush.bf16.msra.mxu0 %v1414
  %1438 = vmatmul.bf16.gmra.mxu0 %v169
  %v1439 = vpop.f32.mrf.mxu0
  %v1440 = vadd.f32 0.0, %v1439
  %v1441 = vpop.f32.mrf.mxu0
  %1442 = vdwg.mxu0
  %s1443 = scalar_lea.vmem %s4, 88
  %v1444 = vld [vmem:[%s1443] sm:$0xf]
  %v1445 = vld [vmem:[%s1443 + $0x4] sm:$0xf]
  %v1446 = vpack.c.bf16 %v1440, %v1440
  %v1449 = vunpack.c.l.b16 %v1444
  %v1450 = vunpack.c.l.b16 %v1445
  %v1451 = vpack.c.b16 %v1450, %v1449
  %v1453 = vsel %vm337, %v1451, 0
  %v1456 = vsel %vm341, %v1446, 0
  %1458 = vmatpush.bf16.msra.mxu0 0
  %1459 = vmatpush.bf16.msra.mxu0 0
  %1460 = vmatpush.bf16.msra.mxu0 0
  %1461 = vmatpush.bf16.msra.mxu0 0
  %1462 = vmatpush.bf16.msra.mxu0 0
  %1463 = vmatpush.bf16.msra.mxu0 0
  %1464 = vmatpush.bf16.msra.mxu0 0
  %1465 = vmatpush.bf16.msra.mxu0 %v1456
  %1466 = vmatmul.bf16.gmra.mxu0 %v1453
  %v1467 = vpop.f32.mrf.mxu0
  %v1468 = vadd.f32 0.0, %v1467
  %v1469 = vpop.f32.mrf.mxu0
  %v1470 = vadd.f32 0.0, %v1469
  %1471 = vdwg.mxu0
  %v1472 = vadd.f32 %v1363, %v1468
  %v1473 = vadd.f32 %v1364, %v1470
  %s1474 = scalar_lea.vmem %s3, 768
  %v1475 = vld [vmem:[%s1474] sm:$0xf]
  %v1476 = vld [vmem:[%s1474 + $0x4] sm:$0xf]
  %v1477 = vld [vmem:[%s1474 + $0x8] sm:$0xf]
  %v1478 = vld [vmem:[%s1474 + $0xc] sm:$0xf]
  %v1479 = vld [vmem:[%s1474 + $0x10] sm:$0xf]
  %v1480 = vld [vmem:[%s1474 + $0x14] sm:$0xf]
  %v1481 = vld [vmem:[%s1474 + $0x18] sm:$0xf]
  %v1482 = vld [vmem:[%s1474 + $0x1c] sm:$0xf]
  %v1483 = vld [vmem:[%s1474 + $0x20] sm:$0xf]
  %v1484 = vld [vmem:[%s1474 + $0x24] sm:$0xf]
  %v1485 = vld [vmem:[%s1474 + $0x28] sm:$0xf]
  %v1486 = vld [vmem:[%s1474 + $0x2c] sm:$0xf]
  %v1487 = vld [vmem:[%s1474 + $0x30] sm:$0xf]
  %v1488 = vld [vmem:[%s1474 + $0x34] sm:$0xf]
  %v1489 = vld [vmem:[%s1474 + $0x38] sm:$0xf]
  %v1490 = vld [vmem:[%s1474 + $0x3c] sm:$0xf]
  %v1507 = vunpack.c.l.b16 %v1475
  %v1508 = vunpack.c.l.b16 %v1476
  %v1509 = vunpack.c.l.b16 %v1477
  %v1510 = vunpack.c.l.b16 %v1478
  %v1511 = vunpack.c.l.b16 %v1479
  %v1512 = vunpack.c.l.b16 %v1480
  %v1513 = vunpack.c.l.b16 %v1481
  %v1514 = vunpack.c.l.b16 %v1482
  %v1515 = vunpack.c.l.b16 %v1483
  %v1516 = vunpack.c.l.b16 %v1484
  %v1517 = vunpack.c.l.b16 %v1485
  %v1518 = vunpack.c.l.b16 %v1486
  %v1519 = vunpack.c.l.b16 %v1487
  %v1520 = vunpack.c.l.b16 %v1488
  %v1521 = vunpack.c.l.b16 %v1489
  %v1522 = vunpack.c.l.b16 %v1490
  %v1523 = vpack.c.b16 %v1508, %v1507
  %v1524 = vpack.c.b16 %v1510, %v1509
  %v1525 = vpack.c.b16 %v1512, %v1511
  %v1526 = vpack.c.b16 %v1514, %v1513
  %v1527 = vpack.c.b16 %v1516, %v1515
  %v1528 = vpack.c.b16 %v1518, %v1517
  %v1529 = vpack.c.b16 %v1520, %v1519
  %v1530 = vpack.c.b16 %v1522, %v1521
  %1539 = vmatpush.bf16.msra.mxu0 %v1530
  %1540 = vmatpush.bf16.msra.mxu0 %v1529
  %1541 = vmatpush.bf16.msra.mxu0 %v1528
  %1542 = vmatpush.bf16.msra.mxu0 %v1527
  %1543 = vmatpush.bf16.msra.mxu0 %v1526
  %1544 = vmatpush.bf16.msra.mxu0 %v1525
  %1545 = vmatpush.bf16.msra.mxu0 %v1524
  %1546 = vmatpush.bf16.msra.mxu0 %v1523
  %1547 = vmatmul.bf16.gmra.mxu0 %v169
  %v1548 = vpop.f32.mrf.mxu0
  %v1549 = vadd.f32 0.0, %v1548
  %v1550 = vpop.f32.mrf.mxu0
  %1551 = vdwg.mxu0
  %s1552 = scalar_lea.vmem %s4, 96
  %v1553 = vld [vmem:[%s1552] sm:$0xf]
  %v1554 = vld [vmem:[%s1552 + $0x4] sm:$0xf]
  %v1555 = vpack.c.bf16 %v1549, %v1549
  %v1558 = vunpack.c.l.b16 %v1553
  %v1559 = vunpack.c.l.b16 %v1554
  %v1560 = vpack.c.b16 %v1559, %v1558
  %v1562 = vsel %vm337, %v1560, 0
  %v1565 = vsel %vm341, %v1555, 0
  %1567 = vmatpush.bf16.msra.mxu0 0
  %1568 = vmatpush.bf16.msra.mxu0 0
  %1569 = vmatpush.bf16.msra.mxu0 0
  %1570 = vmatpush.bf16.msra.mxu0 0
  %1571 = vmatpush.bf16.msra.mxu0 0
  %1572 = vmatpush.bf16.msra.mxu0 0
  %1573 = vmatpush.bf16.msra.mxu0 0
  %1574 = vmatpush.bf16.msra.mxu0 %v1565
  %1575 = vmatmul.bf16.gmra.mxu0 %v1562
  %v1576 = vpop.f32.mrf.mxu0
  %v1577 = vadd.f32 0.0, %v1576
  %v1578 = vpop.f32.mrf.mxu0
  %v1579 = vadd.f32 0.0, %v1578
  %1580 = vdwg.mxu0
  %v1581 = vadd.f32 %v1472, %v1577
  %v1582 = vadd.f32 %v1473, %v1579
  %s1583 = scalar_lea.vmem %s3, 832
  %v1584 = vld [vmem:[%s1583] sm:$0xf]
  %v1585 = vld [vmem:[%s1583 + $0x4] sm:$0xf]
  %v1586 = vld [vmem:[%s1583 + $0x8] sm:$0xf]
  %v1587 = vld [vmem:[%s1583 + $0xc] sm:$0xf]
  %v1588 = vld [vmem:[%s1583 + $0x10] sm:$0xf]
  %v1589 = vld [vmem:[%s1583 + $0x14] sm:$0xf]
  %v1590 = vld [vmem:[%s1583 + $0x18] sm:$0xf]
  %v1591 = vld [vmem:[%s1583 + $0x1c] sm:$0xf]
  %v1592 = vld [vmem:[%s1583 + $0x20] sm:$0xf]
  %v1593 = vld [vmem:[%s1583 + $0x24] sm:$0xf]
  %v1594 = vld [vmem:[%s1583 + $0x28] sm:$0xf]
  %v1595 = vld [vmem:[%s1583 + $0x2c] sm:$0xf]
  %v1596 = vld [vmem:[%s1583 + $0x30] sm:$0xf]
  %v1597 = vld [vmem:[%s1583 + $0x34] sm:$0xf]
  %v1598 = vld [vmem:[%s1583 + $0x38] sm:$0xf]
  %v1599 = vld [vmem:[%s1583 + $0x3c] sm:$0xf]
  %v1616 = vunpack.c.l.b16 %v1584
  %v1617 = vunpack.c.l.b16 %v1585
  %v1618 = vunpack.c.l.b16 %v1586
  %v1619 = vunpack.c.l.b16 %v1587
  %v1620 = vunpack.c.l.b16 %v1588
  %v1621 = vunpack.c.l.b16 %v1589
  %v1622 = vunpack.c.l.b16 %v1590
  %v1623 = vunpack.c.l.b16 %v1591
  %v1624 = vunpack.c.l.b16 %v1592
  %v1625 = vunpack.c.l.b16 %v1593
  %v1626 = vunpack.c.l.b16 %v1594
  %v1627 = vunpack.c.l.b16 %v1595
  %v1628 = vunpack.c.l.b16 %v1596
  %v1629 = vunpack.c.l.b16 %v1597
  %v1630 = vunpack.c.l.b16 %v1598
  %v1631 = vunpack.c.l.b16 %v1599
  %v1632 = vpack.c.b16 %v1617, %v1616
  %v1633 = vpack.c.b16 %v1619, %v1618
  %v1634 = vpack.c.b16 %v1621, %v1620
  %v1635 = vpack.c.b16 %v1623, %v1622
  %v1636 = vpack.c.b16 %v1625, %v1624
  %v1637 = vpack.c.b16 %v1627, %v1626
  %v1638 = vpack.c.b16 %v1629, %v1628
  %v1639 = vpack.c.b16 %v1631, %v1630
  %1648 = vmatpush.bf16.msra.mxu0 %v1639
  %1649 = vmatpush.bf16.msra.mxu0 %v1638
  %1650 = vmatpush.bf16.msra.mxu0 %v1637
  %1651 = vmatpush.bf16.msra.mxu0 %v1636
  %1652 = vmatpush.bf16.msra.mxu0 %v1635
  %1653 = vmatpush.bf16.msra.mxu0 %v1634
  %1654 = vmatpush.bf16.msra.mxu0 %v1633
  %1655 = vmatpush.bf16.msra.mxu0 %v1632
  %1656 = vmatmul.bf16.gmra.mxu0 %v169
  %v1657 = vpop.f32.mrf.mxu0
  %v1658 = vadd.f32 0.0, %v1657
  %v1659 = vpop.f32.mrf.mxu0
  %1660 = vdwg.mxu0
  %s1661 = scalar_lea.vmem %s4, 104
  %v1662 = vld [vmem:[%s1661] sm:$0xf]
  %v1663 = vld [vmem:[%s1661 + $0x4] sm:$0xf]
  %v1664 = vpack.c.bf16 %v1658, %v1658
  %v1667 = vunpack.c.l.b16 %v1662
  %v1668 = vunpack.c.l.b16 %v1663
  %v1669 = vpack.c.b16 %v1668, %v1667
  %v1671 = vsel %vm337, %v1669, 0
  %v1674 = vsel %vm341, %v1664, 0
  %1676 = vmatpush.bf16.msra.mxu0 0
  %1677 = vmatpush.bf16.msra.mxu0 0
  %1678 = vmatpush.bf16.msra.mxu0 0
  %1679 = vmatpush.bf16.msra.mxu0 0
  %1680 = vmatpush.bf16.msra.mxu0 0
  %1681 = vmatpush.bf16.msra.mxu0 0
  %1682 = vmatpush.bf16.msra.mxu0 0
  %1683 = vmatpush.bf16.msra.mxu0 %v1674
  %1684 = vmatmul.bf16.gmra.mxu0 %v1671
  %v1685 = vpop.f32.mrf.mxu0
  %v1686 = vadd.f32 0.0, %v1685
  %v1687 = vpop.f32.mrf.mxu0
  %v1688 = vadd.f32 0.0, %v1687
  %1689 = vdwg.mxu0
  %v1690 = vadd.f32 %v1581, %v1686
  %v1691 = vadd.f32 %v1582, %v1688
  %s1692 = scalar_lea.vmem %s3, 896
  %v1693 = vld [vmem:[%s1692] sm:$0xf]
  %v1694 = vld [vmem:[%s1692 + $0x4] sm:$0xf]
  %v1695 = vld [vmem:[%s1692 + $0x8] sm:$0xf]
  %v1696 = vld [vmem:[%s1692 + $0xc] sm:$0xf]
  %v1697 = vld [vmem:[%s1692 + $0x10] sm:$0xf]
  %v1698 = vld [vmem:[%s1692 + $0x14] sm:$0xf]
  %v1699 = vld [vmem:[%s1692 + $0x18] sm:$0xf]
  %v1700 = vld [vmem:[%s1692 + $0x1c] sm:$0xf]
  %v1701 = vld [vmem:[%s1692 + $0x20] sm:$0xf]
  %v1702 = vld [vmem:[%s1692 + $0x24] sm:$0xf]
  %v1703 = vld [vmem:[%s1692 + $0x28] sm:$0xf]
  %v1704 = vld [vmem:[%s1692 + $0x2c] sm:$0xf]
  %v1705 = vld [vmem:[%s1692 + $0x30] sm:$0xf]
  %v1706 = vld [vmem:[%s1692 + $0x34] sm:$0xf]
  %v1707 = vld [vmem:[%s1692 + $0x38] sm:$0xf]
  %v1708 = vld [vmem:[%s1692 + $0x3c] sm:$0xf]
  %v1725 = vunpack.c.l.b16 %v1693
  %v1726 = vunpack.c.l.b16 %v1694
  %v1727 = vunpack.c.l.b16 %v1695
  %v1728 = vunpack.c.l.b16 %v1696
  %v1729 = vunpack.c.l.b16 %v1697
  %v1730 = vunpack.c.l.b16 %v1698
  %v1731 = vunpack.c.l.b16 %v1699
  %v1732 = vunpack.c.l.b16 %v1700
  %v1733 = vunpack.c.l.b16 %v1701
  %v1734 = vunpack.c.l.b16 %v1702
  %v1735 = vunpack.c.l.b16 %v1703
  %v1736 = vunpack.c.l.b16 %v1704
  %v1737 = vunpack.c.l.b16 %v1705
  %v1738 = vunpack.c.l.b16 %v1706
  %v1739 = vunpack.c.l.b16 %v1707
  %v1740 = vunpack.c.l.b16 %v1708
  %v1741 = vpack.c.b16 %v1726, %v1725
  %v1742 = vpack.c.b16 %v1728, %v1727
  %v1743 = vpack.c.b16 %v1730, %v1729
  %v1744 = vpack.c.b16 %v1732, %v1731
  %v1745 = vpack.c.b16 %v1734, %v1733
  %v1746 = vpack.c.b16 %v1736, %v1735
  %v1747 = vpack.c.b16 %v1738, %v1737
  %v1748 = vpack.c.b16 %v1740, %v1739
  %1757 = vmatpush.bf16.msra.mxu0 %v1748
  %1758 = vmatpush.bf16.msra.mxu0 %v1747
  %1759 = vmatpush.bf16.msra.mxu0 %v1746
  %1760 = vmatpush.bf16.msra.mxu0 %v1745
  %1761 = vmatpush.bf16.msra.mxu0 %v1744
  %1762 = vmatpush.bf16.msra.mxu0 %v1743
  %1763 = vmatpush.bf16.msra.mxu0 %v1742
  %1764 = vmatpush.bf16.msra.mxu0 %v1741
  %1765 = vmatmul.bf16.gmra.mxu0 %v169
  %v1766 = vpop.f32.mrf.mxu0
  %v1767 = vadd.f32 0.0, %v1766
  %v1768 = vpop.f32.mrf.mxu0
  %1769 = vdwg.mxu0
  %s1770 = scalar_lea.vmem %s4, 112
  %v1771 = vld [vmem:[%s1770] sm:$0xf]
  %v1772 = vld [vmem:[%s1770 + $0x4] sm:$0xf]
  %v1773 = vpack.c.bf16 %v1767, %v1767
  %v1776 = vunpack.c.l.b16 %v1771
  %v1777 = vunpack.c.l.b16 %v1772
  %v1778 = vpack.c.b16 %v1777, %v1776
  %v1780 = vsel %vm337, %v1778, 0
  %v1783 = vsel %vm341, %v1773, 0
  %1785 = vmatpush.bf16.msra.mxu0 0
  %1786 = vmatpush.bf16.msra.mxu0 0
  %1787 = vmatpush.bf16.msra.mxu0 0
  %1788 = vmatpush.bf16.msra.mxu0 0
  %1789 = vmatpush.bf16.msra.mxu0 0
  %1790 = vmatpush.bf16.msra.mxu0 0
  %1791 = vmatpush.bf16.msra.mxu0 0
  %1792 = vmatpush.bf16.msra.mxu0 %v1783
  %1793 = vmatmul.bf16.gmra.mxu0 %v1780
  %v1794 = vpop.f32.mrf.mxu0
  %v1795 = vadd.f32 0.0, %v1794
  %v1796 = vpop.f32.mrf.mxu0
  %v1797 = vadd.f32 0.0, %v1796
  %1798 = vdwg.mxu0
  %v1799 = vadd.f32 %v1690, %v1795
  %v1800 = vadd.f32 %v1691, %v1797
  %s1801 = scalar_lea.vmem %s3, 960
  %v1802 = vld [vmem:[%s1801] sm:$0xf]
  %v1803 = vld [vmem:[%s1801 + $0x4] sm:$0xf]
  %v1804 = vld [vmem:[%s1801 + $0x8] sm:$0xf]
  %v1805 = vld [vmem:[%s1801 + $0xc] sm:$0xf]
  %v1806 = vld [vmem:[%s1801 + $0x10] sm:$0xf]
  %v1807 = vld [vmem:[%s1801 + $0x14] sm:$0xf]
  %v1808 = vld [vmem:[%s1801 + $0x18] sm:$0xf]
  %v1809 = vld [vmem:[%s1801 + $0x1c] sm:$0xf]
  %v1810 = vld [vmem:[%s1801 + $0x20] sm:$0xf]
  %v1811 = vld [vmem:[%s1801 + $0x24] sm:$0xf]
  %v1812 = vld [vmem:[%s1801 + $0x28] sm:$0xf]
  %v1813 = vld [vmem:[%s1801 + $0x2c] sm:$0xf]
  %v1814 = vld [vmem:[%s1801 + $0x30] sm:$0xf]
  %v1815 = vld [vmem:[%s1801 + $0x34] sm:$0xf]
  %v1816 = vld [vmem:[%s1801 + $0x38] sm:$0xf]
  %v1817 = vld [vmem:[%s1801 + $0x3c] sm:$0xf]
  %v1834 = vunpack.c.l.b16 %v1802
  %v1835 = vunpack.c.l.b16 %v1803
  %v1836 = vunpack.c.l.b16 %v1804
  %v1837 = vunpack.c.l.b16 %v1805
  %v1838 = vunpack.c.l.b16 %v1806
  %v1839 = vunpack.c.l.b16 %v1807
  %v1840 = vunpack.c.l.b16 %v1808
  %v1841 = vunpack.c.l.b16 %v1809
  %v1842 = vunpack.c.l.b16 %v1810
  %v1843 = vunpack.c.l.b16 %v1811
  %v1844 = vunpack.c.l.b16 %v1812
  %v1845 = vunpack.c.l.b16 %v1813
  %v1846 = vunpack.c.l.b16 %v1814
  %v1847 = vunpack.c.l.b16 %v1815
  %v1848 = vunpack.c.l.b16 %v1816
  %v1849 = vunpack.c.l.b16 %v1817
  %v1850 = vpack.c.b16 %v1835, %v1834
  %v1851 = vpack.c.b16 %v1837, %v1836
  %v1852 = vpack.c.b16 %v1839, %v1838
  %v1853 = vpack.c.b16 %v1841, %v1840
  %v1854 = vpack.c.b16 %v1843, %v1842
  %v1855 = vpack.c.b16 %v1845, %v1844
  %v1856 = vpack.c.b16 %v1847, %v1846
  %v1857 = vpack.c.b16 %v1849, %v1848
  %1866 = vmatpush.bf16.msra.mxu0 %v1857
  %1867 = vmatpush.bf16.msra.mxu0 %v1856
  %1868 = vmatpush.bf16.msra.mxu0 %v1855
  %1869 = vmatpush.bf16.msra.mxu0 %v1854
  %1870 = vmatpush.bf16.msra.mxu0 %v1853
  %1871 = vmatpush.bf16.msra.mxu0 %v1852
  %1872 = vmatpush.bf16.msra.mxu0 %v1851
  %1873 = vmatpush.bf16.msra.mxu0 %v1850
  %1874 = vmatmul.bf16.gmra.mxu0 %v169
  %v1875 = vpop.f32.mrf.mxu0
  %v1876 = vadd.f32 0.0, %v1875
  %v1877 = vpop.f32.mrf.mxu0
  %1878 = vdwg.mxu0
  %s1879 = scalar_lea.vmem %s4, 120
  %v1880 = vld [vmem:[%s1879] sm:$0xf]
  %v1881 = vld [vmem:[%s1879 + $0x4] sm:$0xf]
  %v1882 = vpack.c.bf16 %v1876, %v1876
  %v1885 = vunpack.c.l.b16 %v1880
  %v1886 = vunpack.c.l.b16 %v1881
  %v1887 = vpack.c.b16 %v1886, %v1885
  %v1889 = vsel %vm337, %v1887, 0
  %v1892 = vsel %vm341, %v1882, 0
  %1894 = vmatpush.bf16.msra.mxu0 0
  %1895 = vmatpush.bf16.msra.mxu0 0
  %1896 = vmatpush.bf16.msra.mxu0 0
  %1897 = vmatpush.bf16.msra.mxu0 0
  %1898 = vmatpush.bf16.msra.mxu0 0
  %1899 = vmatpush.bf16.msra.mxu0 0
  %1900 = vmatpush.bf16.msra.mxu0 0
  %1901 = vmatpush.bf16.msra.mxu0 %v1892
  %1902 = vmatmul.bf16.gmra.mxu0 %v1889
  %v1903 = vpop.f32.mrf.mxu0
  %v1904 = vadd.f32 0.0, %v1903
  %v1905 = vpop.f32.mrf.mxu0
  %v1906 = vadd.f32 0.0, %v1905
  %1907 = vdwg.mxu0
  %v1908 = vadd.f32 %v1799, %v1904
  %v1909 = vadd.f32 %v1800, %v1906
  %s1910 = scalar_lea.vmem %s3, 1024
  %v1911 = vld [vmem:[%s1910] sm:$0xf]
  %v1912 = vld [vmem:[%s1910 + $0x4] sm:$0xf]
  %v1913 = vld [vmem:[%s1910 + $0x8] sm:$0xf]
  %v1914 = vld [vmem:[%s1910 + $0xc] sm:$0xf]
  %v1915 = vld [vmem:[%s1910 + $0x10] sm:$0xf]
  %v1916 = vld [vmem:[%s1910 + $0x14] sm:$0xf]
  %v1917 = vld [vmem:[%s1910 + $0x18] sm:$0xf]
  %v1918 = vld [vmem:[%s1910 + $0x1c] sm:$0xf]
  %v1919 = vld [vmem:[%s1910 + $0x20] sm:$0xf]
  %v1920 = vld [vmem:[%s1910 + $0x24] sm:$0xf]
  %v1921 = vld [vmem:[%s1910 + $0x28] sm:$0xf]
  %v1922 = vld [vmem:[%s1910 + $0x2c] sm:$0xf]
  %v1923 = vld [vmem:[%s1910 + $0x30] sm:$0xf]
  %v1924 = vld [vmem:[%s1910 + $0x34] sm:$0xf]
  %v1925 = vld [vmem:[%s1910 + $0x38] sm:$0xf]
  %v1926 = vld [vmem:[%s1910 + $0x3c] sm:$0xf]
  %v1943 = vunpack.c.l.b16 %v1911
  %v1944 = vunpack.c.l.b16 %v1912
  %v1945 = vunpack.c.l.b16 %v1913
  %v1946 = vunpack.c.l.b16 %v1914
  %v1947 = vunpack.c.l.b16 %v1915
  %v1948 = vunpack.c.l.b16 %v1916
  %v1949 = vunpack.c.l.b16 %v1917
  %v1950 = vunpack.c.l.b16 %v1918
  %v1951 = vunpack.c.l.b16 %v1919
  %v1952 = vunpack.c.l.b16 %v1920
  %v1953 = vunpack.c.l.b16 %v1921
  %v1954 = vunpack.c.l.b16 %v1922
  %v1955 = vunpack.c.l.b16 %v1923
  %v1956 = vunpack.c.l.b16 %v1924
  %v1957 = vunpack.c.l.b16 %v1925
  %v1958 = vunpack.c.l.b16 %v1926
  %v1959 = vpack.c.b16 %v1944, %v1943
  %v1960 = vpack.c.b16 %v1946, %v1945
  %v1961 = vpack.c.b16 %v1948, %v1947
  %v1962 = vpack.c.b16 %v1950, %v1949
  %v1963 = vpack.c.b16 %v1952, %v1951
  %v1964 = vpack.c.b16 %v1954, %v1953
  %v1965 = vpack.c.b16 %v1956, %v1955
  %v1966 = vpack.c.b16 %v1958, %v1957
  %1975 = vmatpush.bf16.msra.mxu0 %v1966
  %1976 = vmatpush.bf16.msra.mxu0 %v1965
  %1977 = vmatpush.bf16.msra.mxu0 %v1964
  %1978 = vmatpush.bf16.msra.mxu0 %v1963
  %1979 = vmatpush.bf16.msra.mxu0 %v1962
  %1980 = vmatpush.bf16.msra.mxu0 %v1961
  %1981 = vmatpush.bf16.msra.mxu0 %v1960
  %1982 = vmatpush.bf16.msra.mxu0 %v1959
  %1983 = vmatmul.bf16.gmra.mxu0 %v169
  %v1984 = vpop.f32.mrf.mxu0
  %v1985 = vadd.f32 0.0, %v1984
  %v1986 = vpop.f32.mrf.mxu0
  %1987 = vdwg.mxu0
  %s1988 = scalar_lea.vmem %s4, 128
  %v1989 = vld [vmem:[%s1988] sm:$0xf]
  %v1990 = vld [vmem:[%s1988 + $0x4] sm:$0xf]
  %v1991 = vpack.c.bf16 %v1985, %v1985
  %v1994 = vunpack.c.l.b16 %v1989
  %v1995 = vunpack.c.l.b16 %v1990
  %v1996 = vpack.c.b16 %v1995, %v1994
  %v1998 = vsel %vm337, %v1996, 0
  %v2001 = vsel %vm341, %v1991, 0
  %2003 = vmatpush.bf16.msra.mxu0 0
  %2004 = vmatpush.bf16.msra.mxu0 0
  %2005 = vmatpush.bf16.msra.mxu0 0
  %2006 = vmatpush.bf16.msra.mxu0 0
  %2007 = vmatpush.bf16.msra.mxu0 0
  %2008 = vmatpush.bf16.msra.mxu0 0
  %2009 = vmatpush.bf16.msra.mxu0 0
  %2010 = vmatpush.bf16.msra.mxu0 %v2001
  %2011 = vmatmul.bf16.gmra.mxu0 %v1998
  %v2012 = vpop.f32.mrf.mxu0
  %v2013 = vadd.f32 0.0, %v2012
  %v2014 = vpop.f32.mrf.mxu0
  %v2015 = vadd.f32 0.0, %v2014
  %2016 = vdwg.mxu0
  %v2017 = vadd.f32 %v1908, %v2013
  %v2018 = vadd.f32 %v1909, %v2015
  %s2019 = scalar_lea.vmem %s3, 1088
  %v2020 = vld [vmem:[%s2019] sm:$0xf]
  %v2021 = vld [vmem:[%s2019 + $0x4] sm:$0xf]
  %v2022 = vld [vmem:[%s2019 + $0x8] sm:$0xf]
  %v2023 = vld [vmem:[%s2019 + $0xc] sm:$0xf]
  %v2024 = vld [vmem:[%s2019 + $0x10] sm:$0xf]
  %v2025 = vld [vmem:[%s2019 + $0x14] sm:$0xf]
  %v2026 = vld [vmem:[%s2019 + $0x18] sm:$0xf]
  %v2027 = vld [vmem:[%s2019 + $0x1c] sm:$0xf]
  %v2028 = vld [vmem:[%s2019 + $0x20] sm:$0xf]
  %v2029 = vld [vmem:[%s2019 + $0x24] sm:$0xf]
  %v2030 = vld [vmem:[%s2019 + $0x28] sm:$0xf]
  %v2031 = vld [vmem:[%s2019 + $0x2c] sm:$0xf]
  %v2032 = vld [vmem:[%s2019 + $0x30] sm:$0xf]
  %v2033 = vld [vmem:[%s2019 + $0x34] sm:$0xf]
  %v2034 = vld [vmem:[%s2019 + $0x38] sm:$0xf]
  %v2035 = vld [vmem:[%s2019 + $0x3c] sm:$0xf]
  %v2052 = vunpack.c.l.b16 %v2020
  %v2053 = vunpack.c.l.b16 %v2021
  %v2054 = vunpack.c.l.b16 %v2022
  %v2055 = vunpack.c.l.b16 %v2023
  %v2056 = vunpack.c.l.b16 %v2024
  %v2057 = vunpack.c.l.b16 %v2025
  %v2058 = vunpack.c.l.b16 %v2026
  %v2059 = vunpack.c.l.b16 %v2027
  %v2060 = vunpack.c.l.b16 %v2028
  %v2061 = vunpack.c.l.b16 %v2029
  %v2062 = vunpack.c.l.b16 %v2030
  %v2063 = vunpack.c.l.b16 %v2031
  %v2064 = vunpack.c.l.b16 %v2032
  %v2065 = vunpack.c.l.b16 %v2033
  %v2066 = vunpack.c.l.b16 %v2034
  %v2067 = vunpack.c.l.b16 %v2035
  %v2068 = vpack.c.b16 %v2053, %v2052
  %v2069 = vpack.c.b16 %v2055, %v2054
  %v2070 = vpack.c.b16 %v2057, %v2056
  %v2071 = vpack.c.b16 %v2059, %v2058
  %v2072 = vpack.c.b16 %v2061, %v2060
  %v2073 = vpack.c.b16 %v2063, %v2062
  %v2074 = vpack.c.b16 %v2065, %v2064
  %v2075 = vpack.c.b16 %v2067, %v2066
  %2084 = vmatpush.bf16.msra.mxu0 %v2075
  %2085 = vmatpush.bf16.msra.mxu0 %v2074
  %2086 = vmatpush.bf16.msra.mxu0 %v2073
  %2087 = vmatpush.bf16.msra.mxu0 %v2072
  %2088 = vmatpush.bf16.msra.mxu0 %v2071
  %2089 = vmatpush.bf16.msra.mxu0 %v2070
  %2090 = vmatpush.bf16.msra.mxu0 %v2069
  %2091 = vmatpush.bf16.msra.mxu0 %v2068
  %2092 = vmatmul.bf16.gmra.mxu0 %v169
  %v2093 = vpop.f32.mrf.mxu0
  %v2094 = vadd.f32 0.0, %v2093
  %v2095 = vpop.f32.mrf.mxu0
  %2096 = vdwg.mxu0
  %s2097 = scalar_lea.vmem %s4, 136
  %v2098 = vld [vmem:[%s2097] sm:$0xf]
  %v2099 = vld [vmem:[%s2097 + $0x4] sm:$0xf]
  %v2100 = vpack.c.bf16 %v2094, %v2094
  %v2103 = vunpack.c.l.b16 %v2098
  %v2104 = vunpack.c.l.b16 %v2099
  %v2105 = vpack.c.b16 %v2104, %v2103
  %v2107 = vsel %vm337, %v2105, 0
  %v2110 = vsel %vm341, %v2100, 0
  %2112 = vmatpush.bf16.msra.mxu0 0
  %2113 = vmatpush.bf16.msra.mxu0 0
  %2114 = vmatpush.bf16.msra.mxu0 0
  %2115 = vmatpush.bf16.msra.mxu0 0
  %2116 = vmatpush.bf16.msra.mxu0 0
  %2117 = vmatpush.bf16.msra.mxu0 0
  %2118 = vmatpush.bf16.msra.mxu0 0
  %2119 = vmatpush.bf16.msra.mxu0 %v2110
  %2120 = vmatmul.bf16.gmra.mxu0 %v2107
  %v2121 = vpop.f32.mrf.mxu0
  %v2122 = vadd.f32 0.0, %v2121
  %v2123 = vpop.f32.mrf.mxu0
  %v2124 = vadd.f32 0.0, %v2123
  %2125 = vdwg.mxu0
  %v2126 = vadd.f32 %v2017, %v2122
  %v2127 = vadd.f32 %v2018, %v2124
  %s2128 = scalar_lea.vmem %s3, 1152
  %v2129 = vld [vmem:[%s2128] sm:$0xf]
  %v2130 = vld [vmem:[%s2128 + $0x4] sm:$0xf]
  %v2131 = vld [vmem:[%s2128 + $0x8] sm:$0xf]
  %v2132 = vld [vmem:[%s2128 + $0xc] sm:$0xf]
  %v2133 = vld [vmem:[%s2128 + $0x10] sm:$0xf]
  %v2134 = vld [vmem:[%s2128 + $0x14] sm:$0xf]
  %v2135 = vld [vmem:[%s2128 + $0x18] sm:$0xf]
  %v2136 = vld [vmem:[%s2128 + $0x1c] sm:$0xf]
  %v2137 = vld [vmem:[%s2128 + $0x20] sm:$0xf]
  %v2138 = vld [vmem:[%s2128 + $0x24] sm:$0xf]
  %v2139 = vld [vmem:[%s2128 + $0x28] sm:$0xf]
  %v2140 = vld [vmem:[%s2128 + $0x2c] sm:$0xf]
  %v2141 = vld [vmem:[%s2128 + $0x30] sm:$0xf]
  %v2142 = vld [vmem:[%s2128 + $0x34] sm:$0xf]
  %v2143 = vld [vmem:[%s2128 + $0x38] sm:$0xf]
  %v2144 = vld [vmem:[%s2128 + $0x3c] sm:$0xf]
  %v2161 = vunpack.c.l.b16 %v2129
  %v2162 = vunpack.c.l.b16 %v2130
  %v2163 = vunpack.c.l.b16 %v2131
  %v2164 = vunpack.c.l.b16 %v2132
  %v2165 = vunpack.c.l.b16 %v2133
  %v2166 = vunpack.c.l.b16 %v2134
  %v2167 = vunpack.c.l.b16 %v2135
  %v2168 = vunpack.c.l.b16 %v2136
  %v2169 = vunpack.c.l.b16 %v2137
  %v2170 = vunpack.c.l.b16 %v2138
  %v2171 = vunpack.c.l.b16 %v2139
  %v2172 = vunpack.c.l.b16 %v2140
  %v2173 = vunpack.c.l.b16 %v2141
  %v2174 = vunpack.c.l.b16 %v2142
  %v2175 = vunpack.c.l.b16 %v2143
  %v2176 = vunpack.c.l.b16 %v2144
  %v2177 = vpack.c.b16 %v2162, %v2161
  %v2178 = vpack.c.b16 %v2164, %v2163
  %v2179 = vpack.c.b16 %v2166, %v2165
  %v2180 = vpack.c.b16 %v2168, %v2167
  %v2181 = vpack.c.b16 %v2170, %v2169
  %v2182 = vpack.c.b16 %v2172, %v2171
  %v2183 = vpack.c.b16 %v2174, %v2173
  %v2184 = vpack.c.b16 %v2176, %v2175
  %2193 = vmatpush.bf16.msra.mxu0 %v2184
  %2194 = vmatpush.bf16.msra.mxu0 %v2183
  %2195 = vmatpush.bf16.msra.mxu0 %v2182
  %2196 = vmatpush.bf16.msra.mxu0 %v2181
  %2197 = vmatpush.bf16.msra.mxu0 %v2180
  %2198 = vmatpush.bf16.msra.mxu0 %v2179
  %2199 = vmatpush.bf16.msra.mxu0 %v2178
  %2200 = vmatpush.bf16.msra.mxu0 %v2177
  %2201 = vmatmul.bf16.gmra.mxu0 %v169
  %v2202 = vpop.f32.mrf.mxu0
  %v2203 = vadd.f32 0.0, %v2202
  %v2204 = vpop.f32.mrf.mxu0
  %2205 = vdwg.mxu0
  %s2206 = scalar_lea.vmem %s4, 144
  %v2207 = vld [vmem:[%s2206] sm:$0xf]
  %v2208 = vld [vmem:[%s2206 + $0x4] sm:$0xf]
  %v2209 = vpack.c.bf16 %v2203, %v2203
  %v2212 = vunpack.c.l.b16 %v2207
  %v2213 = vunpack.c.l.b16 %v2208
  %v2214 = vpack.c.b16 %v2213, %v2212
  %v2216 = vsel %vm337, %v2214, 0
  %v2219 = vsel %vm341, %v2209, 0
  %2221 = vmatpush.bf16.msra.mxu0 0
  %2222 = vmatpush.bf16.msra.mxu0 0
  %2223 = vmatpush.bf16.msra.mxu0 0
  %2224 = vmatpush.bf16.msra.mxu0 0
  %2225 = vmatpush.bf16.msra.mxu0 0
  %2226 = vmatpush.bf16.msra.mxu0 0
  %2227 = vmatpush.bf16.msra.mxu0 0
  %2228 = vmatpush.bf16.msra.mxu0 %v2219
  %2229 = vmatmul.bf16.gmra.mxu0 %v2216
  %v2230 = vpop.f32.mrf.mxu0
  %v2231 = vadd.f32 0.0, %v2230
  %v2232 = vpop.f32.mrf.mxu0
  %v2233 = vadd.f32 0.0, %v2232
  %2234 = vdwg.mxu0
  %v2235 = vadd.f32 %v2126, %v2231
  %v2236 = vadd.f32 %v2127, %v2233
  %s2237 = scalar_lea.vmem %s3, 1216
  %v2238 = vld [vmem:[%s2237] sm:$0xf]
  %v2239 = vld [vmem:[%s2237 + $0x4] sm:$0xf]
  %v2240 = vld [vmem:[%s2237 + $0x8] sm:$0xf]
  %v2241 = vld [vmem:[%s2237 + $0xc] sm:$0xf]
  %v2242 = vld [vmem:[%s2237 + $0x10] sm:$0xf]
  %v2243 = vld [vmem:[%s2237 + $0x14] sm:$0xf]
  %v2244 = vld [vmem:[%s2237 + $0x18] sm:$0xf]
  %v2245 = vld [vmem:[%s2237 + $0x1c] sm:$0xf]
  %v2246 = vld [vmem:[%s2237 + $0x20] sm:$0xf]
  %v2247 = vld [vmem:[%s2237 + $0x24] sm:$0xf]
  %v2248 = vld [vmem:[%s2237 + $0x28] sm:$0xf]
  %v2249 = vld [vmem:[%s2237 + $0x2c] sm:$0xf]
  %v2250 = vld [vmem:[%s2237 + $0x30] sm:$0xf]
  %v2251 = vld [vmem:[%s2237 + $0x34] sm:$0xf]
  %v2252 = vld [vmem:[%s2237 + $0x38] sm:$0xf]
  %v2253 = vld [vmem:[%s2237 + $0x3c] sm:$0xf]
  %v2270 = vunpack.c.l.b16 %v2238
  %v2271 = vunpack.c.l.b16 %v2239
  %v2272 = vunpack.c.l.b16 %v2240
  %v2273 = vunpack.c.l.b16 %v2241
  %v2274 = vunpack.c.l.b16 %v2242
  %v2275 = vunpack.c.l.b16 %v2243
  %v2276 = vunpack.c.l.b16 %v2244
  %v2277 = vunpack.c.l.b16 %v2245
  %v2278 = vunpack.c.l.b16 %v2246
  %v2279 = vunpack.c.l.b16 %v2247
  %v2280 = vunpack.c.l.b16 %v2248
  %v2281 = vunpack.c.l.b16 %v2249
  %v2282 = vunpack.c.l.b16 %v2250
  %v2283 = vunpack.c.l.b16 %v2251
  %v2284 = vunpack.c.l.b16 %v2252
  %v2285 = vunpack.c.l.b16 %v2253
  %v2286 = vpack.c.b16 %v2271, %v2270
  %v2287 = vpack.c.b16 %v2273, %v2272
  %v2288 = vpack.c.b16 %v2275, %v2274
  %v2289 = vpack.c.b16 %v2277, %v2276
  %v2290 = vpack.c.b16 %v2279, %v2278
  %v2291 = vpack.c.b16 %v2281, %v2280
  %v2292 = vpack.c.b16 %v2283, %v2282
  %v2293 = vpack.c.b16 %v2285, %v2284
  %2302 = vmatpush.bf16.msra.mxu0 %v2293
  %2303 = vmatpush.bf16.msra.mxu0 %v2292
  %2304 = vmatpush.bf16.msra.mxu0 %v2291
  %2305 = vmatpush.bf16.msra.mxu0 %v2290
  %2306 = vmatpush.bf16.msra.mxu0 %v2289
  %2307 = vmatpush.bf16.msra.mxu0 %v2288
  %2308 = vmatpush.bf16.msra.mxu0 %v2287
  %2309 = vmatpush.bf16.msra.mxu0 %v2286
  %2310 = vmatmul.bf16.gmra.mxu0 %v169
  %v2311 = vpop.f32.mrf.mxu0
  %v2312 = vadd.f32 0.0, %v2311
  %v2313 = vpop.f32.mrf.mxu0
  %2314 = vdwg.mxu0
  %s2315 = scalar_lea.vmem %s4, 152
  %v2316 = vld [vmem:[%s2315] sm:$0xf]
  %v2317 = vld [vmem:[%s2315 + $0x4] sm:$0xf]
  %v2318 = vpack.c.bf16 %v2312, %v2312
  %v2321 = vunpack.c.l.b16 %v2316
  %v2322 = vunpack.c.l.b16 %v2317
  %v2323 = vpack.c.b16 %v2322, %v2321
  %v2325 = vsel %vm337, %v2323, 0
  %v2328 = vsel %vm341, %v2318, 0
  %2330 = vmatpush.bf16.msra.mxu0 0
  %2331 = vmatpush.bf16.msra.mxu0 0
  %2332 = vmatpush.bf16.msra.mxu0 0
  %2333 = vmatpush.bf16.msra.mxu0 0
  %2334 = vmatpush.bf16.msra.mxu0 0
  %2335 = vmatpush.bf16.msra.mxu0 0
  %2336 = vmatpush.bf16.msra.mxu0 0
  %2337 = vmatpush.bf16.msra.mxu0 %v2328
  %2338 = vmatmul.bf16.gmra.mxu0 %v2325
  %v2339 = vpop.f32.mrf.mxu0
  %v2340 = vadd.f32 0.0, %v2339
  %v2341 = vpop.f32.mrf.mxu0
  %v2342 = vadd.f32 0.0, %v2341
  %2343 = vdwg.mxu0
  %v2344 = vadd.f32 %v2235, %v2340
  %v2345 = vadd.f32 %v2236, %v2342
  %s2346 = scalar_lea.vmem %s3, 1280
  %v2347 = vld [vmem:[%s2346] sm:$0xf]
  %v2348 = vld [vmem:[%s2346 + $0x4] sm:$0xf]
  %v2349 = vld [vmem:[%s2346 + $0x8] sm:$0xf]
  %v2350 = vld [vmem:[%s2346 + $0xc] sm:$0xf]
  %v2351 = vld [vmem:[%s2346 + $0x10] sm:$0xf]
  %v2352 = vld [vmem:[%s2346 + $0x14] sm:$0xf]
  %v2353 = vld [vmem:[%s2346 + $0x18] sm:$0xf]
  %v2354 = vld [vmem:[%s2346 + $0x1c] sm:$0xf]
  %v2355 = vld [vmem:[%s2346 + $0x20] sm:$0xf]
  %v2356 = vld [vmem:[%s2346 + $0x24] sm:$0xf]
  %v2357 = vld [vmem:[%s2346 + $0x28] sm:$0xf]
  %v2358 = vld [vmem:[%s2346 + $0x2c] sm:$0xf]
  %v2359 = vld [vmem:[%s2346 + $0x30] sm:$0xf]
  %v2360 = vld [vmem:[%s2346 + $0x34] sm:$0xf]
  %v2361 = vld [vmem:[%s2346 + $0x38] sm:$0xf]
  %v2362 = vld [vmem:[%s2346 + $0x3c] sm:$0xf]
  %v2379 = vunpack.c.l.b16 %v2347
  %v2380 = vunpack.c.l.b16 %v2348
  %v2381 = vunpack.c.l.b16 %v2349
  %v2382 = vunpack.c.l.b16 %v2350
  %v2383 = vunpack.c.l.b16 %v2351
  %v2384 = vunpack.c.l.b16 %v2352
  %v2385 = vunpack.c.l.b16 %v2353
  %v2386 = vunpack.c.l.b16 %v2354
  %v2387 = vunpack.c.l.b16 %v2355
  %v2388 = vunpack.c.l.b16 %v2356
  %v2389 = vunpack.c.l.b16 %v2357
  %v2390 = vunpack.c.l.b16 %v2358
  %v2391 = vunpack.c.l.b16 %v2359
  %v2392 = vunpack.c.l.b16 %v2360
  %v2393 = vunpack.c.l.b16 %v2361
  %v2394 = vunpack.c.l.b16 %v2362
  %v2395 = vpack.c.b16 %v2380, %v2379
  %v2396 = vpack.c.b16 %v2382, %v2381
  %v2397 = vpack.c.b16 %v2384, %v2383
  %v2398 = vpack.c.b16 %v2386, %v2385
  %v2399 = vpack.c.b16 %v2388, %v2387
  %v2400 = vpack.c.b16 %v2390, %v2389
  %v2401 = vpack.c.b16 %v2392, %v2391
  %v2402 = vpack.c.b16 %v2394, %v2393
  %2411 = vmatpush.bf16.msra.mxu0 %v2402
  %2412 = vmatpush.bf16.msra.mxu0 %v2401
  %2413 = vmatpush.bf16.msra.mxu0 %v2400
  %2414 = vmatpush.bf16.msra.mxu0 %v2399
  %2415 = vmatpush.bf16.msra.mxu0 %v2398
  %2416 = vmatpush.bf16.msra.mxu0 %v2397
  %2417 = vmatpush.bf16.msra.mxu0 %v2396
  %2418 = vmatpush.bf16.msra.mxu0 %v2395
  %2419 = vmatmul.bf16.gmra.mxu0 %v169
  %v2420 = vpop.f32.mrf.mxu0
  %v2421 = vadd.f32 0.0, %v2420
  %v2422 = vpop.f32.mrf.mxu0
  %2423 = vdwg.mxu0
  %s2424 = scalar_lea.vmem %s4, 160
  %v2425 = vld [vmem:[%s2424] sm:$0xf]
  %v2426 = vld [vmem:[%s2424 + $0x4] sm:$0xf]
  %v2427 = vpack.c.bf16 %v2421, %v2421
  %v2430 = vunpack.c.l.b16 %v2425
  %v2431 = vunpack.c.l.b16 %v2426
  %v2432 = vpack.c.b16 %v2431, %v2430
  %v2434 = vsel %vm337, %v2432, 0
  %v2437 = vsel %vm341, %v2427, 0
  %2439 = vmatpush.bf16.msra.mxu0 0
  %2440 = vmatpush.bf16.msra.mxu0 0
  %2441 = vmatpush.bf16.msra.mxu0 0
  %2442 = vmatpush.bf16.msra.mxu0 0
  %2443 = vmatpush.bf16.msra.mxu0 0
  %2444 = vmatpush.bf16.msra.mxu0 0
  %2445 = vmatpush.bf16.msra.mxu0 0
  %2446 = vmatpush.bf16.msra.mxu0 %v2437
  %2447 = vmatmul.bf16.gmra.mxu0 %v2434
  %v2448 = vpop.f32.mrf.mxu0
  %v2449 = vadd.f32 0.0, %v2448
  %v2450 = vpop.f32.mrf.mxu0
  %v2451 = vadd.f32 0.0, %v2450
  %2452 = vdwg.mxu0
  %v2453 = vadd.f32 %v2344, %v2449
  %v2454 = vadd.f32 %v2345, %v2451
  %s2455 = scalar_lea.vmem %s3, 1344
  %v2456 = vld [vmem:[%s2455] sm:$0xf]
  %v2457 = vld [vmem:[%s2455 + $0x4] sm:$0xf]
  %v2458 = vld [vmem:[%s2455 + $0x8] sm:$0xf]
  %v2459 = vld [vmem:[%s2455 + $0xc] sm:$0xf]
  %v2460 = vld [vmem:[%s2455 + $0x10] sm:$0xf]
  %v2461 = vld [vmem:[%s2455 + $0x14] sm:$0xf]
  %v2462 = vld [vmem:[%s2455 + $0x18] sm:$0xf]
  %v2463 = vld [vmem:[%s2455 + $0x1c] sm:$0xf]
  %v2464 = vld [vmem:[%s2455 + $0x20] sm:$0xf]
  %v2465 = vld [vmem:[%s2455 + $0x24] sm:$0xf]
  %v2466 = vld [vmem:[%s2455 + $0x28] sm:$0xf]
  %v2467 = vld [vmem:[%s2455 + $0x2c] sm:$0xf]
  %v2468 = vld [vmem:[%s2455 + $0x30] sm:$0xf]
  %v2469 = vld [vmem:[%s2455 + $0x34] sm:$0xf]
  %v2470 = vld [vmem:[%s2455 + $0x38] sm:$0xf]
  %v2471 = vld [vmem:[%s2455 + $0x3c] sm:$0xf]
  %v2488 = vunpack.c.l.b16 %v2456
  %v2489 = vunpack.c.l.b16 %v2457
  %v2490 = vunpack.c.l.b16 %v2458
  %v2491 = vunpack.c.l.b16 %v2459
  %v2492 = vunpack.c.l.b16 %v2460
  %v2493 = vunpack.c.l.b16 %v2461
  %v2494 = vunpack.c.l.b16 %v2462
  %v2495 = vunpack.c.l.b16 %v2463
  %v2496 = vunpack.c.l.b16 %v2464
  %v2497 = vunpack.c.l.b16 %v2465
  %v2498 = vunpack.c.l.b16 %v2466
  %v2499 = vunpack.c.l.b16 %v2467
  %v2500 = vunpack.c.l.b16 %v2468
  %v2501 = vunpack.c.l.b16 %v2469
  %v2502 = vunpack.c.l.b16 %v2470
  %v2503 = vunpack.c.l.b16 %v2471
  %v2504 = vpack.c.b16 %v2489, %v2488
  %v2505 = vpack.c.b16 %v2491, %v2490
  %v2506 = vpack.c.b16 %v2493, %v2492
  %v2507 = vpack.c.b16 %v2495, %v2494
  %v2508 = vpack.c.b16 %v2497, %v2496
  %v2509 = vpack.c.b16 %v2499, %v2498
  %v2510 = vpack.c.b16 %v2501, %v2500
  %v2511 = vpack.c.b16 %v2503, %v2502
  %2520 = vmatpush.bf16.msra.mxu0 %v2511
  %2521 = vmatpush.bf16.msra.mxu0 %v2510
  %2522 = vmatpush.bf16.msra.mxu0 %v2509
  %2523 = vmatpush.bf16.msra.mxu0 %v2508
  %2524 = vmatpush.bf16.msra.mxu0 %v2507
  %2525 = vmatpush.bf16.msra.mxu0 %v2506
  %2526 = vmatpush.bf16.msra.mxu0 %v2505
  %2527 = vmatpush.bf16.msra.mxu0 %v2504
  %2528 = vmatmul.bf16.gmra.mxu0 %v169
  %v2529 = vpop.f32.mrf.mxu0
  %v2530 = vadd.f32 0.0, %v2529
  %v2531 = vpop.f32.mrf.mxu0
  %2532 = vdwg.mxu0
  %s2533 = scalar_lea.vmem %s4, 168
  %v2534 = vld [vmem:[%s2533] sm:$0xf]
  %v2535 = vld [vmem:[%s2533 + $0x4] sm:$0xf]
  %v2536 = vpack.c.bf16 %v2530, %v2530
  %v2539 = vunpack.c.l.b16 %v2534
  %v2540 = vunpack.c.l.b16 %v2535
  %v2541 = vpack.c.b16 %v2540, %v2539
  %v2543 = vsel %vm337, %v2541, 0
  %v2546 = vsel %vm341, %v2536, 0
  %2548 = vmatpush.bf16.msra.mxu0 0
  %2549 = vmatpush.bf16.msra.mxu0 0
  %2550 = vmatpush.bf16.msra.mxu0 0
  %2551 = vmatpush.bf16.msra.mxu0 0
  %2552 = vmatpush.bf16.msra.mxu0 0
  %2553 = vmatpush.bf16.msra.mxu0 0
  %2554 = vmatpush.bf16.msra.mxu0 0
  %2555 = vmatpush.bf16.msra.mxu0 %v2546
  %2556 = vmatmul.bf16.gmra.mxu0 %v2543
  %v2557 = vpop.f32.mrf.mxu0
  %v2558 = vadd.f32 0.0, %v2557
  %v2559 = vpop.f32.mrf.mxu0
  %v2560 = vadd.f32 0.0, %v2559
  %2561 = vdwg.mxu0
  %v2562 = vadd.f32 %v2453, %v2558
  %v2563 = vadd.f32 %v2454, %v2560
  %s2564 = scalar_lea.vmem %s3, 1408
  %v2565 = vld [vmem:[%s2564] sm:$0xf]
  %v2566 = vld [vmem:[%s2564 + $0x4] sm:$0xf]
  %v2567 = vld [vmem:[%s2564 + $0x8] sm:$0xf]
  %v2568 = vld [vmem:[%s2564 + $0xc] sm:$0xf]
  %v2569 = vld [vmem:[%s2564 + $0x10] sm:$0xf]
  %v2570 = vld [vmem:[%s2564 + $0x14] sm:$0xf]
  %v2571 = vld [vmem:[%s2564 + $0x18] sm:$0xf]
  %v2572 = vld [vmem:[%s2564 + $0x1c] sm:$0xf]
  %v2573 = vld [vmem:[%s2564 + $0x20] sm:$0xf]
  %v2574 = vld [vmem:[%s2564 + $0x24] sm:$0xf]
  %v2575 = vld [vmem:[%s2564 + $0x28] sm:$0xf]
  %v2576 = vld [vmem:[%s2564 + $0x2c] sm:$0xf]
  %v2577 = vld [vmem:[%s2564 + $0x30] sm:$0xf]
  %v2578 = vld [vmem:[%s2564 + $0x34] sm:$0xf]
  %v2579 = vld [vmem:[%s2564 + $0x38] sm:$0xf]
  %v2580 = vld [vmem:[%s2564 + $0x3c] sm:$0xf]
  %v2597 = vunpack.c.l.b16 %v2565
  %v2598 = vunpack.c.l.b16 %v2566
  %v2599 = vunpack.c.l.b16 %v2567
  %v2600 = vunpack.c.l.b16 %v2568
  %v2601 = vunpack.c.l.b16 %v2569
  %v2602 = vunpack.c.l.b16 %v2570
  %v2603 = vunpack.c.l.b16 %v2571
  %v2604 = vunpack.c.l.b16 %v2572
  %v2605 = vunpack.c.l.b16 %v2573
  %v2606 = vunpack.c.l.b16 %v2574
  %v2607 = vunpack.c.l.b16 %v2575
  %v2608 = vunpack.c.l.b16 %v2576
  %v2609 = vunpack.c.l.b16 %v2577
  %v2610 = vunpack.c.l.b16 %v2578
  %v2611 = vunpack.c.l.b16 %v2579
  %v2612 = vunpack.c.l.b16 %v2580
  %v2613 = vpack.c.b16 %v2598, %v2597
  %v2614 = vpack.c.b16 %v2600, %v2599
  %v2615 = vpack.c.b16 %v2602, %v2601
  %v2616 = vpack.c.b16 %v2604, %v2603
  %v2617 = vpack.c.b16 %v2606, %v2605
  %v2618 = vpack.c.b16 %v2608, %v2607
  %v2619 = vpack.c.b16 %v2610, %v2609
  %v2620 = vpack.c.b16 %v2612, %v2611
  %2629 = vmatpush.bf16.msra.mxu0 %v2620
  %2630 = vmatpush.bf16.msra.mxu0 %v2619
  %2631 = vmatpush.bf16.msra.mxu0 %v2618
  %2632 = vmatpush.bf16.msra.mxu0 %v2617
  %2633 = vmatpush.bf16.msra.mxu0 %v2616
  %2634 = vmatpush.bf16.msra.mxu0 %v2615
  %2635 = vmatpush.bf16.msra.mxu0 %v2614
  %2636 = vmatpush.bf16.msra.mxu0 %v2613
  %2637 = vmatmul.bf16.gmra.mxu0 %v169
  %v2638 = vpop.f32.mrf.mxu0
  %v2639 = vadd.f32 0.0, %v2638
  %v2640 = vpop.f32.mrf.mxu0
  %2641 = vdwg.mxu0
  %s2642 = scalar_lea.vmem %s4, 176
  %v2643 = vld [vmem:[%s2642] sm:$0xf]
  %v2644 = vld [vmem:[%s2642 + $0x4] sm:$0xf]
  %v2645 = vpack.c.bf16 %v2639, %v2639
  %v2648 = vunpack.c.l.b16 %v2643
  %v2649 = vunpack.c.l.b16 %v2644
  %v2650 = vpack.c.b16 %v2649, %v2648
  %v2652 = vsel %vm337, %v2650, 0
  %v2655 = vsel %vm341, %v2645, 0
  %2657 = vmatpush.bf16.msra.mxu0 0
  %2658 = vmatpush.bf16.msra.mxu0 0
  %2659 = vmatpush.bf16.msra.mxu0 0
  %2660 = vmatpush.bf16.msra.mxu0 0
  %2661 = vmatpush.bf16.msra.mxu0 0
  %2662 = vmatpush.bf16.msra.mxu0 0
  %2663 = vmatpush.bf16.msra.mxu0 0
  %2664 = vmatpush.bf16.msra.mxu0 %v2655
  %2665 = vmatmul.bf16.gmra.mxu0 %v2652
  %v2666 = vpop.f32.mrf.mxu0
  %v2667 = vadd.f32 0.0, %v2666
  %v2668 = vpop.f32.mrf.mxu0
  %v2669 = vadd.f32 0.0, %v2668
  %2670 = vdwg.mxu0
  %v2671 = vadd.f32 %v2562, %v2667
  %v2672 = vadd.f32 %v2563, %v2669
  %s2673 = scalar_lea.vmem %s3, 1472
  %v2674 = vld [vmem:[%s2673] sm:$0xf]
  %v2675 = vld [vmem:[%s2673 + $0x4] sm:$0xf]
  %v2676 = vld [vmem:[%s2673 + $0x8] sm:$0xf]
  %v2677 = vld [vmem:[%s2673 + $0xc] sm:$0xf]
  %v2678 = vld [vmem:[%s2673 + $0x10] sm:$0xf]
  %v2679 = vld [vmem:[%s2673 + $0x14] sm:$0xf]
  %v2680 = vld [vmem:[%s2673 + $0x18] sm:$0xf]
  %v2681 = vld [vmem:[%s2673 + $0x1c] sm:$0xf]
  %v2682 = vld [vmem:[%s2673 + $0x20] sm:$0xf]
  %v2683 = vld [vmem:[%s2673 + $0x24] sm:$0xf]
  %v2684 = vld [vmem:[%s2673 + $0x28] sm:$0xf]
  %v2685 = vld [vmem:[%s2673 + $0x2c] sm:$0xf]
  %v2686 = vld [vmem:[%s2673 + $0x30] sm:$0xf]
  %v2687 = vld [vmem:[%s2673 + $0x34] sm:$0xf]
  %v2688 = vld [vmem:[%s2673 + $0x38] sm:$0xf]
  %v2689 = vld [vmem:[%s2673 + $0x3c] sm:$0xf]
  %v2706 = vunpack.c.l.b16 %v2674
  %v2707 = vunpack.c.l.b16 %v2675
  %v2708 = vunpack.c.l.b16 %v2676
  %v2709 = vunpack.c.l.b16 %v2677
  %v2710 = vunpack.c.l.b16 %v2678
  %v2711 = vunpack.c.l.b16 %v2679
  %v2712 = vunpack.c.l.b16 %v2680
  %v2713 = vunpack.c.l.b16 %v2681
  %v2714 = vunpack.c.l.b16 %v2682
  %v2715 = vunpack.c.l.b16 %v2683
  %v2716 = vunpack.c.l.b16 %v2684
  %v2717 = vunpack.c.l.b16 %v2685
  %v2718 = vunpack.c.l.b16 %v2686
  %v2719 = vunpack.c.l.b16 %v2687
  %v2720 = vunpack.c.l.b16 %v2688
  %v2721 = vunpack.c.l.b16 %v2689
  %v2722 = vpack.c.b16 %v2707, %v2706
  %v2723 = vpack.c.b16 %v2709, %v2708
  %v2724 = vpack.c.b16 %v2711, %v2710
  %v2725 = vpack.c.b16 %v2713, %v2712
  %v2726 = vpack.c.b16 %v2715, %v2714
  %v2727 = vpack.c.b16 %v2717, %v2716
  %v2728 = vpack.c.b16 %v2719, %v2718
  %v2729 = vpack.c.b16 %v2721, %v2720
  %2738 = vmatpush.bf16.msra.mxu0 %v2729
  %2739 = vmatpush.bf16.msra.mxu0 %v2728
  %2740 = vmatpush.bf16.msra.mxu0 %v2727
  %2741 = vmatpush.bf16.msra.mxu0 %v2726
  %2742 = vmatpush.bf16.msra.mxu0 %v2725
  %2743 = vmatpush.bf16.msra.mxu0 %v2724
  %2744 = vmatpush.bf16.msra.mxu0 %v2723
  %2745 = vmatpush.bf16.msra.mxu0 %v2722
  %2746 = vmatmul.bf16.gmra.mxu0 %v169
  %v2747 = vpop.f32.mrf.mxu0
  %v2748 = vadd.f32 0.0, %v2747
  %v2749 = vpop.f32.mrf.mxu0
  %2750 = vdwg.mxu0
  %s2751 = scalar_lea.vmem %s4, 184
  %v2752 = vld [vmem:[%s2751] sm:$0xf]
  %v2753 = vld [vmem:[%s2751 + $0x4] sm:$0xf]
  %v2754 = vpack.c.bf16 %v2748, %v2748
  %v2757 = vunpack.c.l.b16 %v2752
  %v2758 = vunpack.c.l.b16 %v2753
  %v2759 = vpack.c.b16 %v2758, %v2757
  %v2761 = vsel %vm337, %v2759, 0
  %v2764 = vsel %vm341, %v2754, 0
  %2766 = vmatpush.bf16.msra.mxu0 0
  %2767 = vmatpush.bf16.msra.mxu0 0
  %2768 = vmatpush.bf16.msra.mxu0 0
  %2769 = vmatpush.bf16.msra.mxu0 0
  %2770 = vmatpush.bf16.msra.mxu0 0
  %2771 = vmatpush.bf16.msra.mxu0 0
  %2772 = vmatpush.bf16.msra.mxu0 0
  %2773 = vmatpush.bf16.msra.mxu0 %v2764
  %2774 = vmatmul.bf16.gmra.mxu0 %v2761
  %v2775 = vpop.f32.mrf.mxu0
  %v2776 = vadd.f32 0.0, %v2775
  %v2777 = vpop.f32.mrf.mxu0
  %v2778 = vadd.f32 0.0, %v2777
  %2779 = vdwg.mxu0
  %v2780 = vadd.f32 %v2671, %v2776
  %v2781 = vadd.f32 %v2672, %v2778
  %s2782 = scalar_lea.vmem %s3, 1536
  %v2783 = vld [vmem:[%s2782] sm:$0xf]
  %v2784 = vld [vmem:[%s2782 + $0x4] sm:$0xf]
  %v2785 = vld [vmem:[%s2782 + $0x8] sm:$0xf]
  %v2786 = vld [vmem:[%s2782 + $0xc] sm:$0xf]
  %v2787 = vld [vmem:[%s2782 + $0x10] sm:$0xf]
  %v2788 = vld [vmem:[%s2782 + $0x14] sm:$0xf]
  %v2789 = vld [vmem:[%s2782 + $0x18] sm:$0xf]
  %v2790 = vld [vmem:[%s2782 + $0x1c] sm:$0xf]
  %v2791 = vld [vmem:[%s2782 + $0x20] sm:$0xf]
  %v2792 = vld [vmem:[%s2782 + $0x24] sm:$0xf]
  %v2793 = vld [vmem:[%s2782 + $0x28] sm:$0xf]
  %v2794 = vld [vmem:[%s2782 + $0x2c] sm:$0xf]
  %v2795 = vld [vmem:[%s2782 + $0x30] sm:$0xf]
  %v2796 = vld [vmem:[%s2782 + $0x34] sm:$0xf]
  %v2797 = vld [vmem:[%s2782 + $0x38] sm:$0xf]
  %v2798 = vld [vmem:[%s2782 + $0x3c] sm:$0xf]
  %v2815 = vunpack.c.l.b16 %v2783
  %v2816 = vunpack.c.l.b16 %v2784
  %v2817 = vunpack.c.l.b16 %v2785
  %v2818 = vunpack.c.l.b16 %v2786
  %v2819 = vunpack.c.l.b16 %v2787
  %v2820 = vunpack.c.l.b16 %v2788
  %v2821 = vunpack.c.l.b16 %v2789
  %v2822 = vunpack.c.l.b16 %v2790
  %v2823 = vunpack.c.l.b16 %v2791
  %v2824 = vunpack.c.l.b16 %v2792
  %v2825 = vunpack.c.l.b16 %v2793
  %v2826 = vunpack.c.l.b16 %v2794
  %v2827 = vunpack.c.l.b16 %v2795
  %v2828 = vunpack.c.l.b16 %v2796
  %v2829 = vunpack.c.l.b16 %v2797
  %v2830 = vunpack.c.l.b16 %v2798
  %v2831 = vpack.c.b16 %v2816, %v2815
  %v2832 = vpack.c.b16 %v2818, %v2817
  %v2833 = vpack.c.b16 %v2820, %v2819
  %v2834 = vpack.c.b16 %v2822, %v2821
  %v2835 = vpack.c.b16 %v2824, %v2823
  %v2836 = vpack.c.b16 %v2826, %v2825
  %v2837 = vpack.c.b16 %v2828, %v2827
  %v2838 = vpack.c.b16 %v2830, %v2829
  %2847 = vmatpush.bf16.msra.mxu0 %v2838
  %2848 = vmatpush.bf16.msra.mxu0 %v2837
  %2849 = vmatpush.bf16.msra.mxu0 %v2836
  %2850 = vmatpush.bf16.msra.mxu0 %v2835
  %2851 = vmatpush.bf16.msra.mxu0 %v2834
  %2852 = vmatpush.bf16.msra.mxu0 %v2833
  %2853 = vmatpush.bf16.msra.mxu0 %v2832
  %2854 = vmatpush.bf16.msra.mxu0 %v2831
  %2855 = vmatmul.bf16.gmra.mxu0 %v169
  %v2856 = vpop.f32.mrf.mxu0
  %v2857 = vadd.f32 0.0, %v2856
  %v2858 = vpop.f32.mrf.mxu0
  %2859 = vdwg.mxu0
  %s2860 = scalar_lea.vmem %s4, 192
  %v2861 = vld [vmem:[%s2860] sm:$0xf]
  %v2862 = vld [vmem:[%s2860 + $0x4] sm:$0xf]
  %v2863 = vpack.c.bf16 %v2857, %v2857
  %v2866 = vunpack.c.l.b16 %v2861
  %v2867 = vunpack.c.l.b16 %v2862
  %v2868 = vpack.c.b16 %v2867, %v2866
  %v2870 = vsel %vm337, %v2868, 0
  %v2873 = vsel %vm341, %v2863, 0
  %2875 = vmatpush.bf16.msra.mxu0 0
  %2876 = vmatpush.bf16.msra.mxu0 0
  %2877 = vmatpush.bf16.msra.mxu0 0
  %2878 = vmatpush.bf16.msra.mxu0 0
  %2879 = vmatpush.bf16.msra.mxu0 0
  %2880 = vmatpush.bf16.msra.mxu0 0
  %2881 = vmatpush.bf16.msra.mxu0 0
  %2882 = vmatpush.bf16.msra.mxu0 %v2873
  %2883 = vmatmul.bf16.gmra.mxu0 %v2870
  %v2884 = vpop.f32.mrf.mxu0
  %v2885 = vadd.f32 0.0, %v2884
  %v2886 = vpop.f32.mrf.mxu0
  %v2887 = vadd.f32 0.0, %v2886
  %2888 = vdwg.mxu0
  %v2889 = vadd.f32 %v2780, %v2885
  %v2890 = vadd.f32 %v2781, %v2887
  %v2891 = vld [vmem:[%s5] sm:$0xff]
  %v2892 = vld [vmem:[%s5 + $0x8] sm:$0xff]
  %2894 = vset.pattern.permute.xlu0 0
  %2895 = vperm.xlu0 %2894, %v2891
  %v2896 = vpop.permute.xlu0 %2895
  %2899 = vset.pattern.permute.xlu0 0
  %2900 = vperm.xlu0 %2899, %v2892
  %v2901 = vpop.permute.xlu0 %2900
  %v2903 = vadd.f32 %v2889, %v2896
  %v2904 = vadd.f32 %v2890, %v2901
  %v2905 = vmax.f32 %v2903, 0.0
  %v2906 = vmax.f32 %v2904, 0.0
  %2909 = vrot.lane.b32.xlu0 %v2905, 120
  %v2910 = vpop.permute.xlu0 %2909
  %2911 = vrot.lane.b32.xlu0 %v2906, 120
  %v2912 = vpop.permute.xlu0 %2911
  %v2915 = vmax.f32 %v2905, %v2910
  %v2916 = vmax.f32 %v2906, %v2912
  %2919 = vrot.lane.b32.xlu0 %v2915, 112
  %v2920 = vpop.permute.xlu0 %2919
  %2921 = vrot.lane.b32.xlu0 %v2916, 112
  %v2922 = vpop.permute.xlu0 %2921
  %v2925 = vmax.f32 %v2915, %v2920
  %v2926 = vmax.f32 %v2916, %v2922
  %v2927 = vpack.c.bf16 %v2926, %v2925
  %v2928 = vld [vmem:[%s6] sm:$0xf]
  %v2930 = vsel %vm337, %v2927, 0
  %v2933 = vsel %vm341, %v2928, 0
  %2935 = vmatpush.bf16.msra.mxu0 0
  %2936 = vmatpush.bf16.msra.mxu0 0
  %2937 = vmatpush.bf16.msra.mxu0 0
  %2938 = vmatpush.bf16.msra.mxu0 0
  %2939 = vmatpush.bf16.msra.mxu0 0
  %2940 = vmatpush.bf16.msra.mxu0 0
  %2941 = vmatpush.bf16.msra.mxu0 0
  %2942 = vmatpush.bf16.msra.mxu0 %v2933
  %2943 = vmatmul.bf16.gmra.mxu0 %v2930
  %v2944 = vpop.f32.mrf.mxu0
  %v2945 = vadd.f32 0.0, %v2944
  %v2946 = vpop.f32.mrf.mxu0
  %v2947 = vadd.f32 0.0, %v2946
  %2948 = vdwg.mxu0
  %v2949 = vld [vmem:[%s7] sm:$0xf]
  %v2950 = vld [vmem:[%s7 + $0x4] sm:$0xf]
  %v2951 = vld [vmem:[%s7 + $0x8] sm:$0x3]
  %v2952 = vpack.c.bf16 %v2947, %v2945
  %s2953 = scalar_lea.vmem %s6, 4
  %v2954 = vld [vmem:[%s2953] sm:$0xf]
  %v2956 = vsel %vm341, %v2954, 0
  %2958 = vmatpush.bf16.msra.mxu0 0
  %2959 = vmatpush.bf16.msra.mxu0 0
  %2960 = vmatpush.bf16.msra.mxu0 0
  %2961 = vmatpush.bf16.msra.mxu0 0
  %2962 = vmatpush.bf16.msra.mxu0 0
  %2963 = vmatpush.bf16.msra.mxu0 0
  %2964 = vmatpush.bf16.msra.mxu0 0
  %2965 = vmatpush.bf16.msra.mxu0 %v2956
  %2966 = vmatmul.bf16.gmra.mxu0 %v2930
  %v2967 = vpop.f32.mrf.mxu0
  %v2968 = vadd.f32 0.0, %v2967
  %v2969 = vpop.f32.mrf.mxu0
  %v2970 = vadd.f32 0.0, %v2969
  %2971 = vdwg.mxu0
  %s2972 = scalar_lea.vmem %s7, 12
  %v2973 = vld [vmem:[%s2972] sm:$0xf]
  %v2974 = vld [vmem:[%s2972 + $0x4] sm:$0xf]
  %v2975 = vld [vmem:[%s2972 + $0x8] sm:$0x3]
  %v2976 = vpack.c.bf16 %v2970, %v2968
  %v2980 = vunpack.c.l.b16 %v2973
  %v2981 = vunpack.c.l.b16 %v2974
  %v2982 = vunpack.c.l.b16 %v2975
  %v2983 = vpack.c.b16 %v2981, %v2980
  %v2984 = vpack.c.b16 %v2982, %v2982
  %vm2985 = vcmask 130048
  %v2987 = vsel %vm2985, %v2983, 0
  %v2990 = vsel %vm2985, %v2984, 0
  %2992 = vmatpush.bf16.msra.mxu0 0
  %2993 = vmatpush.bf16.msra.mxu0 0
  %2994 = vmatpush.bf16.msra.mxu0 0
  %2995 = vmatpush.bf16.msra.mxu0 0
  %2996 = vmatpush.bf16.msra.mxu0 0
  %2997 = vmatpush.bf16.msra.mxu0 0
  %2998 = vmatpush.bf16.msra.mxu0 0
  %2999 = vmatpush.bf16.msra.mxu0 %v2976
  %3000 = vmatmul.bf16.gmra.mxu0 %v2987
  %v3001 = vpop.f32.mrf.mxu0
  %v3002 = vadd.f32 0.0, %v3001
  %v3003 = vpop.f32.mrf.mxu0
  %v3004 = vadd.f32 0.0, %v3003
  %3005 = vmatmul.bf16.gmra.mxu0 %v2990
  %v3006 = vpop.f32.mrf.mxu0
  %v3007 = vadd.f32 0.0, %v3006
  %v3008 = vpop.f32.mrf.mxu0
  %3009 = vdwg.mxu0
  %v3013 = vunpack.c.l.b16 %v2949
  %v3014 = vunpack.c.l.b16 %v2950
  %v3015 = vunpack.c.l.b16 %v2951
  %v3016 = vpack.c.b16 %v3014, %v3013
  %v3017 = vpack.c.b16 %v3015, %v3015
  %v3019 = vsel %vm2985, %v3016, 0
  %v3022 = vsel %vm2985, %v3017, 0
  %3024 = vmatpush.bf16.msra.mxu0 0
  %3025 = vmatpush.bf16.msra.mxu0 0
  %3026 = vmatpush.bf16.msra.mxu0 0
  %3027 = vmatpush.bf16.msra.mxu0 0
  %3028 = vmatpush.bf16.msra.mxu0 0
  %3029 = vmatpush.bf16.msra.mxu0 0
  %3030 = vmatpush.bf16.msra.mxu0 0
  %3031 = vmatpush.bf16.msra.mxu0 %v2952
  %3032 = vmatmul.bf16.gmra.mxu0 %v3019
  %v3033 = vpop.f32.mrf.mxu0
  %v3034 = vadd.f32 %v3002, %v3033
  %v3035 = vpop.f32.mrf.mxu0
  %v3036 = vadd.f32 %v3004, %v3035
  %3037 = vmatmul.bf16.gmra.mxu0 %v3022
  %v3038 = vpop.f32.mrf.mxu0
  %v3039 = vadd.f32 %v3007, %v3038
  %v3040 = vpop.f32.mrf.mxu0
  %3041 = vdwg.mxu0
  %s3042 = scalar_lea.vmem %s6, 8
  %v3043 = vld [vmem:[%s3042] sm:$0xf]
  %v3045 = vsel %vm341, %v3043, 0
  %3047 = vmatpush.bf16.msra.mxu0 0
  %3048 = vmatpush.bf16.msra.mxu0 0
  %3049 = vmatpush.bf16.msra.mxu0 0
  %3050 = vmatpush.bf16.msra.mxu0 0
  %3051 = vmatpush.bf16.msra.mxu0 0
  %3052 = vmatpush.bf16.msra.mxu0 0
  %3053 = vmatpush.bf16.msra.mxu0 0
  %3054 = vmatpush.bf16.msra.mxu0 %v3045
  %3055 = vmatmul.bf16.gmra.mxu0 %v2930
  %v3056 = vpop.f32.mrf.mxu0
  %v3057 = vadd.f32 0.0, %v3056
  %v3058 = vpop.f32.mrf.mxu0
  %v3059 = vadd.f32 0.0, %v3058
  %3060 = vdwg.mxu0
  %s3061 = scalar_lea.vmem %s7, 24
  %v3062 = vld [vmem:[%s3061] sm:$0xf]
  %v3063 = vld [vmem:[%s3061 + $0x4] sm:$0xf]
  %v3064 = vld [vmem:[%s3061 + $0x8] sm:$0x3]
  %v3065 = vpack.c.bf16 %v3059, %v3057
  %v3069 = vunpack.c.l.b16 %v3062
  %v3070 = vunpack.c.l.b16 %v3063
  %v3071 = vunpack.c.l.b16 %v3064
  %v3072 = vpack.c.b16 %v3070, %v3069
  %v3073 = vpack.c.b16 %v3071, %v3071
  %v3075 = vsel %vm2985, %v3072, 0
  %v3078 = vsel %vm2985, %v3073, 0
  %3080 = vmatpush.bf16.msra.mxu0 0
  %3081 = vmatpush.bf16.msra.mxu0 0
  %3082 = vmatpush.bf16.msra.mxu0 0
  %3083 = vmatpush.bf16.msra.mxu0 0
  %3084 = vmatpush.bf16.msra.mxu0 0
  %3085 = vmatpush.bf16.msra.mxu0 0
  %3086 = vmatpush.bf16.msra.mxu0 0
  %3087 = vmatpush.bf16.msra.mxu0 %v3065
  %3088 = vmatmul.bf16.gmra.mxu0 %v3075
  %v3089 = vpop.f32.mrf.mxu0
  %v3090 = vadd.f32 0.0, %v3089
  %v3091 = vpop.f32.mrf.mxu0
  %v3092 = vadd.f32 0.0, %v3091
  %3093 = vmatmul.bf16.gmra.mxu0 %v3078
  %v3094 = vpop.f32.mrf.mxu0
  %v3095 = vadd.f32 0.0, %v3094
  %v3096 = vpop.f32.mrf.mxu0
  %3097 = vdwg.mxu0
  %v3098 = vadd.f32 %v3034, %v3090
  %v3099 = vadd.f32 %v3036, %v3092
  %v3100 = vadd.f32 %v3039, %v3095
  %s3101 = scalar_lea.vmem %s6, 12
  %v3102 = vld [vmem:[%s3101] sm:$0xf]
  %v3104 = vsel %vm341, %v3102, 0
  %3106 = vmatpush.bf16.msra.mxu0 0
  %3107 = vmatpush.bf16.msra.mxu0 0
  %3108 = vmatpush.bf16.msra.mxu0 0
  %3109 = vmatpush.bf16.msra.mxu0 0
  %3110 = vmatpush.bf16.msra.mxu0 0
  %3111 = vmatpush.bf16.msra.mxu0 0
  %3112 = vmatpush.bf16.msra.mxu0 0
  %3113 = vmatpush.bf16.msra.mxu0 %v3104
  %3114 = vmatmul.bf16.gmra.mxu0 %v2930
  %v3115 = vpop.f32.mrf.mxu0
  %v3116 = vadd.f32 0.0, %v3115
  %v3117 = vpop.f32.mrf.mxu0
  %v3118 = vadd.f32 0.0, %v3117
  %3119 = vdwg.mxu0
  %s3120 = scalar_lea.vmem %s7, 36
  %v3121 = vld [vmem:[%s3120] sm:$0xf]
  %v3122 = vld [vmem:[%s3120 + $0x4] sm:$0xf]
  %v3123 = vld [vmem:[%s3120 + $0x8] sm:$0x3]
  %v3124 = vpack.c.bf16 %v3118, %v3116
  %v3128 = vunpack.c.l.b16 %v3121
  %v3129 = vunpack.c.l.b16 %v3122
  %v3130 = vunpack.c.l.b16 %v3123
  %v3131 = vpack.c.b16 %v3129, %v3128
  %v3132 = vpack.c.b16 %v3130, %v3130
  %v3134 = vsel %vm2985, %v3131, 0
  %v3137 = vsel %vm2985, %v3132, 0
  %3139 = vmatpush.bf16.msra.mxu0 0
  %3140 = vmatpush.bf16.msra.mxu0 0
  %3141 = vmatpush.bf16.msra.mxu0 0
  %3142 = vmatpush.bf16.msra.mxu0 0
  %3143 = vmatpush.bf16.msra.mxu0 0
  %3144 = vmatpush.bf16.msra.mxu0 0
  %3145 = vmatpush.bf16.msra.mxu0 0
  %3146 = vmatpush.bf16.msra.mxu0 %v3124
  %3147 = vmatmul.bf16.gmra.mxu0 %v3134
  %v3148 = vpop.f32.mrf.mxu0
  %v3149 = vadd.f32 0.0, %v3148
  %v3150 = vpop.f32.mrf.mxu0
  %v3151 = vadd.f32 0.0, %v3150
  %3152 = vmatmul.bf16.gmra.mxu0 %v3137
  %v3153 = vpop.f32.mrf.mxu0
  %v3154 = vadd.f32 0.0, %v3153
  %v3155 = vpop.f32.mrf.mxu0
  %3156 = vdwg.mxu0
  %v3157 = vadd.f32 %v3098, %v3149
  %v3158 = vadd.f32 %v3099, %v3151
  %v3159 = vadd.f32 %v3100, %v3154
  %v3160 = vld [vmem:[%s8] sm:$0xff]
  %v3161 = vld [vmem:[%s8 + $0x8] sm:$0xff]
  %v3162 = vld [vmem:[%s8 + $0x10] sm:$0x7]
  %3164 = vset.pattern.permute.xlu0 0
  %3165 = vperm.xlu0 %3164, %v3160
  %v3166 = vpop.permute.xlu0 %3165
  %3169 = vset.pattern.permute.xlu0 0
  %3170 = vperm.xlu0 %3169, %v3161
  %v3171 = vpop.permute.xlu0 %3170
  %3174 = vset.pattern.permute.xlu0 0
  %3175 = vperm.xlu0 %3174, %v3162
  %v3176 = vpop.permute.xlu0 %3175
  %v3178 = vadd.f32 %v3157, %v3166
  %v3179 = vadd.f32 %v3158, %v3171
  %v3180 = vadd.f32 %v3159, %v3176
  %v3181 = vmax.f32 %v3178, 0.0
  %v3182 = vmax.f32 %v3179, 0.0
  %v3183 = vmax.f32 %v3180, 0.0
  %v3184 = vld [vmem:[%s9] sm:$0xf]
  %v3185 = vpack.c.bf16 %v3182, %v3181
  %v3186 = vpack.c.bf16 %v3183, %v3183
  %v3187 = vld [vmem:[%s10] sm:$0xff]
  %3189 = vset.pattern.permute.xlu0 0
  %3190 = vperm.xlu0 %3189, %v3187
  %v3191 = vpop.permute.xlu0 %3190
  %vm3193 = vcmask 154624
  %v3195 = vsel %vm3193, %v3184, 0
  %vm3197 = vcmask 1040384
  %vm3198 = vcmask 1041408
  %v3199 = vsel %vm3197, 4294967295, 65535
  %v3200 = vsel %vm3198, %v3199, 0
  %v3202 = vand.u32 %v3186, %v3200
  %3204 = vmatpush.bf16.msra.mxu0 0
  %3205 = vmatpush.bf16.msra.mxu0 0
  %3206 = vmatpush.bf16.msra.mxu0 0
  %3207 = vmatpush.bf16.msra.mxu0 0
  %3208 = vmatpush.bf16.msra.mxu0 0
  %3209 = vmatpush.bf16.msra.mxu0 0
  %3210 = vmatpush.bf16.msra.mxu0 %v3202
  %3211 = vmatpush.bf16.msra.mxu0 %v3185
  %3212 = vmatmul.bf16.gmra.mxu0 %v3195
  %v3213 = vpop.f32.mrf.mxu0
  %v3214 = vadd.f32 %v3191, %v3213
  %v3215 = vpop.f32.mrf.mxu0
  %3216 = vdwg.mxu0
  %v3217 = vmax.f32 %v3214, 0.0
  %v3218 = vld [vmem:[%s11] sm:$0xf]
  %v3219 = vpack.c.bf16 %v3217, %v3217
  %v3221 = vsel %vm337, %v3218, 0
  %v3224 = vsel %vm341, %v3219, 0
  %3226 = vmatpush.bf16.msra.mxu0 0
  %3227 = vmatpush.bf16.msra.mxu0 0
  %3228 = vmatpush.bf16.msra.mxu0 0
  %3229 = vmatpush.bf16.msra.mxu0 0
  %3230 = vmatpush.bf16.msra.mxu0 0
  %3231 = vmatpush.bf16.msra.mxu0 0
  %3232 = vmatpush.bf16.msra.mxu0 0
  %3233 = vmatpush.bf16.msra.mxu0 %v3224
  %3234 = vmatmul.bf16.gmra.mxu0 %v3221
  %v3235 = vpop.f32.mrf.mxu0
  %v3236 = vadd.f32 0.0, %v3235
  %v3237 = vpop.f32.mrf.mxu0
  %3238 = vdwg.mxu0
  %v3239 = vand.u32 2147483647, %v3236
  %vm3240 = vcmp.le.f32.partialorder %v3239, 0.7853982
  %vm3241 = vcmp.lt.s32.totalorder %v3236, 0
  %v3242 = vand.u32 %v3236, 2139095040
  %v3243 = vshrl.u32 %v3242, 23
  %v3244 = vsub.s32 %v3243, 127
  %v3245 = vand.u32 2147483647, %v3236
  %v3246 = vand.u32 %v3245, 8388607
  %v3247 = vor.u32 %v3246, 8388608
  %v3248 = vsub.s32 0, %v3247
  %v3249 = vadd.s32 %v3244, 1
  %vm3250 = vcmp.gt.s32.totalorder %v3249, 0
  %v3251 = vsel %vm3250, %v3249, 0
  %v3252 = vshrl.u32 %v3251, 5
  %v3253 = vand.u32 %v3251, 31
  %v3254 = vsub.s32 32, %v3253
  %v3255 = vshrl.u32 683565275, %v3254
  %v3256 = vshll.u32 683565275, %v3253
  %v3257 = vshrl.u32 2475754826, %v3254
  %v3258 = vor.u32 %v3256, %v3257
  %v3259 = vshll.u32 2475754826, %v3253
  %v3260 = vshrl.u32 2131351028, %v3254
  %v3261 = vor.u32 %v3259, %v3260
  %v3262 = vshll.u32 2131351028, %v3253
  %v3263 = vshrl.u32 2102212464, %v3254
  %v3264 = vor.u32 %v3262, %v3263
  %v3265 = vshll.u32 2102212464, %v3253
  %v3266 = vshrl.u32 920167782, %v3254
  %v3267 = vor.u32 %v3265, %v3266
  %v3268 = vshll.u32 920167782, %v3253
  %v3269 = vshrl.u32 1326507024, %v3254
  %v3270 = vor.u32 %v3268, %v3269
  %vm3271 = vcmp.lt.s32.totalorder %v3252, 1
  %vm3272 = vcmp.lt.s32.totalorder %v3252, 2
  %vm3273 = vcmp.lt.s32.totalorder %v3252, 3
  %vm3274 = vcmp.lt.s32.totalorder %v3252, 4
  %v3275 = vsel %vm3271, %v3255, %v3258
  %v3276 = vsel %vm3274, %v3264, 2102212464
  %v3277 = vsel %vm3273, %v3261, %v3276
  %v3278 = vsel %vm3272, %v3275, %v3277
  %v3279 = vsel %vm3271, %v3258, %v3261
  %v3280 = vsel %vm3274, %v3267, 920167782
  %v3281 = vsel %vm3273, %v3264, %v3280
  %v3282 = vsel %vm3272, %v3279, %v3281
  %v3283 = vsel %vm3271, %v3261, %v3264
  %v3284 = vsel %vm3274, %v3270, 1326507024
  %v3285 = vsel %vm3273, %v3267, %v3284
  %v3286 = vsel %vm3272, %v3283, %v3285
  %v3287 = vshll.u32 %v3247, 8
  %v3288 = vand.u32 %v3287, 65535
  %v3289 = vshrl.u32 %v3287, 16
  %v3290 = vand.u32 %v3286, 65535
  %v3291 = vshrl.u32 %v3286, 16
  %v3292 = vmul.u32 %v3288, %v3290
  %v3293 = vmul.u32 %v3288, %v3291
  %v3294 = vmul.u32 %v3289, %v3290
  %v3295 = vmul.u32 %v3289, %v3291
  %v3296 = vshll.u32 %v3293, 16
  %v3297 = vshrl.u32 %v3293, 16
  %v3298 = vshll.u32 %v3294, 16
  %v3299 = vshrl.u32 %v3294, 16
  %vm3300 = vc.u32 %v3292, %v3296
  %v3301 = vsel %vm3300, 1, 0
  %v3302 = vadd.s32 %v3292, %v3296
  %v3303 = vadd.s32 %v3295, %v3301
  %vm3304 = vc.u32 %v3302, %v3298
  %v3305 = vsel %vm3304, 1, 0
  %v3306 = vadd.s32 %v3302, %v3298
  %v3307 = vadd.s32 %v3303, %v3305
  %v3308 = vadd.s32 %v3307, %v3297
  %v3309 = vadd.s32 %v3308, %v3299
  %v3310 = vand.u32 %v3287, 65535
  %v3311 = vshrl.u32 %v3287, 16
  %v3312 = vand.u32 %v3282, 65535
  %v3313 = vshrl.u32 %v3282, 16
  %v3314 = vmul.u32 %v3310, %v3312
  %v3315 = vmul.u32 %v3310, %v3313
  %v3316 = vmul.u32 %v3311, %v3312
  %v3317 = vmul.u32 %v3311, %v3313
  %v3318 = vshll.u32 %v3315, 16
  %v3319 = vshrl.u32 %v3315, 16
  %v3320 = vshll.u32 %v3316, 16
  %v3321 = vshrl.u32 %v3316, 16
  %vm3322 = vc.u32 %v3314, %v3318
  %v3323 = vsel %vm3322, 1, 0
  %v3324 = vadd.s32 %v3314, %v3318
  %v3325 = vadd.s32 %v3317, %v3323
  %vm3326 = vc.u32 %v3324, %v3320
  %v3327 = vsel %vm3326, 1, 0
  %v3328 = vadd.s32 %v3324, %v3320
  %v3329 = vadd.s32 %v3325, %v3327
  %v3330 = vadd.s32 %v3329, %v3319
  %v3331 = vadd.s32 %v3330, %v3321
  %v3332 = vmul.u32 %v3287, %v3278
  %v3333 = vadd.s32 %v3309, %v3328
  %vm3334 = vc.u32 %v3309, %v3328
  %v3335 = vadd.s32 %v3331, 1
  %v3336 = vsel %vm3334, %v3335, %v3331
  %v3337 = vadd.s32 %v3332, %v3336
  %v3338 = vadd.s32 %v3337, 536870912
  %v3339 = vshrl.u32 %v3338, 30
  %v3340 = vshll.u32 %v3339, 30
  %v3341 = vsub.s32 %v3337, %v3340
  %vm3342 = vcmp.lt.s32.totalorder %v3341, 0
  %v3343 = vsub.s32 0, %v3341
  %v3344 = vsel %vm3342, %v3343, %v3341
  %v3345 = vclz %v3344
  %v3346 = vsub.s32 %v3345, 2
  %vm3347 = vcmp.gt.s32.totalorder 0, %v3346
  %v3348 = vsel %vm3347, 0, %v3346
  %v3349 = vsub.s32 32, %v3348
  %v3350 = vshll.u32 %v3341, %v3348
  %v3351 = vshrl.u32 %v3333, %v3349
  %v3352 = vor.u32 %v3350, %v3351
  %v3353 = vsub.s32 4294967266, %v3348
  %v3354 = vadd.s32 %v3353, 127
  %v3355 = vshll.u32 %v3354, 23
  %v3356 = vor.u32 4788187, %v3355
  %v3357 = vand.u32 2147483647, %v3356
  %v3359 = vcvt.s32.f32 %v3352
  %v3360 = vmul.f32 %v3359, %v3357
  %v3361 = vxor.u32 %v3360, 2147483648
  %v3362 = vsel %vm3241, %v3361, %v3360
  %v3363 = vsub.s32 4, %v3339
  %v3364 = vsel %vm3241, %v3363, %v3339
  %v3365 = vsel %vm3240, %v3236, %v3362
  %v3366 = vsel %vm3240, 0, %v3364
  %v3367 = vmul.f32 %v3365, %v3365
  %v3368 = vmul.f32 %v3367, -0.001358992
  %v3369 = vadd.f32 %v3368, 0.041655596
  %v3370 = vmul.f32 %v3367, %v3369
  %v3371 = vadd.f32 %v3370, -0.4999988
  %v3372 = vmul.f32 %v3367, %v3371
  %v3373 = vadd.f32 1.0, %v3372
  %v3374 = vmul.f32 %v3365, %v3365
  %v3375 = vmul.f32 %v3374, -0.00019511016
  %v3376 = vadd.f32 %v3375, 0.008332121
  %v3377 = vmul.f32 %v3374, %v3376
  %v3378 = vadd.f32 %v3377, -0.16666654
  %v3379 = vmul.f32 %v3374, %v3378
  %v3380 = vadd.f32 %v3379, 1.0
  %v3381 = vmul.f32 %v3380, %v3365
  %vm3382 = vweird.f32 %v3236
  %v3383 = vand.u32 %v3366, 3
  %vm3384 = vcmp.lt.s32.totalorder %v3383, 2
  %vm3385 = vcmp.eq.s32.totalorder %v3383, 0
  %v3386 = vxor.u32 %v3381, 2147483648
  %v3387 = vsel %vm3385, %v3373, %v3386
  %vm3388 = vcmp.eq.s32.totalorder %v3383, 2
  %v3389 = vxor.u32 %v3373, 2147483648
  %v3390 = vsel %vm3388, %v3389, %v3381
  %v3391 = vsel %vm3384, %v3387, %v3390
  %v3392 = vsel %vm3382, nan, %v3391
  %v3393 = vmax.f32 %v3392, 0.0
  %v3394 = vld [vmem:[%s12] sm:$0xf]
  %v3395 = vpack.c.bf16 %v3393, %v3393
  %v3397 = vsel %vm337, %v3394, 0
  %v3400 = vsel %vm341, %v3395, 0
  %3402 = vmatpush.bf16.msra.mxu0 0
  %3403 = vmatpush.bf16.msra.mxu0 0
  %3404 = vmatpush.bf16.msra.mxu0 0
  %3405 = vmatpush.bf16.msra.mxu0 0
  %3406 = vmatpush.bf16.msra.mxu0 0
  %3407 = vmatpush.bf16.msra.mxu0 0
  %3408 = vmatpush.bf16.msra.mxu0 0
  %3409 = vmatpush.bf16.msra.mxu0 %v3400
  %3410 = vmatmul.bf16.gmra.mxu0 %v3397
  %v3411 = vpop.f32.mrf.mxu0
  %v3412 = vadd.f32 0.0, %v3411
  %v3413 = vpop.f32.mrf.mxu0
  %3414 = vdwg.mxu0
  %v3415 = vand.u32 2147483647, %v3412
  %vm3416 = vcmp.le.f32.partialorder %v3415, 0.7853982
  %vm3417 = vcmp.lt.s32.totalorder %v3412, 0
  %v3418 = vand.u32 %v3412, 2139095040
  %v3419 = vshrl.u32 %v3418, 23
  %v3420 = vsub.s32 %v3419, 127
  %v3421 = vand.u32 2147483647, %v3412
  %v3422 = vand.u32 %v3421, 8388607
  %v3423 = vor.u32 %v3422, 8388608
  %v3424 = vsub.s32 0, %v3423
  %v3425 = vadd.s32 %v3420, 1
  %vm3426 = vcmp.gt.s32.totalorder %v3425, 0
  %v3427 = vsel %vm3426, %v3425, 0
  %v3428 = vshrl.u32 %v3427, 5
  %v3429 = vand.u32 %v3427, 31
  %v3430 = vsub.s32 32, %v3429
  %v3431 = vshrl.u32 683565275, %v3430
  %v3432 = vshll.u32 683565275, %v3429
  %v3433 = vshrl.u32 2475754826, %v3430
  %v3434 = vor.u32 %v3432, %v3433
  %v3435 = vshll.u32 2475754826, %v3429
  %v3436 = vshrl.u32 2131351028, %v3430
  %v3437 = vor.u32 %v3435, %v3436
  %v3438 = vshll.u32 2131351028, %v3429
  %v3439 = vshrl.u32 2102212464, %v3430
  %v3440 = vor.u32 %v3438, %v3439
  %v3441 = vshll.u32 2102212464, %v3429
  %v3442 = vshrl.u32 920167782, %v3430
  %v3443 = vor.u32 %v3441, %v3442
  %v3444 = vshll.u32 920167782, %v3429
  %v3445 = vshrl.u32 1326507024, %v3430
  %v3446 = vor.u32 %v3444, %v3445
  %vm3447 = vcmp.lt.s32.totalorder %v3428, 1
  %vm3448 = vcmp.lt.s32.totalorder %v3428, 2
  %vm3449 = vcmp.lt.s32.totalorder %v3428, 3
  %vm3450 = vcmp.lt.s32.totalorder %v3428, 4
  %v3451 = vsel %vm3447, %v3431, %v3434
  %v3452 = vsel %vm3450, %v3440, 2102212464
  %v3453 = vsel %vm3449, %v3437, %v3452
  %v3454 = vsel %vm3448, %v3451, %v3453
  %v3455 = vsel %vm3447, %v3434, %v3437
  %v3456 = vsel %vm3450, %v3443, 920167782
  %v3457 = vsel %vm3449, %v3440, %v3456
  %v3458 = vsel %vm3448, %v3455, %v3457
  %v3459 = vsel %vm3447, %v3437, %v3440
  %v3460 = vsel %vm3450, %v3446, 1326507024
  %v3461 = vsel %vm3449, %v3443, %v3460
  %v3462 = vsel %vm3448, %v3459, %v3461
  %v3463 = vshll.u32 %v3423, 8
  %v3464 = vand.u32 %v3463, 65535
  %v3465 = vshrl.u32 %v3463, 16
  %v3466 = vand.u32 %v3462, 65535
  %v3467 = vshrl.u32 %v3462, 16
  %v3468 = vmul.u32 %v3464, %v3466
  %v3469 = vmul.u32 %v3464, %v3467
  %v3470 = vmul.u32 %v3465, %v3466
  %v3471 = vmul.u32 %v3465, %v3467
  %v3472 = vshll.u32 %v3469, 16
  %v3473 = vshrl.u32 %v3469, 16
  %v3474 = vshll.u32 %v3470, 16
  %v3475 = vshrl.u32 %v3470, 16
  %vm3476 = vc.u32 %v3468, %v3472
  %v3477 = vsel %vm3476, 1, 0
  %v3478 = vadd.s32 %v3468, %v3472
  %v3479 = vadd.s32 %v3471, %v3477
  %vm3480 = vc.u32 %v3478, %v3474
  %v3481 = vsel %vm3480, 1, 0
  %v3482 = vadd.s32 %v3478, %v3474
  %v3483 = vadd.s32 %v3479, %v3481
  %v3484 = vadd.s32 %v3483, %v3473
  %v3485 = vadd.s32 %v3484, %v3475
  %v3486 = vand.u32 %v3463, 65535
  %v3487 = vshrl.u32 %v3463, 16
  %v3488 = vand.u32 %v3458, 65535
  %v3489 = vshrl.u32 %v3458, 16
  %v3490 = vmul.u32 %v3486, %v3488
  %v3491 = vmul.u32 %v3486, %v3489
  %v3492 = vmul.u32 %v3487, %v3488
  %v3493 = vmul.u32 %v3487, %v3489
  %v3494 = vshll.u32 %v3491, 16
  %v3495 = vshrl.u32 %v3491, 16
  %v3496 = vshll.u32 %v3492, 16
  %v3497 = vshrl.u32 %v3492, 16
  %vm3498 = vc.u32 %v3490, %v3494
  %v3499 = vsel %vm3498, 1, 0
  %v3500 = vadd.s32 %v3490, %v3494
  %v3501 = vadd.s32 %v3493, %v3499
  %vm3502 = vc.u32 %v3500, %v3496
  %v3503 = vsel %vm3502, 1, 0
  %v3504 = vadd.s32 %v3500, %v3496
  %v3505 = vadd.s32 %v3501, %v3503
  %v3506 = vadd.s32 %v3505, %v3495
  %v3507 = vadd.s32 %v3506, %v3497
  %v3508 = vmul.u32 %v3463, %v3454
  %v3509 = vadd.s32 %v3485, %v3504
  %vm3510 = vc.u32 %v3485, %v3504
  %v3511 = vadd.s32 %v3507, 1
  %v3512 = vsel %vm3510, %v3511, %v3507
  %v3513 = vadd.s32 %v3508, %v3512
  %v3514 = vadd.s32 %v3513, 536870912
  %v3515 = vshrl.u32 %v3514, 30
  %v3516 = vshll.u32 %v3515, 30
  %v3517 = vsub.s32 %v3513, %v3516
  %vm3518 = vcmp.lt.s32.totalorder %v3517, 0
  %v3519 = vsub.s32 0, %v3517
  %v3520 = vsel %vm3518, %v3519, %v3517
  %v3521 = vclz %v3520
  %v3522 = vsub.s32 %v3521, 2
  %vm3523 = vcmp.gt.s32.totalorder 0, %v3522
  %v3524 = vsel %vm3523, 0, %v3522
  %v3525 = vsub.s32 32, %v3524
  %v3526 = vshll.u32 %v3517, %v3524
  %v3527 = vshrl.u32 %v3509, %v3525
  %v3528 = vor.u32 %v3526, %v3527
  %v3529 = vsub.s32 4294967266, %v3524
  %v3530 = vadd.s32 %v3529, 127
  %v3531 = vshll.u32 %v3530, 23
  %v3532 = vor.u32 4788187, %v3531
  %v3533 = vand.u32 2147483647, %v3532
  %v3535 = vcvt.s32.f32 %v3528
  %v3536 = vmul.f32 %v3535, %v3533
  %v3537 = vxor.u32 %v3536, 2147483648
  %v3538 = vsel %vm3417, %v3537, %v3536
  %v3539 = vsub.s32 4, %v3515
  %v3540 = vsel %vm3417, %v3539, %v3515
  %v3541 = vsel %vm3416, %v3412, %v3538
  %v3542 = vsel %vm3416, 0, %v3540
  %v3543 = vmul.f32 %v3541, %v3541
  %v3544 = vmul.f32 %v3543, -0.001358992
  %v3545 = vadd.f32 %v3544, 0.041655596
  %v3546 = vmul.f32 %v3543, %v3545
  %v3547 = vadd.f32 %v3546, -0.4999988
  %v3548 = vmul.f32 %v3543, %v3547
  %v3549 = vadd.f32 1.0, %v3548
  %v3550 = vmul.f32 %v3541, %v3541
  %v3551 = vmul.f32 %v3550, -0.00019511016
  %v3552 = vadd.f32 %v3551, 0.008332121
  %v3553 = vmul.f32 %v3550, %v3552
  %v3554 = vadd.f32 %v3553, -0.16666654
  %v3555 = vmul.f32 %v3550, %v3554
  %v3556 = vadd.f32 %v3555, 1.0
  %v3557 = vmul.f32 %v3556, %v3541
  %vm3558 = vweird.f32 %v3412
  %v3559 = vand.u32 %v3542, 3
  %vm3560 = vcmp.lt.s32.totalorder %v3559, 2
  %vm3561 = vcmp.eq.s32.totalorder %v3559, 0
  %v3562 = vxor.u32 %v3557, 2147483648
  %v3563 = vsel %vm3561, %v3549, %v3562
  %vm3564 = vcmp.eq.s32.totalorder %v3559, 2
  %v3565 = vxor.u32 %v3549, 2147483648
  %v3566 = vsel %vm3564, %v3565, %v3557
  %v3567 = vsel %vm3560, %v3563, %v3566
  %v3568 = vsel %vm3558, nan, %v3567
  %v3569 = vmax.f32 %v3568, 0.0
  %v3570 = vld [vmem:[%s13] sm:$0x7]
  %v3571 = vpack.c.bf16 %v3569, %v3569
  %v3572 = vld [vmem:[%s14] sm:$0x3f]
  %3574 = vset.pattern.permute.xlu0 0
  %3575 = vperm.xlu0 %3574, %v3572
  %v3576 = vpop.permute.xlu0 %3575
  %v3579 = vsel %vm337, %v3570, 0
  %v3582 = vsel %vm341, %v3571, 0
  %3584 = vmatpush.bf16.msra.mxu0 0
  %3585 = vmatpush.bf16.msra.mxu0 0
  %3586 = vmatpush.bf16.msra.mxu0 0
  %3587 = vmatpush.bf16.msra.mxu0 0
  %3588 = vmatpush.bf16.msra.mxu0 0
  %3589 = vmatpush.bf16.msra.mxu0 0
  %3590 = vmatpush.bf16.msra.mxu0 0
  %3591 = vmatpush.bf16.msra.mxu0 %v3582
  %3592 = vmatmul.bf16.gmra.mxu0 %v3579
  %v3593 = vpop.f32.mrf.mxu0
  %v3594 = vadd.f32 %v3576, %v3593
  %v3595 = vpop.f32.mrf.mxu0
  %3596 = vdwg.mxu0
  %vm3597 = vcmask 13312
  %3598 = vst.msk [vmem:[%s15] sm:$0x3f] %vm3597, %v3594
  // Predicated region
  $region62: #{hybrid_lenet5_quanv_forward.1} parent=0 // pred_check
    _
  $region63: #{hybrid_lenet5_quanv_forward.1} parent=0 // pred_check_branch
    %3600 = sbr.rel (0) target = $region65
  $region64: #{hybrid_lenet5_quanv_forward.1} parent=0 // pred_region
    _
  $region65: #{hybrid_lenet5_quanv_forward.1} parent=0 // pred_fallthru
    _
  // Predicated region
  $region66: #{hybrid_lenet5_quanv_forward.1} parent=0 // pred_check
    _
  $region67: #{hybrid_lenet5_quanv_forward.1} parent=0 // pred_check_branch
    %3602 = sbr.rel (0) target = $region69
  $region68: #{hybrid_lenet5_quanv_forward.1} parent=0 // pred_region
    _
  $region69: #{hybrid_lenet5_quanv_forward.1} parent=0 // pred_fallthru
    _

</llo_original>
